<compile_context>
chip_gen: v5e
topology: v5e:2x2
jax: 0.10.0
libtpu: 0.0.40
codegen_flags: <defaults>
</compile_context>

<pallas_src>
import functools
import numpy as np
import jax
import jax.numpy as jnp
from jax import lax
from jax.experimental import pallas as pl
from jax.experimental.pallas import tpu as pltpu

# ---- small shapes consistent with the module structure ----
BATCH = 2
IMG_H = IMG_W = 16
IMG_C = 3
ENC_DIM = 128            # stands in for resnet's 2048
POOL_SIZE = 4            # stands in for encoded_image_size=14 -> num_pixels=16
NUM_PIX = POOL_SIZE * POOL_SIZE
EMBED_DIM = 64           # decoder embed_dim (torch example: 512)
VOCAB = 50
VOCAB_PAD = 128          # lane-dense projection output, sliced back to VOCAB in wrapper
SEQ = 8                  # caption length (torch: 52; pos table has 51 rows)
N_HEADS = 2
QKV_DIM = 32             # torch: 64
D_FF_ENC = 256           # torch: 4096
D_FF_DEC = 128           # torch: 2048
ENC_LAYERS = 1
DEC_LAYERS = 1
LN_EPS = 1e-5
STEM_K = 32              # im2col contraction (3*3*3=27) padded to 32
ATTN_PAD = 128           # keys / attention maps padded to 128 lanes (lane-dense stores)
NEG_INF = -1000000000.0  # matches torch masked_fill_(-1e9)


# ============================ kernel helpers ============================

def _layer_norm(y, eps):
    # torch creates a fresh nn.LayerNorm each forward -> gamma=1, beta=0 exactly.
    mean = jnp.mean(y, axis=-1, keepdims=True)
    var = jnp.mean(jnp.square(y - mean), axis=-1, keepdims=True)
    return (y - mean) * lax.rsqrt(var + eps)


def _heads_attention(q_all, k_all, v_all, bias, attn_ref, layer_idx,
                     batch, lq, lk, n_heads, qkv_dim):
    """q_all: [B*lq, H*QD] f32; k_all/v_all: [B*lk, H*QD] f32.
    K/V rows are zero-padded to ATTN_PAD keys and `bias` (per-batch [lq, ATTN_PAD],
    must contain -1e9 on padded/masked key columns) is added to the scores, so the
    softmax output is directly a lane-dense [lq, ATTN_PAD] map (pad columns == 0).
    Stores attention maps to attn_ref[layer_idx, b, h]; returns ctx [B*lq, H*QD]."""
    hq = n_heads * qkv_dim
    krow_pad = jnp.zeros((ATTN_PAD - lk, hq), jnp.float32)        # hoisted constant
    ctx_rows = []
    for b in range(batch):
        rq, rk = b * lq, b * lk
        k_b = jnp.concatenate([k_all[rk:rk + lk, :], krow_pad], axis=0)   # [128, H*QD]
        v_b = jnp.concatenate([v_all[rk:rk + lk, :], krow_pad], axis=0)   # [128, H*QD]
        ctx_heads = []
        for h in range(n_heads):
            c0 = h * qkv_dim
            q = q_all[rq:rq + lq, c0:c0 + qkv_dim]                        # [lq, QD]
            scores = lax.dot_general(q, k_b[:, c0:c0 + qkv_dim],
                                     (((1,), (1,)), ((), ())),
                                     preferred_element_type=jnp.float32)  # [lq, 128]
            scores = scores + bias[b]
            s_max = jnp.max(scores, axis=-1, keepdims=True)
            e = jnp.exp(scores - s_max)
            attn = e / jnp.sum(e, axis=-1, keepdims=True)                 # [lq, 128]
            attn_ref[layer_idx, b, h] = attn                              # lane-dense vst
            ctx_heads.append(jnp.dot(attn, v_b[:, c0:c0 + qkv_dim],
                                     preferred_element_type=jnp.float32))
        ctx_rows.append(jnp.concatenate(ctx_heads, axis=-1))              # [lq, H*QD]
    return jnp.concatenate(ctx_rows, axis=0)                              # [B*lq, H*QD]


# ============================ Pallas kernels ============================

def _encoder_kernel(*refs, n_layers, n_heads, batch, num_pix, qkv_dim, eps):
    """Fused: conv stem + ReLU + adaptive-avg-pool + pos table + encoder stack."""
    cols_ref, conv_w_ref, conv_b_ref, pool_ref, pos_ref = refs[:5]
    layer_refs = refs[5:5 + 8 * n_layers]
    out_ref = refs[5 + 8 * n_layers]
    attn_ref = refs[6 + 8 * n_layers]

    # conv stem (3x3/s2 conv as matmul on im2col cols) + ReLU
    feat = jnp.dot(cols_ref[...].astype(jnp.bfloat16), conv_w_ref[...],
                   preferred_element_type=jnp.float32) + conv_b_ref[...]
    feat = jnp.maximum(feat, 0.0)                                   # [B*HW, ENC_DIM]
    # adaptive average pool (block-diagonal matmul folds batch) + encoder pos table
    x = jnp.dot(pool_ref[...], feat,
                preferred_element_type=jnp.float32) + pos_ref[...]  # [B*NP, ENC_DIM]

    hq = n_heads * qkv_dim
    # encoder self-attn mask is identically False; only the key-padding columns
    # (>= num_pix, introduced by the lane-dense K padding) need masking.
    col = lax.broadcasted_iota(jnp.int32, (num_pix, ATTN_PAD), 1)
    pad_bias = jnp.where(col >= num_pix, NEG_INF, 0.0).astype(jnp.float32)
    biases = [pad_bias] * batch

    for l in range(n_layers):
        (wqkv, bqkv, wo, bo, w1, b1, w2, b2) = layer_refs[8 * l:8 * l + 8]

        # -- self attention: one wide Q|K|V projection, heads sliced from columns --
        qkv = jnp.dot(x.astype(jnp.bfloat16), wqkv[...],
                      preferred_element_type=jnp.float32) + bqkv[...]    # [B*NP, 3*H*QD]
        ctx = _heads_attention(qkv[:, :hq], qkv[:, hq:2 * hq], qkv[:, 2 * hq:3 * hq],
                               biases, attn_ref, l, batch, num_pix, num_pix,
                               n_heads, qkv_dim)
        y = x + bo[...] + jnp.dot(ctx.astype(jnp.bfloat16), wo[...],
                                  preferred_element_type=jnp.float32)
        x = _layer_norm(y, eps)

        # -- position-wise FFN (1x1 convs as matmuls) --
        h1 = jnp.maximum(jnp.dot(x.astype(jnp.bfloat16), w1[...],
                                 preferred_element_type=jnp.float32) + b1[...], 0.0)
        y = jnp.dot(h1.astype(jnp.bfloat16), w2[...],
                    preferred_element_type=jnp.float32) + b2[...] + x
        x = _layer_norm(y, eps)

    out_ref[...] = x.reshape(out_ref.shape)


def _decoder_kernel(*refs, n_layers, n_heads, batch, seq, num_pix, qkv_dim, eps):
    """Fused: in-kernel pad+causal mask, masked self-attn, cross-attn, FFN per layer,
       plus the final (bias-free) vocabulary projection padded to 128 lanes."""
    cap_ref, dec_in_ref, enc_ref = refs[:3]
    layer_refs = refs[3:3 + 14 * n_layers]
    proj_ref = refs[3 + 14 * n_layers]
    preds_ref = refs[4 + 14 * n_layers]
    sattn_ref = refs[5 + 14 * n_layers]
    eattn_ref = refs[6 + 14 * n_layers]

    embed = dec_in_ref.shape[-1]
    x = dec_in_ref[...].reshape(batch * seq, embed)                       # [B*L, E]
    enc_b = enc_ref[...].reshape(batch * num_pix,
                                 enc_ref.shape[-1]).astype(jnp.bfloat16)  # [B*NP, ENC]

    # decoder self-attn mask (key padding + subsequent/causal), built once in-kernel.
    # captions arrive zero-padded to ATTN_PAD, so the padded key columns are masked
    # by the same `== 0` test that masks real <pad> tokens.
    col = lax.broadcasted_iota(jnp.int32, (seq, ATTN_PAD), 1)
    row = lax.broadcasted_iota(jnp.int32, (seq, ATTN_PAD), 0)
    causal = col > row
    key_is_pad = cap_ref[...] == 0                                        # [B, ATTN_PAD]
    self_bias = [jnp.where(jnp.logical_or(causal, key_is_pad[b:b + 1, :]),
                           NEG_INF, 0.0).astype(jnp.float32)
                 for b in range(batch)]
    # decoder-encoder mask is identically False; only mask padded key columns.
    cross_bias = [jnp.where(col >= num_pix, NEG_INF, 0.0).astype(jnp.float32)] * batch

    hq = n_heads * qkv_dim
    for l in range(n_layers):
        (wqkv_s, bqkv_s, wo_s, bo_s,
         wq_c, bq_c, wkv_c, bkv_c, wo_c, bo_c,
         w1, b1, w2, b2) = layer_refs[14 * l:14 * l + 14]

        # -- masked decoder self attention --
        qkv = jnp.dot(x.astype(jnp.bfloat16), wqkv_s[...],
                      preferred_element_type=jnp.float32) + bqkv_s[...]   # [B*L, 3*H*QD]
        ctx = _heads_attention(qkv[:, :hq], qkv[:, hq:2 * hq], qkv[:, 2 * hq:3 * hq],
                               self_bias, sattn_ref, l, batch, seq, seq,
                               n_heads, qkv_dim)
        y = x + bo_s[...] + jnp.dot(ctx.astype(jnp.bfloat16), wo_s[...],
                                    preferred_element_type=jnp.float32)
        x = _layer_norm(y, eps)

        # -- encoder-decoder cross attention --
        q_all = jnp.dot(x.astype(jnp.bfloat16), wq_c[...],
                        preferred_element_type=jnp.float32) + bq_c[...]   # [B*L, H*QD]
        kv = jnp.dot(enc_b, wkv_c[...],
                     preferred_element_type=jnp.float32) + bkv_c[...]     # [B*NP, 2*H*QD]
        ctx = _heads_attention(q_all, kv[:, :hq], kv[:, hq:2 * hq],
                               cross_bias, eattn_ref, l, batch, seq, num_pix,
                               n_heads, qkv_dim)
        y = x + bo_c[...] + jnp.dot(ctx.astype(jnp.bfloat16), wo_c[...],
                                    preferred_element_type=jnp.float32)
        x = _layer_norm(y, eps)

        # -- position-wise FFN --
        h1 = jnp.maximum(jnp.dot(x.astype(jnp.bfloat16), w1[...],
                                 preferred_element_type=jnp.float32) + b1[...], 0.0)
        y = jnp.dot(h1.astype(jnp.bfloat16), w2[...],
                    preferred_element_type=jnp.float32) + b2[...] + x
        x = _layer_norm(y, eps)

    # final bias-free vocab projection (weights padded to 128 lanes -> lane-dense store)
    preds_ref[...] = jnp.dot(x.astype(jnp.bfloat16), proj_ref[...],
                             preferred_element_type=jnp.float32).reshape(preds_ref.shape)


# ============================ kernel wrappers ============================

def _vmem_specs(n):
    return [pl.BlockSpec(memory_space=pltpu.MemorySpace.VMEM) for _ in range(n)]


def encoder_pallas(cols, params):
    """cols: [B*HW, STEM_K] -> (encoder_out [B, NUM_PIX, ENC_DIM],
                                 attn_padded [ENC_LAYERS, B, H, NUM_PIX, 128])."""
    enc_p = params['encoder']
    args = [cols, params['conv_w'], params['conv_b'], params['pool_big'],
            enc_p['pos_tiled']]
    for lp in enc_p['layers']:
        a, f = lp['attn'], lp['ffn']
        args += [a['W_qkv'], a['b_qkv'], a['W_O'], a['b_O'],
                 f['w1'], f['b1'], f['w2'], f['b2']]
    out_shape = (
        jax.ShapeDtypeStruct((BATCH, NUM_PIX, ENC_DIM), jnp.float32),
        jax.ShapeDtypeStruct((ENC_LAYERS, BATCH, N_HEADS, NUM_PIX, ATTN_PAD),
                             jnp.float32),
    )
    return pl.pallas_call(
        functools.partial(_encoder_kernel, n_layers=ENC_LAYERS, n_heads=N_HEADS,
                          batch=BATCH, num_pix=NUM_PIX, qkv_dim=QKV_DIM, eps=LN_EPS),
        out_shape=out_shape,
        in_specs=_vmem_specs(len(args)),
        out_specs=tuple(_vmem_specs(2)),
    )(*args)


def decoder_pallas(encoder_out, captions, params):
    """Returns (preds_padded [B, L, 128], self_attn_padded, enc_attn_padded)."""
    dec_p = params['decoder']
    B, L = captions.shape
    # embedding gather + pos table (wrapper-side XLA; dropout -> identity)
    dec_in = dec_p['tgt_emb'][captions] + dec_p['pos_table'][:L][None, :, :]
    # captions zero-padded to 128 so the in-kernel mask also covers padded key lanes
    cap_pad = jnp.pad(captions.astype(jnp.int32), ((0, 0), (0, ATTN_PAD - L)))
    args = [cap_pad, dec_in, encoder_out]
    for lp in dec_p['layers']:
        s, c, f = lp['self_attn'], lp['enc_attn'], lp['ffn']
        args += [s['W_qkv'], s['b_qkv'], s['W_O'], s['b_O'],
                 c['W_Q'], c['b_Q'], c['W_KV'], c['b_KV'], c['W_O'], c['b_O'],
                 f['w1'], f['b1'], f['w2'], f['b2']]
    args.append(dec_p['proj_w'])
    out_shape = (
        jax.ShapeDtypeStruct((B, L, VOCAB_PAD), jnp.float32),
        jax.ShapeDtypeStruct((DEC_LAYERS, B, N_HEADS, L, ATTN_PAD), jnp.float32),
        jax.ShapeDtypeStruct((DEC_LAYERS, B, N_HEADS, L, ATTN_PAD), jnp.float32),
    )
    return pl.pallas_call(
        functools.partial(_decoder_kernel, n_layers=DEC_LAYERS, n_heads=N_HEADS,
                          batch=B, seq=L, num_pix=NUM_PIX, qkv_dim=QKV_DIM, eps=LN_EPS),
        out_shape=out_shape,
        in_specs=_vmem_specs(len(args)),
        out_specs=tuple(_vmem_specs(3)),
    )(*args)


# ============================ parameters ============================

def linear_params(key, fan_in, fan_out):
    kw, kb = jax.random.split(key)
    bound = 1.0 / np.sqrt(fan_in)
    w = jax.random.uniform(kw, (fan_in, fan_out), jnp.float32, -bound, bound)
    b = jax.random.uniform(kb, (1, fan_out), jnp.float32, -bound, bound)
    return w, b


def mha_self_params(key, model_dim, qkv_dim, n_heads):
    """Packed [W_Q | W_K | W_V] for one wide projection matmul; head h lives at
       columns [h*QD, (h+1)*QD) of each block; 1/sqrt(QKVdim) folded into Q."""
    ks = jax.random.split(key, 4)
    scale = 1.0 / np.sqrt(qkv_dim)
    wq, bq = linear_params(ks[0], model_dim, qkv_dim * n_heads)
    wk, bk = linear_params(ks[1], model_dim, qkv_dim * n_heads)
    wv, bv = linear_params(ks[2], model_dim, qkv_dim * n_heads)
    wo, bo = linear_params(ks[3], qkv_dim * n_heads, model_dim)
    return dict(W_qkv=jnp.concatenate([wq * scale, wk, wv], axis=1).astype(jnp.bfloat16),
                b_qkv=jnp.concatenate([bq * scale, bk, bv], axis=1),
                W_O=wo.astype(jnp.bfloat16), b_O=bo)


def mha_cross_params(key, q_dim, k_dim, qkv_dim, n_heads):
    """Cross attention: Q from decoder stream, packed [W_K | W_V] over encoder feats."""
    ks = jax.random.split(key, 4)
    scale = 1.0 / np.sqrt(qkv_dim)
    wq, bq = linear_params(ks[0], q_dim, qkv_dim * n_heads)
    wk, bk = linear_params(ks[1], k_dim, qkv_dim * n_heads)
    wv, bv = linear_params(ks[2], k_dim, qkv_dim * n_heads)
    wo, bo = linear_params(ks[3], qkv_dim * n_heads, q_dim)
    return dict(W_Q=(wq * scale).astype(jnp.bfloat16), b_Q=bq * scale,
                W_KV=jnp.concatenate([wk, wv], axis=1).astype(jnp.bfloat16),
                b_KV=jnp.concatenate([bk, bv], axis=1),
                W_O=wo.astype(jnp.bfloat16), b_O=bo)


def ffn_params(key, embed_dim, d_ff):
    k1, k2 = jax.random.split(key)
    w1, b1 = linear_params(k1, embed_dim, d_ff)    # conv1 (kernel_size=1)
    w2, b2 = linear_params(k2, d_ff, embed_dim)    # conv2 (kernel_size=1)
    return dict(w1=w1.astype(jnp.bfloat16), b1=b1,
                w2=w2.astype(jnp.bfloat16), b2=b2)


def decoder_pos_table(embed_dim, n_pos=51):
    tab = np.array([[pos / np.power(10000, 2 * (i // 2) / embed_dim)
                     for i in range(embed_dim)] for pos in range(n_pos)])
    tab[:, 0::2] = np.sin(tab[:, 0::2])
    tab[:, 1::2] = np.cos(tab[:, 1::2])
    return jnp.asarray(tab, jnp.float32)


def encoder_pos_table(num_pix, side, enc_dim):
    half = enc_dim // 2

    def cal(pos, h):
        x = pos % side
        y = pos // side
        xe = x / np.power(10000, h / half)
        ye = y / np.power(10000, h / half)
        if h % 2 == 0:
            return np.sin(xe), np.cos(ye)
        return np.cos(xe), np.sin(ye)

    rows = []
    for pos in range(num_pix):
        rows.append([cal(pos, h)[0] for h in range(half)] +
                    [cal(pos, h)[1] for h in range(half)])
    return jnp.asarray(np.array(rows), jnp.float32)


def adaptive_pool_matrix(hin, win, hout, wout):
    M = np.zeros((hout * wout, hin * win), np.float32)
    for oh in range(hout):
        hs, he = (oh * hin) // hout, -(-((oh + 1) * hin) // hout)
        for ow in range(wout):
            ws, we = (ow * win) // wout, -(-((ow + 1) * win) // wout)
            cnt = (he - hs) * (we - ws)
            for ih in range(hs, he):
                for iw in range(ws, we):
                    M[oh * wout + ow, ih * win + iw] = 1.0 / cnt
    return M


def block_diag_pool(pool_mat, batch):
    """Block-diagonal pooling matrix so the pool is one [B*NP, B*HW] matmul."""
    npx, hw = pool_mat.shape
    big = np.zeros((batch * npx, batch * hw), np.float32)
    for b in range(batch):
        big[b * npx:(b + 1) * npx, b * hw:(b + 1) * hw] = pool_mat
    return jnp.asarray(big)


def init_params(key):
    keys = jax.random.split(key, 20)
    # conv stem stand-in for resnet152 (3x3, stride 2, pad 1, 3 -> ENC_DIM) + ReLU
    conv_w, conv_b = linear_params(keys[0], 3 * 3 * IMG_C, ENC_DIM)
    conv_w = jnp.pad(conv_w, ((0, STEM_K - conv_w.shape[0]), (0, 0))).astype(jnp.bfloat16)

    pool_mat = adaptive_pool_matrix(IMG_H // 2, IMG_W // 2, POOL_SIZE, POOL_SIZE)
    enc_pos = encoder_pos_table(NUM_PIX, POOL_SIZE, ENC_DIM)

    enc_layers = []
    for i in range(ENC_LAYERS):
        ka, kf = jax.random.split(keys[1 + i])
        enc_layers.append(dict(attn=mha_self_params(ka, ENC_DIM, QKV_DIM, N_HEADS),
                               ffn=ffn_params(kf, ENC_DIM, D_FF_ENC)))

    dec_layers = []
    for i in range(DEC_LAYERS):
        ks_, ke, kf = jax.random.split(keys[8 + i], 3)
        dec_layers.append(dict(
            self_attn=mha_self_params(ks_, EMBED_DIM, QKV_DIM, N_HEADS),
            enc_attn=mha_cross_params(ke, EMBED_DIM, ENC_DIM, QKV_DIM, N_HEADS),
            ffn=ffn_params(kf, EMBED_DIM, D_FF_DEC)))

    tgt_emb = jax.random.normal(keys[15], (VOCAB, EMBED_DIM), jnp.float32)
    tgt_emb = tgt_emb.at[0].set(0.0)                                # padding_idx=0
    proj_w = jax.random.uniform(keys[16], (EMBED_DIM, VOCAB), jnp.float32,
                                -1.0 / np.sqrt(EMBED_DIM), 1.0 / np.sqrt(EMBED_DIM))
    proj_w = jnp.pad(proj_w, ((0, 0), (0, VOCAB_PAD - VOCAB))).astype(jnp.bfloat16)

    return dict(
        conv_w=conv_w, conv_b=conv_b,
        pool_big=block_diag_pool(pool_mat, BATCH),
        encoder=dict(pos_tiled=jnp.tile(enc_pos, (BATCH, 1)), layers=enc_layers),
        decoder=dict(tgt_emb=tgt_emb, pos_table=decoder_pos_table(EMBED_DIM),
                     layers=dec_layers, proj_w=proj_w),
    )


# ============================ model forward ============================

def im2col(x_nhwc, kh, kw, stride):
    B, H, W, C = x_nhwc.shape
    Ho = (H - kh) // stride + 1
    Wo = (W - kw) // stride + 1
    patches = []
    for i in range(kh):
        for j in range(kw):
            patches.append(x_nhwc[:, i:i + stride * Ho:stride, j:j + stride * Wo:stride, :])
    cols = jnp.concatenate(patches, axis=-1)                # [B, Ho, Wo, kh*kw*C]
    return cols.reshape(B * Ho * Wo, kh * kw * C), Ho, Wo


def encoder_decoder_transformer(images, captions, params):
    """images: NCHW [B, 3, H, W]; captions: [B, L] int32."""
    # --- wrapper-side layout only (im2col); all matmuls live inside the kernels ---
    x = jnp.transpose(images, (0, 2, 3, 1))                 # NCHW -> NHWC
    x = jnp.pad(x, ((0, 0), (1, 1), (1, 1), (0, 0)))        # conv padding 1
    cols, _, _ = im2col(x, 3, 3, 2)                         # [B*HW, 27]
    cols = jnp.pad(cols, ((0, 0), (0, STEM_K - cols.shape[1])))

    # kernel 1: conv stem + pool + pos + full encoder stack
    encoder_out, enc_attn_pad = encoder_pallas(cols, params)
    # kernel 2: full decoder stack (masks built in-kernel) + vocab projection
    preds_pad, dec_sattn_pad, dec_eattn_pad = decoder_pallas(encoder_out, captions, params)

    L = captions.shape[1]
    preds = preds_pad[:, :, :VOCAB]                         # slice off the 128-lane pad
    alphas = {
        'enc_self_attns': [enc_attn_pad[l, ..., :NUM_PIX] for l in range(ENC_LAYERS)],
        'dec_self_attns': [dec_sattn_pad[l, ..., :L] for l in range(DEC_LAYERS)],
        'dec_enc_attns': [dec_eattn_pad[l, ..., :NUM_PIX] for l in range(DEC_LAYERS)],
    }
    return preds, alphas


# ============================ main ============================

if __name__ == "__main__":
    key = jax.random.PRNGKey(0)
    k_params, k_img = jax.random.split(key)
    params = init_params(k_params)

    images = jax.random.normal(k_img, (BATCH, IMG_C, IMG_H, IMG_W), jnp.float32)
    captions = jnp.array([[1, 5, 7, 9, 3, 0, 0, 0],
                          [2, 4, 6, 8, 10, 12, 0, 0]], dtype=jnp.int32)

    forward = jax.jit(encoder_decoder_transformer)
    preds, alphas = forward(images, captions, params)
    jax.block_until_ready(preds)
    for lst in alphas.values():
        for a in lst:
            jax.block_until_ready(a)

    assert preds.shape == (BATCH, SEQ, VOCAB)
    assert alphas['enc_self_attns'][0].shape == (BATCH, N_HEADS, NUM_PIX, NUM_PIX)
    assert alphas['dec_self_attns'][0].shape == (BATCH, N_HEADS, SEQ, SEQ)
    assert alphas['dec_enc_attns'][0].shape == (BATCH, N_HEADS, SEQ, NUM_PIX)
    assert bool(jnp.all(jnp.isfinite(preds)))
    print("KERNEL_OK")
</pallas_src>

<mosaic_0001>
module attributes {stable_mosaic.version = 11 : i64} {
  func.func @_encoder_kernel(%arg0: memref<128x32xf32, #tpu.memory_space<vmem>>, %arg1: memref<32x128xbf16, #tpu.memory_space<vmem>>, %arg2: memref<1x128xf32, #tpu.memory_space<vmem>>, %arg3: memref<32x128xf32, #tpu.memory_space<vmem>>, %arg4: memref<32x128xf32, #tpu.memory_space<vmem>>, %arg5: memref<128x192xbf16, #tpu.memory_space<vmem>>, %arg6: memref<1x192xf32, #tpu.memory_space<vmem>>, %arg7: memref<64x128xbf16, #tpu.memory_space<vmem>>, %arg8: memref<1x128xf32, #tpu.memory_space<vmem>>, %arg9: memref<128x256xbf16, #tpu.memory_space<vmem>>, %arg10: memref<1x256xf32, #tpu.memory_space<vmem>>, %arg11: memref<256x128xbf16, #tpu.memory_space<vmem>>, %arg12: memref<1x128xf32, #tpu.memory_space<vmem>>, %arg13: memref<2x16x128xf32, #tpu.memory_space<vmem>>, %arg14: memref<1x2x2x16x128xf32, #tpu.memory_space<vmem>>) attributes {dimension_semantics = [], scalar_prefetch = 0 : i64, scratch_operands = 0 : i64, tpu.core_type = #tpu.core_type<tc>} {
    %c0 = arith.constant 0 : index
    %c0_0 = arith.constant 0 : index
    %0 = vector.load %arg0[%c0, %c0_0] : memref<128x32xf32, #tpu.memory_space<vmem>>, vector<128x32xf32>
    %1 = arith.truncf %0 : vector<128x32xf32> to vector<128x32xbf16>
    %c0_1 = arith.constant 0 : index
    %c0_2 = arith.constant 0 : index
    %2 = vector.load %arg1[%c0_1, %c0_2] : memref<32x128xbf16, #tpu.memory_space<vmem>>, vector<32x128xbf16>
    %cst = arith.constant dense<0.000000e+00> : vector<128x128xf32>
    %3 = tpu.matmul %1, %2, %cst {dimension_numbers = #tpu.dot_dimension_numbers<[1], [0], [0], [1], [0, 0, 1, 1], [], []>} : vector<128x32xbf16>, vector<32x128xbf16>, vector<128x128xf32> -> vector<128x128xf32>
    %c0_3 = arith.constant 0 : index
    %c0_4 = arith.constant 0 : index
    %4 = vector.load %arg2[%c0_3, %c0_4] : memref<1x128xf32, #tpu.memory_space<vmem>>, vector<1x128xf32>
    %5 = vector.broadcast %4 : vector<1x128xf32> to vector<128x128xf32>
    %6 = arith.addf %3, %5 : vector<128x128xf32>
    %cst_5 = arith.constant 0.000000e+00 : f32
    %7 = vector.broadcast %cst_5 : f32 to vector<128x128xf32>
    %8 = arith.maximumf %6, %7 : vector<128x128xf32>
    %c0_6 = arith.constant 0 : index
    %c0_7 = arith.constant 0 : index
    %9 = vector.load %arg3[%c0_6, %c0_7] : memref<32x128xf32, #tpu.memory_space<vmem>>, vector<32x128xf32>
    %cst_8 = arith.constant dense<0.000000e+00> : vector<32x128xf32>
    %10 = tpu.matmul %9, %8, %cst_8 {dimension_numbers = #tpu.dot_dimension_numbers<[1], [0], [0], [1], [0, 0, 1, 1], [], []>} : vector<32x128xf32>, vector<128x128xf32>, vector<32x128xf32> -> vector<32x128xf32>
    %c0_9 = arith.constant 0 : index
    %c0_10 = arith.constant 0 : index
    %11 = vector.load %arg4[%c0_9, %c0_10] : memref<32x128xf32, #tpu.memory_space<vmem>>, vector<32x128xf32>
    %12 = arith.addf %10, %11 : vector<32x128xf32>
    %13 = tpu.iota {dimensions = array<i32: 1>} : vector<16x128xi32>
    %c16_i32 = arith.constant 16 : i32
    %14 = vector.broadcast %c16_i32 : i32 to vector<16x128xi32>
    %15 = arith.cmpi sge, %13, %14 : vector<16x128xi32>
    %cst_11 = arith.constant -1.000000e+09 : f32
    %cst_12 = arith.constant 0.000000e+00 : f32
    %16 = vector.broadcast %cst_11 : f32 to vector<16x128xf32>
    %17 = vector.broadcast %cst_12 : f32 to vector<16x128xf32>
    %18 = arith.select %15, %16, %17 : vector<16x128xi1>, vector<16x128xf32>
    %19 = arith.truncf %12 : vector<32x128xf32> to vector<32x128xbf16>
    %c0_13 = arith.constant 0 : index
    %c0_14 = arith.constant 0 : index
    %20 = vector.load %arg5[%c0_13, %c0_14] : memref<128x192xbf16, #tpu.memory_space<vmem>>, vector<128x192xbf16>
    %cst_15 = arith.constant dense<0.000000e+00> : vector<32x192xf32>
    %21 = tpu.matmul %19, %20, %cst_15 {dimension_numbers = #tpu.dot_dimension_numbers<[1], [0], [0], [1], [0, 0, 1, 1], [], []>} : vector<32x128xbf16>, vector<128x192xbf16>, vector<32x192xf32> -> vector<32x192xf32>
    %c0_16 = arith.constant 0 : index
    %c0_17 = arith.constant 0 : index
    %22 = vector.load %arg6[%c0_16, %c0_17] : memref<1x192xf32, #tpu.memory_space<vmem>>, vector<1x192xf32>
    %23 = vector.broadcast %22 : vector<1x192xf32> to vector<32x192xf32>
    %24 = arith.addf %21, %23 : vector<32x192xf32>
    %25 = vector.extract_strided_slice %24 {offsets = [0, 0], sizes = [32, 64], strides = [1, 1]} : vector<32x192xf32> to vector<32x64xf32>
    %26 = vector.extract_strided_slice %24 {offsets = [0, 64], sizes = [32, 64], strides = [1, 1]} : vector<32x192xf32> to vector<32x64xf32>
    %27 = vector.extract_strided_slice %24 {offsets = [0, 128], sizes = [32, 64], strides = [1, 1]} : vector<32x192xf32> to vector<32x64xf32>
    %cst_18 = arith.constant 0.000000e+00 : f32
    %28 = vector.broadcast %cst_18 : f32 to vector<112x64xf32>
    %29 = vector.extract_strided_slice %26 {offsets = [0, 0], sizes = [16, 64], strides = [1, 1]} : vector<32x64xf32> to vector<16x64xf32>
    %30 = tpu.concatenate %29, %28 in 0 : vector<16x64xf32>, vector<112x64xf32> -> vector<128x64xf32>
    %31 = vector.extract_strided_slice %27 {offsets = [0, 0], sizes = [16, 64], strides = [1, 1]} : vector<32x64xf32> to vector<16x64xf32>
    %32 = tpu.concatenate %31, %28 in 0 : vector<16x64xf32>, vector<112x64xf32> -> vector<128x64xf32>
    %33 = vector.extract_strided_slice %25 {offsets = [0, 0], sizes = [16, 32], strides = [1, 1]} : vector<32x64xf32> to vector<16x32xf32>
    %34 = vector.extract_strided_slice %30 {offsets = [0, 0], sizes = [128, 32], strides = [1, 1]} : vector<128x64xf32> to vector<128x32xf32>
    %cst_19 = arith.constant dense<0.000000e+00> : vector<16x128xf32>
    %35 = tpu.matmul %33, %34, %cst_19 {dimension_numbers = #tpu.dot_dimension_numbers<[1], [1], [0], [0], [0, 0, 1, 0], [], []>} : vector<16x32xf32>, vector<128x32xf32>, vector<16x128xf32> -> vector<16x128xf32>
    %36 = arith.addf %35, %18 : vector<16x128xf32>
    %cst_20 = arith.constant dense<0xFF800000> : vector<16xf32>
    %37 = vector.multi_reduction <maximumf>, %36, %cst_20 [1] : vector<16x128xf32> to vector<16xf32>
    %38 = vector.shape_cast %37 : vector<16xf32> to vector<16x1xf32>
    %39 = vector.broadcast %38 : vector<16x1xf32> to vector<16x128xf32>
    %40 = arith.subf %36, %39 : vector<16x128xf32>
    %41 = math.exp %40 : vector<16x128xf32>
    %cst_21 = arith.constant dense<0.000000e+00> : vector<16xf32>
    %42 = vector.multi_reduction <add>, %41, %cst_21 [1] : vector<16x128xf32> to vector<16xf32>
    %43 = vector.shape_cast %42 : vector<16xf32> to vector<16x1xf32>
    %44 = vector.broadcast %43 : vector<16x1xf32> to vector<16x128xf32>
    %45 = arith.divf %41, %44 : vector<16x128xf32>
    %c0_22 = arith.constant 0 : index
    %c0_23 = arith.constant 0 : index
    %c0_24 = arith.constant 0 : index
    %c0_25 = arith.constant 0 : index
    %c0_26 = arith.constant 0 : index
    %46 = vector.load %arg14[%c0_22, %c0_23, %c0_24, %c0_25, %c0_26] : memref<1x2x2x16x128xf32, #tpu.memory_space<vmem>>, vector<1x1x1x16x128xf32>
    %47 = vector.shape_cast %46 : vector<1x1x1x16x128xf32> to vector<16x128xf32>
    %48 = vector.shape_cast %45 : vector<16x128xf32> to vector<1x1x1x16x128xf32>
    tpu.vector_store %arg14[%c0_22, %c0_23, %c0_24, %c0_25, %c0_26], %48 {strides = array<i32>} : memref<1x2x2x16x128xf32, #tpu.memory_space<vmem>>, vector<1x1x1x16x128xf32>,
    %49 = vector.extract_strided_slice %32 {offsets = [0, 0], sizes = [128, 32], strides = [1, 1]} : vector<128x64xf32> to vector<128x32xf32>
    %cst_27 = arith.constant dense<0.000000e+00> : vector<16x32xf32>
    %50 = tpu.matmul %45, %49, %cst_27 {dimension_numbers = #tpu.dot_dimension_numbers<[1], [0], [0], [1], [0, 0, 1, 1], [], []>} : vector<16x128xf32>, vector<128x32xf32>, vector<16x32xf32> -> vector<16x32xf32>
    %51 = vector.extract_strided_slice %25 {offsets = [0, 32], sizes = [16, 32], strides = [1, 1]} : vector<32x64xf32> to vector<16x32xf32>
    %52 = vector.extract_strided_slice %30 {offsets = [0, 32], sizes = [128, 32], strides = [1, 1]} : vector<128x64xf32> to vector<128x32xf32>
    %cst_28 = arith.constant dense<0.000000e+00> : vector<16x128xf32>
    %53 = tpu.matmul %51, %52, %cst_28 {dimension_numbers = #tpu.dot_dimension_numbers<[1], [1], [0], [0], [0, 0, 1, 0], [], []>} : vector<16x32xf32>, vector<128x32xf32>, vector<16x128xf32> -> vector<16x128xf32>
    %54 = arith.addf %53, %18 : vector<16x128xf32>
    %cst_29 = arith.constant dense<0xFF800000> : vector<16xf32>
    %55 = vector.multi_reduction <maximumf>, %54, %cst_29 [1] : vector<16x128xf32> to vector<16xf32>
    %56 = vector.shape_cast %55 : vector<16xf32> to vector<16x1xf32>
    %57 = vector.broadcast %56 : vector<16x1xf32> to vector<16x128xf32>
    %58 = arith.subf %54, %57 : vector<16x128xf32>
    %59 = math.exp %58 : vector<16x128xf32>
    %cst_30 = arith.constant dense<0.000000e+00> : vector<16xf32>
    %60 = vector.multi_reduction <add>, %59, %cst_30 [1] : vector<16x128xf32> to vector<16xf32>
    %61 = vector.shape_cast %60 : vector<16xf32> to vector<16x1xf32>
    %62 = vector.broadcast %61 : vector<16x1xf32> to vector<16x128xf32>
    %63 = arith.divf %59, %62 : vector<16x128xf32>
    %c0_31 = arith.constant 0 : index
    %c0_32 = arith.constant 0 : index
    %c1 = arith.constant 1 : index
    %c0_33 = arith.constant 0 : index
    %c0_34 = arith.constant 0 : index
    %64 = vector.load %arg14[%c0_31, %c0_32, %c1, %c0_33, %c0_34] : memref<1x2x2x16x128xf32, #tpu.memory_space<vmem>>, vector<1x1x1x16x128xf32>
    %65 = vector.shape_cast %64 : vector<1x1x1x16x128xf32> to vector<16x128xf32>
    %66 = vector.shape_cast %63 : vector<16x128xf32> to vector<1x1x1x16x128xf32>
    tpu.vector_store %arg14[%c0_31, %c0_32, %c1, %c0_33, %c0_34], %66 {strides = array<i32>} : memref<1x2x2x16x128xf32, #tpu.memory_space<vmem>>, vector<1x1x1x16x128xf32>,
    %67 = vector.extract_strided_slice %32 {offsets = [0, 32], sizes = [128, 32], strides = [1, 1]} : vector<128x64xf32> to vector<128x32xf32>
    %cst_35 = arith.constant dense<0.000000e+00> : vector<16x32xf32>
    %68 = tpu.matmul %63, %67, %cst_35 {dimension_numbers = #tpu.dot_dimension_numbers<[1], [0], [0], [1], [0, 0, 1, 1], [], []>} : vector<16x128xf32>, vector<128x32xf32>, vector<16x32xf32> -> vector<16x32xf32>
    %69 = tpu.concatenate %50, %68 in 1 : vector<16x32xf32>, vector<16x32xf32> -> vector<16x64xf32>
    %70 = vector.extract_strided_slice %26 {offsets = [16, 0], sizes = [16, 64], strides = [1, 1]} : vector<32x64xf32> to vector<16x64xf32>
    %71 = tpu.concatenate %70, %28 in 0 : vector<16x64xf32>, vector<112x64xf32> -> vector<128x64xf32>
    %72 = vector.extract_strided_slice %27 {offsets = [16, 0], sizes = [16, 64], strides = [1, 1]} : vector<32x64xf32> to vector<16x64xf32>
    %73 = tpu.concatenate %72, %28 in 0 : vector<16x64xf32>, vector<112x64xf32> -> vector<128x64xf32>
    %74 = vector.extract_strided_slice %25 {offsets = [16, 0], sizes = [16, 32], strides = [1, 1]} : vector<32x64xf32> to vector<16x32xf32>
    %75 = vector.extract_strided_slice %71 {offsets = [0, 0], sizes = [128, 32], strides = [1, 1]} : vector<128x64xf32> to vector<128x32xf32>
    %cst_36 = arith.constant dense<0.000000e+00> : vector<16x128xf32>
    %76 = tpu.matmul %74, %75, %cst_36 {dimension_numbers = #tpu.dot_dimension_numbers<[1], [1], [0], [0], [0, 0, 1, 0], [], []>} : vector<16x32xf32>, vector<128x32xf32>, vector<16x128xf32> -> vector<16x128xf32>
    %77 = arith.addf %76, %18 : vector<16x128xf32>
    %cst_37 = arith.constant dense<0xFF800000> : vector<16xf32>
    %78 = vector.multi_reduction <maximumf>, %77, %cst_37 [1] : vector<16x128xf32> to vector<16xf32>
    %79 = vector.shape_cast %78 : vector<16xf32> to vector<16x1xf32>
    %80 = vector.broadcast %79 : vector<16x1xf32> to vector<16x128xf32>
    %81 = arith.subf %77, %80 : vector<16x128xf32>
    %82 = math.exp %81 : vector<16x128xf32>
    %cst_38 = arith.constant dense<0.000000e+00> : vector<16xf32>
    %83 = vector.multi_reduction <add>, %82, %cst_38 [1] : vector<16x128xf32> to vector<16xf32>
    %84 = vector.shape_cast %83 : vector<16xf32> to vector<16x1xf32>
    %85 = vector.broadcast %84 : vector<16x1xf32> to vector<16x128xf32>
    %86 = arith.divf %82, %85 : vector<16x128xf32>
    %c0_39 = arith.constant 0 : index
    %c1_40 = arith.constant 1 : index
    %c0_41 = arith.constant 0 : index
    %c0_42 = arith.constant 0 : index
    %c0_43 = arith.constant 0 : index
    %87 = vector.load %arg14[%c0_39, %c1_40, %c0_41, %c0_42, %c0_43] : memref<1x2x2x16x128xf32, #tpu.memory_space<vmem>>, vector<1x1x1x16x128xf32>
    %88 = vector.shape_cast %87 : vector<1x1x1x16x128xf32> to vector<16x128xf32>
    %89 = vector.shape_cast %86 : vector<16x128xf32> to vector<1x1x1x16x128xf32>
    tpu.vector_store %arg14[%c0_39, %c1_40, %c0_41, %c0_42, %c0_43], %89 {strides = array<i32>} : memref<1x2x2x16x128xf32, #tpu.memory_space<vmem>>, vector<1x1x1x16x128xf32>,
    %90 = vector.extract_strided_slice %73 {offsets = [0, 0], sizes = [128, 32], strides = [1, 1]} : vector<128x64xf32> to vector<128x32xf32>
    %cst_44 = arith.constant dense<0.000000e+00> : vector<16x32xf32>
    %91 = tpu.matmul %86, %90, %cst_44 {dimension_numbers = #tpu.dot_dimension_numbers<[1], [0], [0], [1], [0, 0, 1, 1], [], []>} : vector<16x128xf32>, vector<128x32xf32>, vector<16x32xf32> -> vector<16x32xf32>
    %92 = vector.extract_strided_slice %25 {offsets = [16, 32], sizes = [16, 32], strides = [1, 1]} : vector<32x64xf32> to vector<16x32xf32>
    %93 = vector.extract_strided_slice %71 {offsets = [0, 32], sizes = [128, 32], strides = [1, 1]} : vector<128x64xf32> to vector<128x32xf32>
    %cst_45 = arith.constant dense<0.000000e+00> : vector<16x128xf32>
    %94 = tpu.matmul %92, %93, %cst_45 {dimension_numbers = #tpu.dot_dimension_numbers<[1], [1], [0], [0], [0, 0, 1, 0], [], []>} : vector<16x32xf32>, vector<128x32xf32>, vector<16x128xf32> -> vector<16x128xf32>
    %95 = arith.addf %94, %18 : vector<16x128xf32>
    %cst_46 = arith.constant dense<0xFF800000> : vector<16xf32>
    %96 = vector.multi_reduction <maximumf>, %95, %cst_46 [1] : vector<16x128xf32> to vector<16xf32>
    %97 = vector.shape_cast %96 : vector<16xf32> to vector<16x1xf32>
    %98 = vector.broadcast %97 : vector<16x1xf32> to vector<16x128xf32>
    %99 = arith.subf %95, %98 : vector<16x128xf32>
    %100 = math.exp %99 : vector<16x128xf32>
    %cst_47 = arith.constant dense<0.000000e+00> : vector<16xf32>
    %101 = vector.multi_reduction <add>, %100, %cst_47 [1] : vector<16x128xf32> to vector<16xf32>
    %102 = vector.shape_cast %101 : vector<16xf32> to vector<16x1xf32>
    %103 = vector.broadcast %102 : vector<16x1xf32> to vector<16x128xf32>
    %104 = arith.divf %100, %103 : vector<16x128xf32>
    %c0_48 = arith.constant 0 : index
    %c1_49 = arith.constant 1 : index
    %c1_50 = arith.constant 1 : index
    %c0_51 = arith.constant 0 : index
    %c0_52 = arith.constant 0 : index
    %105 = vector.load %arg14[%c0_48, %c1_49, %c1_50, %c0_51, %c0_52] : memref<1x2x2x16x128xf32, #tpu.memory_space<vmem>>, vector<1x1x1x16x128xf32>
    %106 = vector.shape_cast %105 : vector<1x1x1x16x128xf32> to vector<16x128xf32>
    %107 = vector.shape_cast %104 : vector<16x128xf32> to vector<1x1x1x16x128xf32>
    tpu.vector_store %arg14[%c0_48, %c1_49, %c1_50, %c0_51, %c0_52], %107 {strides = array<i32>} : memref<1x2x2x16x128xf32, #tpu.memory_space<vmem>>, vector<1x1x1x16x128xf32>,
    %108 = vector.extract_strided_slice %73 {offsets = [0, 32], sizes = [128, 32], strides = [1, 1]} : vector<128x64xf32> to vector<128x32xf32>
    %cst_53 = arith.constant dense<0.000000e+00> : vector<16x32xf32>
    %109 = tpu.matmul %104, %108, %cst_53 {dimension_numbers = #tpu.dot_dimension_numbers<[1], [0], [0], [1], [0, 0, 1, 1], [], []>} : vector<16x128xf32>, vector<128x32xf32>, vector<16x32xf32> -> vector<16x32xf32>
    %110 = tpu.concatenate %91, %109 in 1 : vector<16x32xf32>, vector<16x32xf32> -> vector<16x64xf32>
    %111 = tpu.concatenate %69, %110 in 0 : vector<16x64xf32>, vector<16x64xf32> -> vector<32x64xf32>
    %c0_54 = arith.constant 0 : index
    %c0_55 = arith.constant 0 : index
    %112 = vector.load %arg8[%c0_54, %c0_55] : memref<1x128xf32, #tpu.memory_space<vmem>>, vector<1x128xf32>
    %113 = vector.broadcast %112 : vector<1x128xf32> to vector<32x128xf32>
    %114 = arith.addf %12, %113 : vector<32x128xf32>
    %115 = arith.truncf %111 : vector<32x64xf32> to vector<32x64xbf16>
    %c0_56 = arith.constant 0 : index
    %c0_57 = arith.constant 0 : index
    %116 = vector.load %arg7[%c0_56, %c0_57] : memref<64x128xbf16, #tpu.memory_space<vmem>>, vector<64x128xbf16>
    %cst_58 = arith.constant dense<0.000000e+00> : vector<32x128xf32>
    %117 = tpu.matmul %115, %116, %cst_58 {dimension_numbers = #tpu.dot_dimension_numbers<[1], [0], [0], [1], [0, 0, 1, 1], [], []>} : vector<32x64xbf16>, vector<64x128xbf16>, vector<32x128xf32> -> vector<32x128xf32>
    %118 = arith.addf %114, %117 : vector<32x128xf32>
    %cst_59 = arith.constant dense<0.000000e+00> : vector<32xf32>
    %119 = vector.multi_reduction <add>, %118, %cst_59 [1] : vector<32x128xf32> to vector<32xf32>
    %120 = vector.shape_cast %119 : vector<32xf32> to vector<32x1xf32>
    %cst_60 = arith.constant 1.280000e+02 : f32
    %121 = vector.broadcast %cst_60 : f32 to vector<32x1xf32>
    %122 = arith.divf %120, %121 : vector<32x1xf32>
    %123 = vector.broadcast %122 : vector<32x1xf32> to vector<32x128xf32>
    %124 = arith.subf %118, %123 : vector<32x128xf32>
    %125 = arith.mulf %124, %124 : vector<32x128xf32>
    %cst_61 = arith.constant dense<0.000000e+00> : vector<32xf32>
    %126 = vector.multi_reduction <add>, %125, %cst_61 [1] : vector<32x128xf32> to vector<32xf32>
    %127 = vector.shape_cast %126 : vector<32xf32> to vector<32x1xf32>
    %cst_62 = arith.constant 1.280000e+02 : f32
    %128 = vector.broadcast %cst_62 : f32 to vector<32x1xf32>
    %129 = arith.divf %127, %128 : vector<32x1xf32>
    %130 = vector.broadcast %122 : vector<32x1xf32> to vector<32x128xf32>
    %131 = arith.subf %118, %130 : vector<32x128xf32>
    %cst_63 = arith.constant 9.99999974E-6 : f32
    %132 = vector.broadcast %cst_63 : f32 to vector<32x1xf32>
    %133 = arith.addf %129, %132 : vector<32x1xf32>
    %134 = math.rsqrt %133 : vector<32x1xf32>
    %135 = vector.broadcast %134 : vector<32x1xf32> to vector<32x128xf32>
    %136 = arith.mulf %131, %135 : vector<32x128xf32>
    %137 = arith.truncf %136 : vector<32x128xf32> to vector<32x128xbf16>
    %c0_64 = arith.constant 0 : index
    %c0_65 = arith.constant 0 : index
    %138 = vector.load %arg9[%c0_64, %c0_65] : memref<128x256xbf16, #tpu.memory_space<vmem>>, vector<128x256xbf16>
    %cst_66 = arith.constant dense<0.000000e+00> : vector<32x256xf32>
    %139 = tpu.matmul %137, %138, %cst_66 {dimension_numbers = #tpu.dot_dimension_numbers<[1], [0], [0], [1], [0, 0, 1, 1], [], []>} : vector<32x128xbf16>, vector<128x256xbf16>, vector<32x256xf32> -> vector<32x256xf32>
    %c0_67 = arith.constant 0 : index
    %c0_68 = arith.constant 0 : index
    %140 = vector.load %arg10[%c0_67, %c0_68] : memref<1x256xf32, #tpu.memory_space<vmem>>, vector<1x256xf32>
    %141 = vector.broadcast %140 : vector<1x256xf32> to vector<32x256xf32>
    %142 = arith.addf %139, %141 : vector<32x256xf32>
    %cst_69 = arith.constant 0.000000e+00 : f32
    %143 = vector.broadcast %cst_69 : f32 to vector<32x256xf32>
    %144 = arith.maximumf %142, %143 : vector<32x256xf32>
    %145 = arith.truncf %144 : vector<32x256xf32> to vector<32x256xbf16>
    %c0_70 = arith.constant 0 : index
    %c0_71 = arith.constant 0 : index
    %146 = vector.load %arg11[%c0_70, %c0_71] : memref<256x128xbf16, #tpu.memory_space<vmem>>, vector<256x128xbf16>
    %cst_72 = arith.constant dense<0.000000e+00> : vector<32x128xf32>
    %147 = tpu.matmul %145, %146, %cst_72 {dimension_numbers = #tpu.dot_dimension_numbers<[1], [0], [0], [1], [0, 0, 1, 1], [], []>} : vector<32x256xbf16>, vector<256x128xbf16>, vector<32x128xf32> -> vector<32x128xf32>
    %c0_73 = arith.constant 0 : index
    %c0_74 = arith.constant 0 : index
    %148 = vector.load %arg12[%c0_73, %c0_74] : memref<1x128xf32, #tpu.memory_space<vmem>>, vector<1x128xf32>
    %149 = vector.broadcast %148 : vector<1x128xf32> to vector<32x128xf32>
    %150 = arith.addf %147, %149 : vector<32x128xf32>
    %151 = arith.addf %150, %136 : vector<32x128xf32>
    %cst_75 = arith.constant dense<0.000000e+00> : vector<32xf32>
    %152 = vector.multi_reduction <add>, %151, %cst_75 [1] : vector<32x128xf32> to vector<32xf32>
    %153 = vector.shape_cast %152 : vector<32xf32> to vector<32x1xf32>
    %cst_76 = arith.constant 1.280000e+02 : f32
    %154 = vector.broadcast %cst_76 : f32 to vector<32x1xf32>
    %155 = arith.divf %153, %154 : vector<32x1xf32>
    %156 = vector.broadcast %155 : vector<32x1xf32> to vector<32x128xf32>
    %157 = arith.subf %151, %156 : vector<32x128xf32>
    %158 = arith.mulf %157, %157 : vector<32x128xf32>
    %cst_77 = arith.constant dense<0.000000e+00> : vector<32xf32>
    %159 = vector.multi_reduction <add>, %158, %cst_77 [1] : vector<32x128xf32> to vector<32xf32>
    %160 = vector.shape_cast %159 : vector<32xf32> to vector<32x1xf32>
    %cst_78 = arith.constant 1.280000e+02 : f32
    %161 = vector.broadcast %cst_78 : f32 to vector<32x1xf32>
    %162 = arith.divf %160, %161 : vector<32x1xf32>
    %163 = vector.broadcast %155 : vector<32x1xf32> to vector<32x128xf32>
    %164 = arith.subf %151, %163 : vector<32x128xf32>
    %cst_79 = arith.constant 9.99999974E-6 : f32
    %165 = vector.broadcast %cst_79 : f32 to vector<32x1xf32>
    %166 = arith.addf %162, %165 : vector<32x1xf32>
    %167 = math.rsqrt %166 : vector<32x1xf32>
    %168 = vector.broadcast %167 : vector<32x1xf32> to vector<32x128xf32>
    %169 = arith.mulf %164, %168 : vector<32x128xf32>
    %170 = vector.shape_cast %169 : vector<32x128xf32> to vector<2x16x128xf32>
    %c0_80 = arith.constant 0 : index
    %c0_81 = arith.constant 0 : index
    %c0_82 = arith.constant 0 : index
    %171 = vector.load %arg13[%c0_80, %c0_81, %c0_82] : memref<2x16x128xf32, #tpu.memory_space<vmem>>, vector<2x16x128xf32>
    tpu.vector_store %arg13[%c0_80, %c0_81, %c0_82], %170 {strides = array<i32>} : memref<2x16x128xf32, #tpu.memory_space<vmem>>, vector<2x16x128xf32>,
    return
  }
}

module attributes {stable_mosaic.version = 11 : i64} {
  func.func @_decoder_kernel(%arg0: memref<2x128xi32, #tpu.memory_space<vmem>>, %arg1: memref<2x8x64xf32, #tpu.memory_space<vmem>>, %arg2: memref<2x16x128xf32, #tpu.memory_space<vmem>>, %arg3: memref<64x192xbf16, #tpu.memory_space<vmem>>, %arg4: memref<1x192xf32, #tpu.memory_space<vmem>>, %arg5: memref<64x64xbf16, #tpu.memory_space<vmem>>, %arg6: memref<1x64xf32, #tpu.memory_space<vmem>>, %arg7: memref<64x64xbf16, #tpu.memory_space<vmem>>, %arg8: memref<1x64xf32, #tpu.memory_space<vmem>>, %arg9: memref<128x128xbf16, #tpu.memory_space<vmem>>, %arg10: memref<1x128xf32, #tpu.memory_space<vmem>>, %arg11: memref<64x64xbf16, #tpu.memory_space<vmem>>, %arg12: memref<1x64xf32, #tpu.memory_space<vmem>>, %arg13: memref<64x128xbf16, #tpu.memory_space<vmem>>, %arg14: memref<1x128xf32, #tpu.memory_space<vmem>>, %arg15: memref<128x64xbf16, #tpu.memory_space<vmem>>, %arg16: memref<1x64xf32, #tpu.memory_space<vmem>>, %arg17: memref<64x128xbf16, #tpu.memory_space<vmem>>, %arg18: memref<2x8x128xf32, #tpu.memory_space<vmem>>, %arg19: memref<1x2x2x8x128xf32, #tpu.memory_space<vmem>>, %arg20: memref<1x2x2x8x128xf32, #tpu.memory_space<vmem>>) attributes {dimension_semantics = [], scalar_prefetch = 0 : i64, scratch_operands = 0 : i64, tpu.core_type = #tpu.core_type<tc>} {
    %c0 = arith.constant 0 : index
    %c0_0 = arith.constant 0 : index
    %c0_1 = arith.constant 0 : index
    %0 = vector.load %arg1[%c0, %c0_0, %c0_1] : memref<2x8x64xf32, #tpu.memory_space<vmem>>, vector<2x8x64xf32>
    %1 = vector.shape_cast %0 : vector<2x8x64xf32> to vector<16x64xf32>
    %c0_2 = arith.constant 0 : index
    %c0_3 = arith.constant 0 : index
    %c0_4 = arith.constant 0 : index
    %2 = vector.load %arg2[%c0_2, %c0_3, %c0_4] : memref<2x16x128xf32, #tpu.memory_space<vmem>>, vector<2x16x128xf32>
    %3 = vector.shape_cast %2 : vector<2x16x128xf32> to vector<32x128xf32>
    %4 = arith.truncf %3 : vector<32x128xf32> to vector<32x128xbf16>
    %5 = tpu.iota {dimensions = array<i32: 1>} : vector<8x128xi32>
    %6 = tpu.iota {dimensions = array<i32: 0>} : vector<8x128xi32>
    %7 = arith.cmpi sgt, %5, %6 : vector<8x128xi32>
    %c0_5 = arith.constant 0 : index
    %c0_6 = arith.constant 0 : index
    %8 = vector.load %arg0[%c0_5, %c0_6] : memref<2x128xi32, #tpu.memory_space<vmem>>, vector<2x128xi32>
    %c0_i32 = arith.constant 0 : i32
    %9 = vector.broadcast %c0_i32 : i32 to vector<2x128xi32>
    %10 = arith.cmpi eq, %8, %9 : vector<2x128xi32>
    %11 = vector.extract_strided_slice %10 {offsets = [0, 0], sizes = [1, 128], strides = [1, 1]} : vector<2x128xi1> to vector<1x128xi1>
    %12 = vector.broadcast %11 : vector<1x128xi1> to vector<8x128xi1>
    %13 = arith.ori %7, %12 : vector<8x128xi1>
    %cst = arith.constant -1.000000e+09 : f32
    %cst_7 = arith.constant 0.000000e+00 : f32
    %14 = vector.broadcast %cst : f32 to vector<8x128xf32>
    %15 = vector.broadcast %cst_7 : f32 to vector<8x128xf32>
    %16 = arith.select %13, %14, %15 : vector<8x128xi1>, vector<8x128xf32>
    %17 = vector.extract_strided_slice %10 {offsets = [1, 0], sizes = [1, 128], strides = [1, 1]} : vector<2x128xi1> to vector<1x128xi1>
    %18 = vector.broadcast %17 : vector<1x128xi1> to vector<8x128xi1>
    %19 = arith.ori %7, %18 : vector<8x128xi1>
    %cst_8 = arith.constant -1.000000e+09 : f32
    %cst_9 = arith.constant 0.000000e+00 : f32
    %20 = vector.broadcast %cst_8 : f32 to vector<8x128xf32>
    %21 = vector.broadcast %cst_9 : f32 to vector<8x128xf32>
    %22 = arith.select %19, %20, %21 : vector<8x128xi1>, vector<8x128xf32>
    %c16_i32 = arith.constant 16 : i32
    %23 = vector.broadcast %c16_i32 : i32 to vector<8x128xi32>
    %24 = arith.cmpi sge, %5, %23 : vector<8x128xi32>
    %cst_10 = arith.constant -1.000000e+09 : f32
    %cst_11 = arith.constant 0.000000e+00 : f32
    %25 = vector.broadcast %cst_10 : f32 to vector<8x128xf32>
    %26 = vector.broadcast %cst_11 : f32 to vector<8x128xf32>
    %27 = arith.select %24, %25, %26 : vector<8x128xi1>, vector<8x128xf32>
    %28 = arith.truncf %1 : vector<16x64xf32> to vector<16x64xbf16>
    %c0_12 = arith.constant 0 : index
    %c0_13 = arith.constant 0 : index
    %29 = vector.load %arg3[%c0_12, %c0_13] : memref<64x192xbf16, #tpu.memory_space<vmem>>, vector<64x192xbf16>
    %cst_14 = arith.constant dense<0.000000e+00> : vector<16x192xf32>
    %30 = tpu.matmul %28, %29, %cst_14 {dimension_numbers = #tpu.dot_dimension_numbers<[1], [0], [0], [1], [0, 0, 1, 1], [], []>} : vector<16x64xbf16>, vector<64x192xbf16>, vector<16x192xf32> -> vector<16x192xf32>
    %c0_15 = arith.constant 0 : index
    %c0_16 = arith.constant 0 : index
    %31 = vector.load %arg4[%c0_15, %c0_16] : memref<1x192xf32, #tpu.memory_space<vmem>>, vector<1x192xf32>
    %32 = vector.broadcast %31 : vector<1x192xf32> to vector<16x192xf32>
    %33 = arith.addf %30, %32 : vector<16x192xf32>
    %34 = vector.extract_strided_slice %33 {offsets = [0, 0], sizes = [16, 64], strides = [1, 1]} : vector<16x192xf32> to vector<16x64xf32>
    %35 = vector.extract_strided_slice %33 {offsets = [0, 64], sizes = [16, 64], strides = [1, 1]} : vector<16x192xf32> to vector<16x64xf32>
    %36 = vector.extract_strided_slice %33 {offsets = [0, 128], sizes = [16, 64], strides = [1, 1]} : vector<16x192xf32> to vector<16x64xf32>
    %cst_17 = arith.constant 0.000000e+00 : f32
    %37 = vector.broadcast %cst_17 : f32 to vector<120x64xf32>
    %38 = vector.extract_strided_slice %35 {offsets = [0, 0], sizes = [8, 64], strides = [1, 1]} : vector<16x64xf32> to vector<8x64xf32>
    %39 = tpu.concatenate %38, %37 in 0 : vector<8x64xf32>, vector<120x64xf32> -> vector<128x64xf32>
    %40 = vector.extract_strided_slice %36 {offsets = [0, 0], sizes = [8, 64], strides = [1, 1]} : vector<16x64xf32> to vector<8x64xf32>
    %41 = tpu.concatenate %40, %37 in 0 : vector<8x64xf32>, vector<120x64xf32> -> vector<128x64xf32>
    %42 = vector.extract_strided_slice %34 {offsets = [0, 0], sizes = [8, 32], strides = [1, 1]} : vector<16x64xf32> to vector<8x32xf32>
    %43 = vector.extract_strided_slice %39 {offsets = [0, 0], sizes = [128, 32], strides = [1, 1]} : vector<128x64xf32> to vector<128x32xf32>
    %cst_18 = arith.constant dense<0.000000e+00> : vector<8x128xf32>
    %44 = tpu.matmul %42, %43, %cst_18 {dimension_numbers = #tpu.dot_dimension_numbers<[1], [1], [0], [0], [0, 0, 1, 0], [], []>} : vector<8x32xf32>, vector<128x32xf32>, vector<8x128xf32> -> vector<8x128xf32>
    %45 = arith.addf %44, %16 : vector<8x128xf32>
    %cst_19 = arith.constant dense<0xFF800000> : vector<8xf32>
    %46 = vector.multi_reduction <maximumf>, %45, %cst_19 [1] : vector<8x128xf32> to vector<8xf32>
    %47 = vector.shape_cast %46 : vector<8xf32> to vector<8x1xf32>
    %48 = vector.broadcast %47 : vector<8x1xf32> to vector<8x128xf32>
    %49 = arith.subf %45, %48 : vector<8x128xf32>
    %50 = math.exp %49 : vector<8x128xf32>
    %cst_20 = arith.constant dense<0.000000e+00> : vector<8xf32>
    %51 = vector.multi_reduction <add>, %50, %cst_20 [1] : vector<8x128xf32> to vector<8xf32>
    %52 = vector.shape_cast %51 : vector<8xf32> to vector<8x1xf32>
    %53 = vector.broadcast %52 : vector<8x1xf32> to vector<8x128xf32>
    %54 = arith.divf %50, %53 : vector<8x128xf32>
    %c0_21 = arith.constant 0 : index
    %c0_22 = arith.constant 0 : index
    %c0_23 = arith.constant 0 : index
    %c0_24 = arith.constant 0 : index
    %c0_25 = arith.constant 0 : index
    %55 = vector.load %arg19[%c0_21, %c0_22, %c0_23, %c0_24, %c0_25] : memref<1x2x2x8x128xf32, #tpu.memory_space<vmem>>, vector<1x1x1x8x128xf32>
    %56 = vector.shape_cast %55 : vector<1x1x1x8x128xf32> to vector<8x128xf32>
    %57 = vector.shape_cast %54 : vector<8x128xf32> to vector<1x1x1x8x128xf32>
    tpu.vector_store %arg19[%c0_21, %c0_22, %c0_23, %c0_24, %c0_25], %57 {strides = array<i32>} : memref<1x2x2x8x128xf32, #tpu.memory_space<vmem>>, vector<1x1x1x8x128xf32>,
    %58 = vector.extract_strided_slice %41 {offsets = [0, 0], sizes = [128, 32], strides = [1, 1]} : vector<128x64xf32> to vector<128x32xf32>
    %cst_26 = arith.constant dense<0.000000e+00> : vector<8x32xf32>
    %59 = tpu.matmul %54, %58, %cst_26 {dimension_numbers = #tpu.dot_dimension_numbers<[1], [0], [0], [1], [0, 0, 1, 1], [], []>} : vector<8x128xf32>, vector<128x32xf32>, vector<8x32xf32> -> vector<8x32xf32>
    %60 = vector.extract_strided_slice %34 {offsets = [0, 32], sizes = [8, 32], strides = [1, 1]} : vector<16x64xf32> to vector<8x32xf32>
    %61 = vector.extract_strided_slice %39 {offsets = [0, 32], sizes = [128, 32], strides = [1, 1]} : vector<128x64xf32> to vector<128x32xf32>
    %cst_27 = arith.constant dense<0.000000e+00> : vector<8x128xf32>
    %62 = tpu.matmul %60, %61, %cst_27 {dimension_numbers = #tpu.dot_dimension_numbers<[1], [1], [0], [0], [0, 0, 1, 0], [], []>} : vector<8x32xf32>, vector<128x32xf32>, vector<8x128xf32> -> vector<8x128xf32>
    %63 = arith.addf %62, %16 : vector<8x128xf32>
    %cst_28 = arith.constant dense<0xFF800000> : vector<8xf32>
    %64 = vector.multi_reduction <maximumf>, %63, %cst_28 [1] : vector<8x128xf32> to vector<8xf32>
    %65 = vector.shape_cast %64 : vector<8xf32> to vector<8x1xf32>
    %66 = vector.broadcast %65 : vector<8x1xf32> to vector<8x128xf32>
    %67 = arith.subf %63, %66 : vector<8x128xf32>
    %68 = math.exp %67 : vector<8x128xf32>
    %cst_29 = arith.constant dense<0.000000e+00> : vector<8xf32>
    %69 = vector.multi_reduction <add>, %68, %cst_29 [1] : vector<8x128xf32> to vector<8xf32>
    %70 = vector.shape_cast %69 : vector<8xf32> to vector<8x1xf32>
    %71 = vector.broadcast %70 : vector<8x1xf32> to vector<8x128xf32>
    %72 = arith.divf %68, %71 : vector<8x128xf32>
    %c0_30 = arith.constant 0 : index
    %c0_31 = arith.constant 0 : index
    %c1 = arith.constant 1 : index
    %c0_32 = arith.constant 0 : index
    %c0_33 = arith.constant 0 : index
    %73 = vector.load %arg19[%c0_30, %c0_31, %c1, %c0_32, %c0_33] : memref<1x2x2x8x128xf32, #tpu.memory_space<vmem>>, vector<1x1x1x8x128xf32>
    %74 = vector.shape_cast %73 : vector<1x1x1x8x128xf32> to vector<8x128xf32>
    %75 = vector.shape_cast %72 : vector<8x128xf32> to vector<1x1x1x8x128xf32>
    tpu.vector_store %arg19[%c0_30, %c0_31, %c1, %c0_32, %c0_33], %75 {strides = array<i32>} : memref<1x2x2x8x128xf32, #tpu.memory_space<vmem>>, vector<1x1x1x8x128xf32>,
    %76 = vector.extract_strided_slice %41 {offsets = [0, 32], sizes = [128, 32], strides = [1, 1]} : vector<128x64xf32> to vector<128x32xf32>
    %cst_34 = arith.constant dense<0.000000e+00> : vector<8x32xf32>
    %77 = tpu.matmul %72, %76, %cst_34 {dimension_numbers = #tpu.dot_dimension_numbers<[1], [0], [0], [1], [0, 0, 1, 1], [], []>} : vector<8x128xf32>, vector<128x32xf32>, vector<8x32xf32> -> vector<8x32xf32>
    %78 = tpu.concatenate %59, %77 in 1 : vector<8x32xf32>, vector<8x32xf32> -> vector<8x64xf32>
    %79 = vector.extract_strided_slice %35 {offsets = [8, 0], sizes = [8, 64], strides = [1, 1]} : vector<16x64xf32> to vector<8x64xf32>
    %80 = tpu.concatenate %79, %37 in 0 : vector<8x64xf32>, vector<120x64xf32> -> vector<128x64xf32>
    %81 = vector.extract_strided_slice %36 {offsets = [8, 0], sizes = [8, 64], strides = [1, 1]} : vector<16x64xf32> to vector<8x64xf32>
    %82 = tpu.concatenate %81, %37 in 0 : vector<8x64xf32>, vector<120x64xf32> -> vector<128x64xf32>
    %83 = vector.extract_strided_slice %34 {offsets = [8, 0], sizes = [8, 32], strides = [1, 1]} : vector<16x64xf32> to vector<8x32xf32>
    %84 = vector.extract_strided_slice %80 {offsets = [0, 0], sizes = [128, 32], strides = [1, 1]} : vector<128x64xf32> to vector<128x32xf32>
    %cst_35 = arith.constant dense<0.000000e+00> : vector<8x128xf32>
    %85 = tpu.matmul %83, %84, %cst_35 {dimension_numbers = #tpu.dot_dimension_numbers<[1], [1], [0], [0], [0, 0, 1, 0], [], []>} : vector<8x32xf32>, vector<128x32xf32>, vector<8x128xf32> -> vector<8x128xf32>
    %86 = arith.addf %85, %22 : vector<8x128xf32>
    %cst_36 = arith.constant dense<0xFF800000> : vector<8xf32>
    %87 = vector.multi_reduction <maximumf>, %86, %cst_36 [1] : vector<8x128xf32> to vector<8xf32>
    %88 = vector.shape_cast %87 : vector<8xf32> to vector<8x1xf32>
    %89 = vector.broadcast %88 : vector<8x1xf32> to vector<8x128xf32>
    %90 = arith.subf %86, %89 : vector<8x128xf32>
    %91 = math.exp %90 : vector<8x128xf32>
    %cst_37 = arith.constant dense<0.000000e+00> : vector<8xf32>
    %92 = vector.multi_reduction <add>, %91, %cst_37 [1] : vector<8x128xf32> to vector<8xf32>
    %93 = vector.shape_cast %92 : vector<8xf32> to vector<8x1xf32>
    %94 = vector.broadcast %93 : vector<8x1xf32> to vector<8x128xf32>
    %95 = arith.divf %91, %94 : vector<8x128xf32>
    %c0_38 = arith.constant 0 : index
    %c1_39 = arith.constant 1 : index
    %c0_40 = arith.constant 0 : index
    %c0_41 = arith.constant 0 : index
    %c0_42 = arith.constant 0 : index
    %96 = vector.load %arg19[%c0_38, %c1_39, %c0_40, %c0_41, %c0_42] : memref<1x2x2x8x128xf32, #tpu.memory_space<vmem>>, vector<1x1x1x8x128xf32>
    %97 = vector.shape_cast %96 : vector<1x1x1x8x128xf32> to vector<8x128xf32>
    %98 = vector.shape_cast %95 : vector<8x128xf32> to vector<1x1x1x8x128xf32>
    tpu.vector_store %arg19[%c0_38, %c1_39, %c0_40, %c0_41, %c0_42], %98 {strides = array<i32>} : memref<1x2x2x8x128xf32, #tpu.memory_space<vmem>>, vector<1x1x1x8x128xf32>,
    %99 = vector.extract_strided_slice %82 {offsets = [0, 0], sizes = [128, 32], strides = [1, 1]} : vector<128x64xf32> to vector<128x32xf32>
    %cst_43 = arith.constant dense<0.000000e+00> : vector<8x32xf32>
    %100 = tpu.matmul %95, %99, %cst_43 {dimension_numbers = #tpu.dot_dimension_numbers<[1], [0], [0], [1], [0, 0, 1, 1], [], []>} : vector<8x128xf32>, vector<128x32xf32>, vector<8x32xf32> -> vector<8x32xf32>
    %101 = vector.extract_strided_slice %34 {offsets = [8, 32], sizes = [8, 32], strides = [1, 1]} : vector<16x64xf32> to vector<8x32xf32>
    %102 = vector.extract_strided_slice %80 {offsets = [0, 32], sizes = [128, 32], strides = [1, 1]} : vector<128x64xf32> to vector<128x32xf32>
    %cst_44 = arith.constant dense<0.000000e+00> : vector<8x128xf32>
    %103 = tpu.matmul %101, %102, %cst_44 {dimension_numbers = #tpu.dot_dimension_numbers<[1], [1], [0], [0], [0, 0, 1, 0], [], []>} : vector<8x32xf32>, vector<128x32xf32>, vector<8x128xf32> -> vector<8x128xf32>
    %104 = arith.addf %103, %22 : vector<8x128xf32>
    %cst_45 = arith.constant dense<0xFF800000> : vector<8xf32>
    %105 = vector.multi_reduction <maximumf>, %104, %cst_45 [1] : vector<8x128xf32> to vector<8xf32>
    %106 = vector.shape_cast %105 : vector<8xf32> to vector<8x1xf32>
    %107 = vector.broadcast %106 : vector<8x1xf32> to vector<8x128xf32>
    %108 = arith.subf %104, %107 : vector<8x128xf32>
    %109 = math.exp %108 : vector<8x128xf32>
    %cst_46 = arith.constant dense<0.000000e+00> : vector<8xf32>
    %110 = vector.multi_reduction <add>, %109, %cst_46 [1] : vector<8x128xf32> to vector<8xf32>
    %111 = vector.shape_cast %110 : vector<8xf32> to vector<8x1xf32>
    %112 = vector.broadcast %111 : vector<8x1xf32> to vector<8x128xf32>
    %113 = arith.divf %109, %112 : vector<8x128xf32>
    %c0_47 = arith.constant 0 : index
    %c1_48 = arith.constant 1 : index
    %c1_49 = arith.constant 1 : index
    %c0_50 = arith.constant 0 : index
    %c0_51 = arith.constant 0 : index
    %114 = vector.load %arg19[%c0_47, %c1_48, %c1_49, %c0_50, %c0_51] : memref<1x2x2x8x128xf32, #tpu.memory_space<vmem>>, vector<1x1x1x8x128xf32>
    %115 = vector.shape_cast %114 : vector<1x1x1x8x128xf32> to vector<8x128xf32>
    %116 = vector.shape_cast %113 : vector<8x128xf32> to vector<1x1x1x8x128xf32>
    tpu.vector_store %arg19[%c0_47, %c1_48, %c1_49, %c0_50, %c0_51], %116 {strides = array<i32>} : memref<1x2x2x8x128xf32, #tpu.memory_space<vmem>>, vector<1x1x1x8x128xf32>,
    %117 = vector.extract_strided_slice %82 {offsets = [0, 32], sizes = [128, 32], strides = [1, 1]} : vector<128x64xf32> to vector<128x32xf32>
    %cst_52 = arith.constant dense<0.000000e+00> : vector<8x32xf32>
    %118 = tpu.matmul %113, %117, %cst_52 {dimension_numbers = #tpu.dot_dimension_numbers<[1], [0], [0], [1], [0, 0, 1, 1], [], []>} : vector<8x128xf32>, vector<128x32xf32>, vector<8x32xf32> -> vector<8x32xf32>
    %119 = tpu.concatenate %100, %118 in 1 : vector<8x32xf32>, vector<8x32xf32> -> vector<8x64xf32>
    %120 = tpu.concatenate %78, %119 in 0 : vector<8x64xf32>, vector<8x64xf32> -> vector<16x64xf32>
    %c0_53 = arith.constant 0 : index
    %c0_54 = arith.constant 0 : index
    %121 = vector.load %arg6[%c0_53, %c0_54] : memref<1x64xf32, #tpu.memory_space<vmem>>, vector<1x64xf32>
    %122 = vector.broadcast %121 : vector<1x64xf32> to vector<16x64xf32>
    %123 = arith.addf %1, %122 : vector<16x64xf32>
    %124 = arith.truncf %120 : vector<16x64xf32> to vector<16x64xbf16>
    %c0_55 = arith.constant 0 : index
    %c0_56 = arith.constant 0 : index
    %125 = vector.load %arg5[%c0_55, %c0_56] : memref<64x64xbf16, #tpu.memory_space<vmem>>, vector<64x64xbf16>
    %cst_57 = arith.constant dense<0.000000e+00> : vector<16x64xf32>
    %126 = tpu.matmul %124, %125, %cst_57 {dimension_numbers = #tpu.dot_dimension_numbers<[1], [0], [0], [1], [0, 0, 1, 1], [], []>} : vector<16x64xbf16>, vector<64x64xbf16>, vector<16x64xf32> -> vector<16x64xf32>
    %127 = arith.addf %123, %126 : vector<16x64xf32>
    %cst_58 = arith.constant dense<0.000000e+00> : vector<16xf32>
    %128 = vector.multi_reduction <add>, %127, %cst_58 [1] : vector<16x64xf32> to vector<16xf32>
    %129 = vector.shape_cast %128 : vector<16xf32> to vector<16x1xf32>
    %cst_59 = arith.constant 6.400000e+01 : f32
    %130 = vector.broadcast %cst_59 : f32 to vector<16x1xf32>
    %131 = arith.divf %129, %130 : vector<16x1xf32>
    %132 = vector.broadcast %131 : vector<16x1xf32> to vector<16x64xf32>
    %133 = arith.subf %127, %132 : vector<16x64xf32>
    %134 = arith.mulf %133, %133 : vector<16x64xf32>
    %cst_60 = arith.constant dense<0.000000e+00> : vector<16xf32>
    %135 = vector.multi_reduction <add>, %134, %cst_60 [1] : vector<16x64xf32> to vector<16xf32>
    %136 = vector.shape_cast %135 : vector<16xf32> to vector<16x1xf32>
    %cst_61 = arith.constant 6.400000e+01 : f32
    %137 = vector.broadcast %cst_61 : f32 to vector<16x1xf32>
    %138 = arith.divf %136, %137 : vector<16x1xf32>
    %139 = vector.broadcast %131 : vector<16x1xf32> to vector<16x64xf32>
    %140 = arith.subf %127, %139 : vector<16x64xf32>
    %cst_62 = arith.constant 9.99999974E-6 : f32
    %141 = vector.broadcast %cst_62 : f32 to vector<16x1xf32>
    %142 = arith.addf %138, %141 : vector<16x1xf32>
    %143 = math.rsqrt %142 : vector<16x1xf32>
    %144 = vector.broadcast %143 : vector<16x1xf32> to vector<16x64xf32>
    %145 = arith.mulf %140, %144 : vector<16x64xf32>
    %146 = arith.truncf %145 : vector<16x64xf32> to vector<16x64xbf16>
    %c0_63 = arith.constant 0 : index
    %c0_64 = arith.constant 0 : index
    %147 = vector.load %arg7[%c0_63, %c0_64] : memref<64x64xbf16, #tpu.memory_space<vmem>>, vector<64x64xbf16>
    %cst_65 = arith.constant dense<0.000000e+00> : vector<16x64xf32>
    %148 = tpu.matmul %146, %147, %cst_65 {dimension_numbers = #tpu.dot_dimension_numbers<[1], [0], [0], [1], [0, 0, 1, 1], [], []>} : vector<16x64xbf16>, vector<64x64xbf16>, vector<16x64xf32> -> vector<16x64xf32>
    %c0_66 = arith.constant 0 : index
    %c0_67 = arith.constant 0 : index
    %149 = vector.load %arg8[%c0_66, %c0_67] : memref<1x64xf32, #tpu.memory_space<vmem>>, vector<1x64xf32>
    %150 = vector.broadcast %149 : vector<1x64xf32> to vector<16x64xf32>
    %151 = arith.addf %148, %150 : vector<16x64xf32>
    %c0_68 = arith.constant 0 : index
    %c0_69 = arith.constant 0 : index
    %152 = vector.load %arg9[%c0_68, %c0_69] : memref<128x128xbf16, #tpu.memory_space<vmem>>, vector<128x128xbf16>
    %cst_70 = arith.constant dense<0.000000e+00> : vector<32x128xf32>
    %153 = tpu.matmul %4, %152, %cst_70 {dimension_numbers = #tpu.dot_dimension_numbers<[1], [0], [0], [1], [0, 0, 1, 1], [], []>} : vector<32x128xbf16>, vector<128x128xbf16>, vector<32x128xf32> -> vector<32x128xf32>
    %c0_71 = arith.constant 0 : index
    %c0_72 = arith.constant 0 : index
    %154 = vector.load %arg10[%c0_71, %c0_72] : memref<1x128xf32, #tpu.memory_space<vmem>>, vector<1x128xf32>
    %155 = vector.broadcast %154 : vector<1x128xf32> to vector<32x128xf32>
    %156 = arith.addf %153, %155 : vector<32x128xf32>
    %157 = vector.extract_strided_slice %156 {offsets = [0, 0], sizes = [32, 64], strides = [1, 1]} : vector<32x128xf32> to vector<32x64xf32>
    %158 = vector.extract_strided_slice %156 {offsets = [0, 64], sizes = [32, 64], strides = [1, 1]} : vector<32x128xf32> to vector<32x64xf32>
    %cst_73 = arith.constant 0.000000e+00 : f32
    %159 = vector.broadcast %cst_73 : f32 to vector<112x64xf32>
    %160 = vector.extract_strided_slice %157 {offsets = [0, 0], sizes = [16, 64], strides = [1, 1]} : vector<32x64xf32> to vector<16x64xf32>
    %161 = tpu.concatenate %160, %159 in 0 : vector<16x64xf32>, vector<112x64xf32> -> vector<128x64xf32>
    %162 = vector.extract_strided_slice %158 {offsets = [0, 0], sizes = [16, 64], strides = [1, 1]} : vector<32x64xf32> to vector<16x64xf32>
    %163 = tpu.concatenate %162, %159 in 0 : vector<16x64xf32>, vector<112x64xf32> -> vector<128x64xf32>
    %164 = vector.extract_strided_slice %151 {offsets = [0, 0], sizes = [8, 32], strides = [1, 1]} : vector<16x64xf32> to vector<8x32xf32>
    %165 = vector.extract_strided_slice %161 {offsets = [0, 0], sizes = [128, 32], strides = [1, 1]} : vector<128x64xf32> to vector<128x32xf32>
    %cst_74 = arith.constant dense<0.000000e+00> : vector<8x128xf32>
    %166 = tpu.matmul %164, %165, %cst_74 {dimension_numbers = #tpu.dot_dimension_numbers<[1], [1], [0], [0], [0, 0, 1, 0], [], []>} : vector<8x32xf32>, vector<128x32xf32>, vector<8x128xf32> -> vector<8x128xf32>
    %167 = arith.addf %166, %27 : vector<8x128xf32>
    %cst_75 = arith.constant dense<0xFF800000> : vector<8xf32>
    %168 = vector.multi_reduction <maximumf>, %167, %cst_75 [1] : vector<8x128xf32> to vector<8xf32>
    %169 = vector.shape_cast %168 : vector<8xf32> to vector<8x1xf32>
    %170 = vector.broadcast %169 : vector<8x1xf32> to vector<8x128xf32>
    %171 = arith.subf %167, %170 : vector<8x128xf32>
    %172 = math.exp %171 : vector<8x128xf32>
    %cst_76 = arith.constant dense<0.000000e+00> : vector<8xf32>
    %173 = vector.multi_reduction <add>, %172, %cst_76 [1] : vector<8x128xf32> to vector<8xf32>
    %174 = vector.shape_cast %173 : vector<8xf32> to vector<8x1xf32>
    %175 = vector.broadcast %174 : vector<8x1xf32> to vector<8x128xf32>
    %176 = arith.divf %172, %175 : vector<8x128xf32>
    %c0_77 = arith.constant 0 : index
    %c0_78 = arith.constant 0 : index
    %c0_79 = arith.constant 0 : index
    %c0_80 = arith.constant 0 : index
    %c0_81 = arith.constant 0 : index
    %177 = vector.load %arg20[%c0_77, %c0_78, %c0_79, %c0_80, %c0_81] : memref<1x2x2x8x128xf32, #tpu.memory_space<vmem>>, vector<1x1x1x8x128xf32>
    %178 = vector.shape_cast %177 : vector<1x1x1x8x128xf32> to vector<8x128xf32>
    %179 = vector.shape_cast %176 : vector<8x128xf32> to vector<1x1x1x8x128xf32>
    tpu.vector_store %arg20[%c0_77, %c0_78, %c0_79, %c0_80, %c0_81], %179 {strides = array<i32>} : memref<1x2x2x8x128xf32, #tpu.memory_space<vmem>>, vector<1x1x1x8x128xf32>,
    %180 = vector.extract_strided_slice %163 {offsets = [0, 0], sizes = [128, 32], strides = [1, 1]} : vector<128x64xf32> to vector<128x32xf32>
    %cst_82 = arith.constant dense<0.000000e+00> : vector<8x32xf32>
    %181 = tpu.matmul %176, %180, %cst_82 {dimension_numbers = #tpu.dot_dimension_numbers<[1], [0], [0], [1], [0, 0, 1, 1], [], []>} : vector<8x128xf32>, vector<128x32xf32>, vector<8x32xf32> -> vector<8x32xf32>
    %182 = vector.extract_strided_slice %151 {offsets = [0, 32], sizes = [8, 32], strides = [1, 1]} : vector<16x64xf32> to vector<8x32xf32>
    %183 = vector.extract_strided_slice %161 {offsets = [0, 32], sizes = [128, 32], strides = [1, 1]} : vector<128x64xf32> to vector<128x32xf32>
    %cst_83 = arith.constant dense<0.000000e+00> : vector<8x128xf32>
    %184 = tpu.matmul %182, %183, %cst_83 {dimension_numbers = #tpu.dot_dimension_numbers<[1], [1], [0], [0], [0, 0, 1, 0], [], []>} : vector<8x32xf32>, vector<128x32xf32>, vector<8x128xf32> -> vector<8x128xf32>
    %185 = arith.addf %184, %27 : vector<8x128xf32>
    %cst_84 = arith.constant dense<0xFF800000> : vector<8xf32>
    %186 = vector.multi_reduction <maximumf>, %185, %cst_84 [1] : vector<8x128xf32> to vector<8xf32>
    %187 = vector.shape_cast %186 : vector<8xf32> to vector<8x1xf32>
    %188 = vector.broadcast %187 : vector<8x1xf32> to vector<8x128xf32>
    %189 = arith.subf %185, %188 : vector<8x128xf32>
    %190 = math.exp %189 : vector<8x128xf32>
    %cst_85 = arith.constant dense<0.000000e+00> : vector<8xf32>
    %191 = vector.multi_reduction <add>, %190, %cst_85 [1] : vector<8x128xf32> to vector<8xf32>
    %192 = vector.shape_cast %191 : vector<8xf32> to vector<8x1xf32>
    %193 = vector.broadcast %192 : vector<8x1xf32> to vector<8x128xf32>
    %194 = arith.divf %190, %193 : vector<8x128xf32>
    %c0_86 = arith.constant 0 : index
    %c0_87 = arith.constant 0 : index
    %c1_88 = arith.constant 1 : index
    %c0_89 = arith.constant 0 : index
    %c0_90 = arith.constant 0 : index
    %195 = vector.load %arg20[%c0_86, %c0_87, %c1_88, %c0_89, %c0_90] : memref<1x2x2x8x128xf32, #tpu.memory_space<vmem>>, vector<1x1x1x8x128xf32>
    %196 = vector.shape_cast %195 : vector<1x1x1x8x128xf32> to vector<8x128xf32>
    %197 = vector.shape_cast %194 : vector<8x128xf32> to vector<1x1x1x8x128xf32>
    tpu.vector_store %arg20[%c0_86, %c0_87, %c1_88, %c0_89, %c0_90], %197 {strides = array<i32>} : memref<1x2x2x8x128xf32, #tpu.memory_space<vmem>>, vector<1x1x1x8x128xf32>,
    %198 = vector.extract_strided_slice %163 {offsets = [0, 32], sizes = [128, 32], strides = [1, 1]} : vector<128x64xf32> to vector<128x32xf32>
    %cst_91 = arith.constant dense<0.000000e+00> : vector<8x32xf32>
    %199 = tpu.matmul %194, %198, %cst_91 {dimension_numbers = #tpu.dot_dimension_numbers<[1], [0], [0], [1], [0, 0, 1, 1], [], []>} : vector<8x128xf32>, vector<128x32xf32>, vector<8x32xf32> -> vector<8x32xf32>
    %200 = tpu.concatenate %181, %199 in 1 : vector<8x32xf32>, vector<8x32xf32> -> vector<8x64xf32>
    %201 = vector.extract_strided_slice %157 {offsets = [16, 0], sizes = [16, 64], strides = [1, 1]} : vector<32x64xf32> to vector<16x64xf32>
    %202 = tpu.concatenate %201, %159 in 0 : vector<16x64xf32>, vector<112x64xf32> -> vector<128x64xf32>
    %203 = vector.extract_strided_slice %158 {offsets = [16, 0], sizes = [16, 64], strides = [1, 1]} : vector<32x64xf32> to vector<16x64xf32>
    %204 = tpu.concatenate %203, %159 in 0 : vector<16x64xf32>, vector<112x64xf32> -> vector<128x64xf32>
    %205 = vector.extract_strided_slice %151 {offsets = [8, 0], sizes = [8, 32], strides = [1, 1]} : vector<16x64xf32> to vector<8x32xf32>
    %206 = vector.extract_strided_slice %202 {offsets = [0, 0], sizes = [128, 32], strides = [1, 1]} : vector<128x64xf32> to vector<128x32xf32>
    %cst_92 = arith.constant dense<0.000000e+00> : vector<8x128xf32>
    %207 = tpu.matmul %205, %206, %cst_92 {dimension_numbers = #tpu.dot_dimension_numbers<[1], [1], [0], [0], [0, 0, 1, 0], [], []>} : vector<8x32xf32>, vector<128x32xf32>, vector<8x128xf32> -> vector<8x128xf32>
    %208 = arith.addf %207, %27 : vector<8x128xf32>
    %cst_93 = arith.constant dense<0xFF800000> : vector<8xf32>
    %209 = vector.multi_reduction <maximumf>, %208, %cst_93 [1] : vector<8x128xf32> to vector<8xf32>
    %210 = vector.shape_cast %209 : vector<8xf32> to vector<8x1xf32>
    %211 = vector.broadcast %210 : vector<8x1xf32> to vector<8x128xf32>
    %212 = arith.subf %208, %211 : vector<8x128xf32>
    %213 = math.exp %212 : vector<8x128xf32>
    %cst_94 = arith.constant dense<0.000000e+00> : vector<8xf32>
    %214 = vector.multi_reduction <add>, %213, %cst_94 [1] : vector<8x128xf32> to vector<8xf32>
    %215 = vector.shape_cast %214 : vector<8xf32> to vector<8x1xf32>
    %216 = vector.broadcast %215 : vector<8x1xf32> to vector<8x128xf32>
    %217 = arith.divf %213, %216 : vector<8x128xf32>
    %c0_95 = arith.constant 0 : index
    %c1_96 = arith.constant 1 : index
    %c0_97 = arith.constant 0 : index
    %c0_98 = arith.constant 0 : index
    %c0_99 = arith.constant 0 : index
    %218 = vector.load %arg20[%c0_95, %c1_96, %c0_97, %c0_98, %c0_99] : memref<1x2x2x8x128xf32, #tpu.memory_space<vmem>>, vector<1x1x1x8x128xf32>
    %219 = vector.shape_cast %218 : vector<1x1x1x8x128xf32> to vector<8x128xf32>
    %220 = vector.shape_cast %217 : vector<8x128xf32> to vector<1x1x1x8x128xf32>
    tpu.vector_store %arg20[%c0_95, %c1_96, %c0_97, %c0_98, %c0_99], %220 {strides = array<i32>} : memref<1x2x2x8x128xf32, #tpu.memory_space<vmem>>, vector<1x1x1x8x128xf32>,
    %221 = vector.extract_strided_slice %204 {offsets = [0, 0], sizes = [128, 32], strides = [1, 1]} : vector<128x64xf32> to vector<128x32xf32>
    %cst_100 = arith.constant dense<0.000000e+00> : vector<8x32xf32>
    %222 = tpu.matmul %217, %221, %cst_100 {dimension_numbers = #tpu.dot_dimension_numbers<[1], [0], [0], [1], [0, 0, 1, 1], [], []>} : vector<8x128xf32>, vector<128x32xf32>, vector<8x32xf32> -> vector<8x32xf32>
    %223 = vector.extract_strided_slice %151 {offsets = [8, 32], sizes = [8, 32], strides = [1, 1]} : vector<16x64xf32> to vector<8x32xf32>
    %224 = vector.extract_strided_slice %202 {offsets = [0, 32], sizes = [128, 32], strides = [1, 1]} : vector<128x64xf32> to vector<128x32xf32>
    %cst_101 = arith.constant dense<0.000000e+00> : vector<8x128xf32>
    %225 = tpu.matmul %223, %224, %cst_101 {dimension_numbers = #tpu.dot_dimension_numbers<[1], [1], [0], [0], [0, 0, 1, 0], [], []>} : vector<8x32xf32>, vector<128x32xf32>, vector<8x128xf32> -> vector<8x128xf32>
    %226 = arith.addf %225, %27 : vector<8x128xf32>
    %cst_102 = arith.constant dense<0xFF800000> : vector<8xf32>
    %227 = vector.multi_reduction <maximumf>, %226, %cst_102 [1] : vector<8x128xf32> to vector<8xf32>
    %228 = vector.shape_cast %227 : vector<8xf32> to vector<8x1xf32>
    %229 = vector.broadcast %228 : vector<8x1xf32> to vector<8x128xf32>
    %230 = arith.subf %226, %229 : vector<8x128xf32>
    %231 = math.exp %230 : vector<8x128xf32>
    %cst_103 = arith.constant dense<0.000000e+00> : vector<8xf32>
    %232 = vector.multi_reduction <add>, %231, %cst_103 [1] : vector<8x128xf32> to vector<8xf32>
    %233 = vector.shape_cast %232 : vector<8xf32> to vector<8x1xf32>
    %234 = vector.broadcast %233 : vector<8x1xf32> to vector<8x128xf32>
    %235 = arith.divf %231, %234 : vector<8x128xf32>
    %c0_104 = arith.constant 0 : index
    %c1_105 = arith.constant 1 : index
    %c1_106 = arith.constant 1 : index
    %c0_107 = arith.constant 0 : index
    %c0_108 = arith.constant 0 : index
    %236 = vector.load %arg20[%c0_104, %c1_105, %c1_106, %c0_107, %c0_108] : memref<1x2x2x8x128xf32, #tpu.memory_space<vmem>>, vector<1x1x1x8x128xf32>
    %237 = vector.shape_cast %236 : vector<1x1x1x8x128xf32> to vector<8x128xf32>
    %238 = vector.shape_cast %235 : vector<8x128xf32> to vector<1x1x1x8x128xf32>
    tpu.vector_store %arg20[%c0_104, %c1_105, %c1_106, %c0_107, %c0_108], %238 {strides = array<i32>} : memref<1x2x2x8x128xf32, #tpu.memory_space<vmem>>, vector<1x1x1x8x128xf32>,
    %239 = vector.extract_strided_slice %204 {offsets = [0, 32], sizes = [128, 32], strides = [1, 1]} : vector<128x64xf32> to vector<128x32xf32>
    %cst_109 = arith.constant dense<0.000000e+00> : vector<8x32xf32>
    %240 = tpu.matmul %235, %239, %cst_109 {dimension_numbers = #tpu.dot_dimension_numbers<[1], [0], [0], [1], [0, 0, 1, 1], [], []>} : vector<8x128xf32>, vector<128x32xf32>, vector<8x32xf32> -> vector<8x32xf32>
    %241 = tpu.concatenate %222, %240 in 1 : vector<8x32xf32>, vector<8x32xf32> -> vector<8x64xf32>
    %242 = tpu.concatenate %200, %241 in 0 : vector<8x64xf32>, vector<8x64xf32> -> vector<16x64xf32>
    %c0_110 = arith.constant 0 : index
    %c0_111 = arith.constant 0 : index
    %243 = vector.load %arg12[%c0_110, %c0_111] : memref<1x64xf32, #tpu.memory_space<vmem>>, vector<1x64xf32>
    %244 = vector.broadcast %243 : vector<1x64xf32> to vector<16x64xf32>
    %245 = arith.addf %145, %244 : vector<16x64xf32>
    %246 = arith.truncf %242 : vector<16x64xf32> to vector<16x64xbf16>
    %c0_112 = arith.constant 0 : index
    %c0_113 = arith.constant 0 : index
    %247 = vector.load %arg11[%c0_112, %c0_113] : memref<64x64xbf16, #tpu.memory_space<vmem>>, vector<64x64xbf16>
    %cst_114 = arith.constant dense<0.000000e+00> : vector<16x64xf32>
    %248 = tpu.matmul %246, %247, %cst_114 {dimension_numbers = #tpu.dot_dimension_numbers<[1], [0], [0], [1], [0, 0, 1, 1], [], []>} : vector<16x64xbf16>, vector<64x64xbf16>, vector<16x64xf32> -> vector<16x64xf32>
    %249 = arith.addf %245, %248 : vector<16x64xf32>
    %cst_115 = arith.constant dense<0.000000e+00> : vector<16xf32>
    %250 = vector.multi_reduction <add>, %249, %cst_115 [1] : vector<16x64xf32> to vector<16xf32>
    %251 = vector.shape_cast %250 : vector<16xf32> to vector<16x1xf32>
    %cst_116 = arith.constant 6.400000e+01 : f32
    %252 = vector.broadcast %cst_116 : f32 to vector<16x1xf32>
    %253 = arith.divf %251, %252 : vector<16x1xf32>
    %254 = vector.broadcast %253 : vector<16x1xf32> to vector<16x64xf32>
    %255 = arith.subf %249, %254 : vector<16x64xf32>
    %256 = arith.mulf %255, %255 : vector<16x64xf32>
    %cst_117 = arith.constant dense<0.000000e+00> : vector<16xf32>
    %257 = vector.multi_reduction <add>, %256, %cst_117 [1] : vector<16x64xf32> to vector<16xf32>
    %258 = vector.shape_cast %257 : vector<16xf32> to vector<16x1xf32>
    %cst_118 = arith.constant 6.400000e+01 : f32
    %259 = vector.broadcast %cst_118 : f32 to vector<16x1xf32>
    %260 = arith.divf %258, %259 : vector<16x1xf32>
    %261 = vector.broadcast %253 : vector<16x1xf32> to vector<16x64xf32>
    %262 = arith.subf %249, %261 : vector<16x64xf32>
    %cst_119 = arith.constant 9.99999974E-6 : f32
    %263 = vector.broadcast %cst_119 : f32 to vector<16x1xf32>
    %264 = arith.addf %260, %263 : vector<16x1xf32>
    %265 = math.rsqrt %264 : vector<16x1xf32>
    %266 = vector.broadcast %265 : vector<16x1xf32> to vector<16x64xf32>
    %267 = arith.mulf %262, %266 : vector<16x64xf32>
    %268 = arith.truncf %267 : vector<16x64xf32> to vector<16x64xbf16>
    %c0_120 = arith.constant 0 : index
    %c0_121 = arith.constant 0 : index
    %269 = vector.load %arg13[%c0_120, %c0_121] : memref<64x128xbf16, #tpu.memory_space<vmem>>, vector<64x128xbf16>
    %cst_122 = arith.constant dense<0.000000e+00> : vector<16x128xf32>
    %270 = tpu.matmul %268, %269, %cst_122 {dimension_numbers = #tpu.dot_dimension_numbers<[1], [0], [0], [1], [0, 0, 1, 1], [], []>} : vector<16x64xbf16>, vector<64x128xbf16>, vector<16x128xf32> -> vector<16x128xf32>
    %c0_123 = arith.constant 0 : index
    %c0_124 = arith.constant 0 : index
    %271 = vector.load %arg14[%c0_123, %c0_124] : memref<1x128xf32, #tpu.memory_space<vmem>>, vector<1x128xf32>
    %272 = vector.broadcast %271 : vector<1x128xf32> to vector<16x128xf32>
    %273 = arith.addf %270, %272 : vector<16x128xf32>
    %cst_125 = arith.constant 0.000000e+00 : f32
    %274 = vector.broadcast %cst_125 : f32 to vector<16x128xf32>
    %275 = arith.maximumf %273, %274 : vector<16x128xf32>
    %276 = arith.truncf %275 : vector<16x128xf32> to vector<16x128xbf16>
    %c0_126 = arith.constant 0 : index
    %c0_127 = arith.constant 0 : index
    %277 = vector.load %arg15[%c0_126, %c0_127] : memref<128x64xbf16, #tpu.memory_space<vmem>>, vector<128x64xbf16>
    %cst_128 = arith.constant dense<0.000000e+00> : vector<16x64xf32>
    %278 = tpu.matmul %276, %277, %cst_128 {dimension_numbers = #tpu.dot_dimension_numbers<[1], [0], [0], [1], [0, 0, 1, 1], [], []>} : vector<16x128xbf16>, vector<128x64xbf16>, vector<16x64xf32> -> vector<16x64xf32>
    %c0_129 = arith.constant 0 : index
    %c0_130 = arith.constant 0 : index
    %279 = vector.load %arg16[%c0_129, %c0_130] : memref<1x64xf32, #tpu.memory_space<vmem>>, vector<1x64xf32>
    %280 = vector.broadcast %279 : vector<1x64xf32> to vector<16x64xf32>
    %281 = arith.addf %278, %280 : vector<16x64xf32>
    %282 = arith.addf %281, %267 : vector<16x64xf32>
    %cst_131 = arith.constant dense<0.000000e+00> : vector<16xf32>
    %283 = vector.multi_reduction <add>, %282, %cst_131 [1] : vector<16x64xf32> to vector<16xf32>
    %284 = vector.shape_cast %283 : vector<16xf32> to vector<16x1xf32>
    %cst_132 = arith.constant 6.400000e+01 : f32
    %285 = vector.broadcast %cst_132 : f32 to vector<16x1xf32>
    %286 = arith.divf %284, %285 : vector<16x1xf32>
    %287 = vector.broadcast %286 : vector<16x1xf32> to vector<16x64xf32>
    %288 = arith.subf %282, %287 : vector<16x64xf32>
    %289 = arith.mulf %288, %288 : vector<16x64xf32>
    %cst_133 = arith.constant dense<0.000000e+00> : vector<16xf32>
    %290 = vector.multi_reduction <add>, %289, %cst_133 [1] : vector<16x64xf32> to vector<16xf32>
    %291 = vector.shape_cast %290 : vector<16xf32> to vector<16x1xf32>
    %cst_134 = arith.constant 6.400000e+01 : f32
    %292 = vector.broadcast %cst_134 : f32 to vector<16x1xf32>
    %293 = arith.divf %291, %292 : vector<16x1xf32>
    %294 = vector.broadcast %286 : vector<16x1xf32> to vector<16x64xf32>
    %295 = arith.subf %282, %294 : vector<16x64xf32>
    %cst_135 = arith.constant 9.99999974E-6 : f32
    %296 = vector.broadcast %cst_135 : f32 to vector<16x1xf32>
    %297 = arith.addf %293, %296 : vector<16x1xf32>
    %298 = math.rsqrt %297 : vector<16x1xf32>
    %299 = vector.broadcast %298 : vector<16x1xf32> to vector<16x64xf32>
    %300 = arith.mulf %295, %299 : vector<16x64xf32>
    %301 = arith.truncf %300 : vector<16x64xf32> to vector<16x64xbf16>
    %c0_136 = arith.constant 0 : index
    %c0_137 = arith.constant 0 : index
    %302 = vector.load %arg17[%c0_136, %c0_137] : memref<64x128xbf16, #tpu.memory_space<vmem>>, vector<64x128xbf16>
    %cst_138 = arith.constant dense<0.000000e+00> : vector<16x128xf32>
    %303 = tpu.matmul %301, %302, %cst_138 {dimension_numbers = #tpu.dot_dimension_numbers<[1], [0], [0], [1], [0, 0, 1, 1], [], []>} : vector<16x64xbf16>, vector<64x128xbf16>, vector<16x128xf32> -> vector<16x128xf32>
    %304 = vector.shape_cast %303 : vector<16x128xf32> to vector<2x8x128xf32>
    %c0_139 = arith.constant 0 : index
    %c0_140 = arith.constant 0 : index
    %c0_141 = arith.constant 0 : index
    %305 = vector.load %arg18[%c0_139, %c0_140, %c0_141] : memref<2x8x128xf32, #tpu.memory_space<vmem>>, vector<2x8x128xf32>
    tpu.vector_store %arg18[%c0_139, %c0_140, %c0_141], %304 {strides = array<i32>} : memref<2x8x128xf32, #tpu.memory_space<vmem>>, vector<2x8x128xf32>,
    return
  }
}

</mosaic_0001>

<llo_original>
// kernel: encoder_decoder_transformer.2
$region0: #{encoder_decoder_transformer.2}
  #allocation0 [shape = 'u32[]', space=smem, size = 0x4, offset = 0x4, fixed_abs, tag = 'smem constant byte address 0x4 - core index']
  #allocation1 [shape = 'u32[72,128]{1,0:T(1,128)}', space=vmem, size = 0x9000, scoped, tag = 'internal scratch']
  %s0 = inlined_call_operand.vmem [shape: f32[128,32], index: 0, kind: input, shape index: {}]
  %s1 = inlined_call_operand.vmem [shape: bf16[32,128], index: 1, kind: input, shape index: {}]
  %s2 = inlined_call_operand.vmem [shape: f32[1,128], index: 2, kind: input, shape index: {}]
  %s3 = inlined_call_operand.vmem [shape: f32[32,128], index: 3, kind: input, shape index: {}]
  %s4 = inlined_call_operand.vmem [shape: f32[32,128], index: 4, kind: input, shape index: {}]
  %s5 = inlined_call_operand.vmem [shape: bf16[128,192], index: 5, kind: input, shape index: {}]
  %s6 = inlined_call_operand.vmem [shape: f32[1,192], index: 6, kind: input, shape index: {}]
  %s7 = inlined_call_operand.vmem [shape: bf16[64,128], index: 7, kind: input, shape index: {}]
  %s8 = inlined_call_operand.vmem [shape: f32[1,128], index: 8, kind: input, shape index: {}]
  %s9 = inlined_call_operand.vmem [shape: bf16[128,256], index: 9, kind: input, shape index: {}]
  %s10 = inlined_call_operand.vmem [shape: f32[1,256], index: 10, kind: input, shape index: {}]
  %s11 = inlined_call_operand.vmem [shape: bf16[256,128], index: 11, kind: input, shape index: {}]
  %s12 = inlined_call_operand.vmem [shape: f32[1,128], index: 12, kind: input, shape index: {}]
  %s13 = inlined_call_operand.vmem [shape: f32[2,16,128], index: 13, kind: output, shape index: {0}]
  %s14 = inlined_call_operand.vmem [shape: f32[1,2,2,16,128], index: 14, kind: output, shape index: {1}]
  %15 = xla_tuple %s13, %s14
  %s16 = sld [smem:[#allocation0]]
  $region70: #{encoder_decoder_transformer.2} parent=0
    _
  %s18 = ssub.s32 1, %s16
  %s19 = scalar_select 0, %s18, %s16
  // Predicated region
  $region2: #{encoder_decoder_transformer.2} parent=0 // pred_check
    _
  $region3: #{encoder_decoder_transformer.2} parent=0 // pred_check_branch
    %21 = sbr.rel (0) target = $region5
  $region4: #{encoder_decoder_transformer.2} parent=0 // pred_region
    _
  $region5: #{encoder_decoder_transformer.2} parent=0 // pred_fallthru
    _
  // Predicated region
  $region6: #{encoder_decoder_transformer.2} parent=0 // pred_check
    _
  $region7: #{encoder_decoder_transformer.2} parent=0 // pred_check_branch
    %23 = sbr.rel (0) target = $region9
  $region8: #{encoder_decoder_transformer.2} parent=0 // pred_region
    _
  $region9: #{encoder_decoder_transformer.2} parent=0 // pred_fallthru
    _
  // Predicated region
  $region10: #{encoder_decoder_transformer.2} parent=0 // pred_check
    _
  $region11: #{encoder_decoder_transformer.2} parent=0 // pred_check_branch
    %25 = sbr.rel (0) target = $region13
  $region12: #{encoder_decoder_transformer.2} parent=0 // pred_region
    _
  $region13: #{encoder_decoder_transformer.2} parent=0 // pred_fallthru
    _
  // Predicated region
  $region14: #{encoder_decoder_transformer.2} parent=0 // pred_check
    _
  $region15: #{encoder_decoder_transformer.2} parent=0 // pred_check_branch
    %27 = sbr.rel (0) target = $region17
  $region16: #{encoder_decoder_transformer.2} parent=0 // pred_region
    _
  $region17: #{encoder_decoder_transformer.2} parent=0 // pred_fallthru
    _
  // Predicated region
  $region18: #{encoder_decoder_transformer.2} parent=0 // pred_check
    _
  $region19: #{encoder_decoder_transformer.2} parent=0 // pred_check_branch
    %29 = sbr.rel (0) target = $region21
  $region20: #{encoder_decoder_transformer.2} parent=0 // pred_region
    _
  $region21: #{encoder_decoder_transformer.2} parent=0 // pred_fallthru
    _
  // Predicated region
  $region22: #{encoder_decoder_transformer.2} parent=0 // pred_check
    _
  $region23: #{encoder_decoder_transformer.2} parent=0 // pred_check_branch
    %31 = sbr.rel (0) target = $region25
  $region24: #{encoder_decoder_transformer.2} parent=0 // pred_region
    _
  $region25: #{encoder_decoder_transformer.2} parent=0 // pred_fallthru
    _
  // Predicated region
  $region26: #{encoder_decoder_transformer.2} parent=0 // pred_check
    _
  $region27: #{encoder_decoder_transformer.2} parent=0 // pred_check_branch
    %33 = sbr.rel (0) target = $region29
  $region28: #{encoder_decoder_transformer.2} parent=0 // pred_region
    _
  $region29: #{encoder_decoder_transformer.2} parent=0 // pred_fallthru
    _
  // Predicated region
  $region30: #{encoder_decoder_transformer.2} parent=0 // pred_check
    _
  $region31: #{encoder_decoder_transformer.2} parent=0 // pred_check_branch
    %35 = sbr.rel (0) target = $region33
  $region32: #{encoder_decoder_transformer.2} parent=0 // pred_region
    _
  $region33: #{encoder_decoder_transformer.2} parent=0 // pred_fallthru
    _
  // Predicated region
  $region34: #{encoder_decoder_transformer.2} parent=0 // pred_check
    _
  $region35: #{encoder_decoder_transformer.2} parent=0 // pred_check_branch
    %37 = sbr.rel (0) target = $region37
  $region36: #{encoder_decoder_transformer.2} parent=0 // pred_region
    _
  $region37: #{encoder_decoder_transformer.2} parent=0 // pred_fallthru
    _
  // Predicated region
  $region38: #{encoder_decoder_transformer.2} parent=0 // pred_check
    _
  $region39: #{encoder_decoder_transformer.2} parent=0 // pred_check_branch
    %39 = sbr.rel (0) target = $region41
  $region40: #{encoder_decoder_transformer.2} parent=0 // pred_region
    _
  $region41: #{encoder_decoder_transformer.2} parent=0 // pred_fallthru
    _
  // Predicated region
  $region42: #{encoder_decoder_transformer.2} parent=0 // pred_check
    _
  $region43: #{encoder_decoder_transformer.2} parent=0 // pred_check_branch
    %41 = sbr.rel (0) target = $region45
  $region44: #{encoder_decoder_transformer.2} parent=0 // pred_region
    _
  $region45: #{encoder_decoder_transformer.2} parent=0 // pred_fallthru
    _
  // Predicated region
  $region46: #{encoder_decoder_transformer.2} parent=0 // pred_check
    _
  $region47: #{encoder_decoder_transformer.2} parent=0 // pred_check_branch
    %43 = sbr.rel (0) target = $region49
  $region48: #{encoder_decoder_transformer.2} parent=0 // pred_region
    _
  $region49: #{encoder_decoder_transformer.2} parent=0 // pred_fallthru
    _
  // Predicated region
  $region50: #{encoder_decoder_transformer.2} parent=0 // pred_check
    _
  $region51: #{encoder_decoder_transformer.2} parent=0 // pred_check_branch
    %45 = sbr.rel (0) target = $region53
  $region52: #{encoder_decoder_transformer.2} parent=0 // pred_region
    _
  $region53: #{encoder_decoder_transformer.2} parent=0 // pred_fallthru
    _
  %v47 = vld [vmem:[%s0] sm:$0xff]
  %v48 = vld [vmem:[%s0 + $0x8] sm:$0xff]
  %v49 = vld [vmem:[%s0 + $0x10] sm:$0xff]
  %v50 = vld [vmem:[%s0 + $0x18] sm:$0xff]
  %v51 = vld [vmem:[%s0 + $0x20] sm:$0xff]
  %v52 = vld [vmem:[%s0 + $0x28] sm:$0xff]
  %v53 = vld [vmem:[%s0 + $0x30] sm:$0xff]
  %v54 = vld [vmem:[%s0 + $0x38] sm:$0xff]
  %v55 = vld [vmem:[%s0 + $0x40] sm:$0xff]
  %v56 = vld [vmem:[%s0 + $0x48] sm:$0xff]
  %v57 = vld [vmem:[%s0 + $0x50] sm:$0xff]
  %v58 = vld [vmem:[%s0 + $0x58] sm:$0xff]
  %v59 = vld [vmem:[%s0 + $0x60] sm:$0xff]
  %v60 = vld [vmem:[%s0 + $0x68] sm:$0xff]
  %v61 = vld [vmem:[%s0 + $0x70] sm:$0xff]
  %v62 = vld [vmem:[%s0 + $0x78] sm:$0xff]
  %v63 = vpack.c.bf16 %v48, %v47
  %v64 = vpack.c.bf16 %v50, %v49
  %v65 = vpack.c.bf16 %v52, %v51
  %v66 = vpack.c.bf16 %v54, %v53
  %v67 = vpack.c.bf16 %v56, %v55
  %v68 = vpack.c.bf16 %v58, %v57
  %v69 = vpack.c.bf16 %v60, %v59
  %v70 = vpack.c.bf16 %v62, %v61
  %v71 = vld [vmem:[%s1] sm:$0xf]
  %v72 = vld [vmem:[%s1 + $0x4] sm:$0xf]
  %v73 = vld [vmem:[%s1 + $0x8] sm:$0xf]
  %v74 = vld [vmem:[%s1 + $0xc] sm:$0xf]
  %v75 = vld [vmem:[%s2] sm:$0x1]
  %v77 = vperm.slane %v75, 0
  %v83 = vunpack.c.l.b16 %v71
  %v84 = vunpack.c.l.b16 %v72
  %v85 = vunpack.c.l.b16 %v73
  %v86 = vunpack.c.l.b16 %v74
  %v87 = vpack.c.b16 %v84, %v83
  %v88 = vpack.c.b16 %v86, %v85
  %vm91 = vcmask 261120
  %v93 = vsel %vm91, %v63, 0
  %v96 = vsel %vm91, %v64, 0
  %v99 = vsel %vm91, %v65, 0
  %v102 = vsel %vm91, %v66, 0
  %v105 = vsel %vm91, %v67, 0
  %v108 = vsel %vm91, %v68, 0
  %v111 = vsel %vm91, %v69, 0
  %v114 = vsel %vm91, %v70, 0
  %116 = vmatpush.bf16.msra.mxu0 0
  %117 = vmatpush.bf16.msra.mxu0 0
  %118 = vmatpush.bf16.msra.mxu0 0
  %119 = vmatpush.bf16.msra.mxu0 0
  %120 = vmatpush.bf16.msra.mxu0 0
  %121 = vmatpush.bf16.msra.mxu0 0
  %122 = vmatpush.bf16.msra.mxu0 %v88
  %123 = vmatpush.bf16.msra.mxu0 %v87
  %124 = vmatmul.bf16.gmra.mxu0 %v93
  %v125 = vpop.f32.mrf.mxu0
  %v126 = vadd.f32 %v77, %v125
  %v127 = vpop.f32.mrf.mxu0
  %v128 = vadd.f32 %v77, %v127
  %129 = vmatmul.bf16.gmra.mxu0 %v96
  %v130 = vpop.f32.mrf.mxu0
  %v131 = vadd.f32 %v77, %v130
  %v132 = vpop.f32.mrf.mxu0
  %v133 = vadd.f32 %v77, %v132
  %134 = vmatmul.bf16.gmra.mxu0 %v99
  %v135 = vpop.f32.mrf.mxu0
  %v136 = vadd.f32 %v77, %v135
  %v137 = vpop.f32.mrf.mxu0
  %v138 = vadd.f32 %v77, %v137
  %139 = vmatmul.bf16.gmra.mxu0 %v102
  %v140 = vpop.f32.mrf.mxu0
  %v141 = vadd.f32 %v77, %v140
  %v142 = vpop.f32.mrf.mxu0
  %v143 = vadd.f32 %v77, %v142
  %144 = vmatmul.bf16.gmra.mxu0 %v105
  %v145 = vpop.f32.mrf.mxu0
  %v146 = vadd.f32 %v77, %v145
  %v147 = vpop.f32.mrf.mxu0
  %v148 = vadd.f32 %v77, %v147
  %149 = vmatmul.bf16.gmra.mxu0 %v108
  %v150 = vpop.f32.mrf.mxu0
  %v151 = vadd.f32 %v77, %v150
  %v152 = vpop.f32.mrf.mxu0
  %v153 = vadd.f32 %v77, %v152
  %154 = vmatmul.bf16.gmra.mxu0 %v111
  %v155 = vpop.f32.mrf.mxu0
  %v156 = vadd.f32 %v77, %v155
  %v157 = vpop.f32.mrf.mxu0
  %v158 = vadd.f32 %v77, %v157
  %159 = vmatmul.bf16.gmra.mxu0 %v114
  %v160 = vpop.f32.mrf.mxu0
  %v161 = vadd.f32 %v77, %v160
  %v162 = vpop.f32.mrf.mxu0
  %v163 = vadd.f32 %v77, %v162
  %164 = vdwg.mxu0
  %v165 = vmax.f32 %v126, 0.0
  %v166 = vmax.f32 %v128, 0.0
  %v167 = vmax.f32 %v131, 0.0
  %v168 = vmax.f32 %v133, 0.0
  %v169 = vmax.f32 %v136, 0.0
  %v170 = vmax.f32 %v138, 0.0
  %v171 = vmax.f32 %v141, 0.0
  %v172 = vmax.f32 %v143, 0.0
  %v173 = vmax.f32 %v146, 0.0
  %v174 = vmax.f32 %v148, 0.0
  %v175 = vmax.f32 %v151, 0.0
  %v176 = vmax.f32 %v153, 0.0
  %v177 = vmax.f32 %v156, 0.0
  %v178 = vmax.f32 %v158, 0.0
  %v179 = vmax.f32 %v161, 0.0
  %v180 = vmax.f32 %v163, 0.0
  %v181 = vld [vmem:[%s3] sm:$0xff]
  %v182 = vld [vmem:[%s3 + $0x8] sm:$0xff]
  %v183 = vld [vmem:[%s3 + $0x10] sm:$0xff]
  %v184 = vld [vmem:[%s3 + $0x18] sm:$0xff]
  %v185 = vld [vmem:[%s4] sm:$0xff]
  %v186 = vld [vmem:[%s4 + $0x8] sm:$0xff]
  %v187 = vld [vmem:[%s4 + $0x10] sm:$0xff]
  %v188 = vld [vmem:[%s4 + $0x18] sm:$0xff]
  %189 = vmatpush.msra.mxu0 %v180
  %190 = vmatpush.msra.mxu0 %v179
  %191 = vmatpush.msra.mxu0 %v178
  %192 = vmatpush.msra.mxu0 %v177
  %193 = vmatpush.msra.mxu0 %v176
  %194 = vmatpush.msra.mxu0 %v175
  %195 = vmatpush.msra.mxu0 %v174
  %196 = vmatpush.msra.mxu0 %v173
  %197 = vmatpush.msra.mxu0 %v172
  %198 = vmatpush.msra.mxu0 %v171
  %199 = vmatpush.msra.mxu0 %v170
  %200 = vmatpush.msra.mxu0 %v169
  %201 = vmatpush.msra.mxu0 %v168
  %202 = vmatpush.msra.mxu0 %v167
  %203 = vmatpush.msra.mxu0 %v166
  %204 = vmatpush.msra.mxu0 %v165
  %205 = vmatmul.f32.gmra.mxu0 %v181
  %v206 = vpop.f32.mrf.mxu0
  %v207 = vadd.f32 %v185, %v206
  %208 = vmatmul.f32.gmra.mxu0 %v182
  %v209 = vpop.f32.mrf.mxu0
  %v210 = vadd.f32 %v186, %v209
  %211 = vmatmul.f32.gmra.mxu0 %v183
  %v212 = vpop.f32.mrf.mxu0
  %v213 = vadd.f32 %v187, %v212
  %214 = vmatmul.f32.gmra.mxu0 %v184
  %v215 = vpop.f32.mrf.mxu0
  %v216 = vadd.f32 %v188, %v215
  %217 = vdwg.mxu0
  %v218 = vlaneseq
  %v219 = vand.u32 %v218, 127
  %vm220 = vcmp.ge.s32.totalorder %v219, 16
  %v221 = vsel %vm220, -1e+09, 0.0
  %v222 = vpack.c.bf16 %v210, %v207
  %v223 = vpack.c.bf16 %v216, %v213
  %v224 = vld [vmem:[%s5] sm:$0xff]
  %v225 = vld [vmem:[%s5 + $0x8] sm:$0xff]
  %v226 = vld [vmem:[%s5 + $0x10] sm:$0xff]
  %v227 = vld [vmem:[%s5 + $0x18] sm:$0xff]
  %v228 = vld [vmem:[%s5 + $0x20] sm:$0xff]
  %v229 = vld [vmem:[%s5 + $0x28] sm:$0xff]
  %v230 = vld [vmem:[%s5 + $0x30] sm:$0xff]
  %v231 = vld [vmem:[%s5 + $0x38] sm:$0xff]
  %v232 = vld [vmem:[%s5 + $0x40] sm:$0xff]
  %v233 = vld [vmem:[%s5 + $0x48] sm:$0xff]
  %v234 = vld [vmem:[%s5 + $0x50] sm:$0xff]
  %v235 = vld [vmem:[%s5 + $0x58] sm:$0xff]
  %v236 = vld [vmem:[%s5 + $0x60] sm:$0xff]
  %v237 = vld [vmem:[%s5 + $0x68] sm:$0xff]
  %v238 = vld [vmem:[%s5 + $0x70] sm:$0xff]
  %v239 = vld [vmem:[%s5 + $0x78] sm:$0xff]
  %v240 = vld [vmem:[%s6] sm:$0x3]
  %v242 = vperm.slane %v240, 0
  %v243 = vperm.slane %v240, 1
  %v262 = vunpack.c.l.b16 %v224
  %v263 = vunpack.c.h.b16 %v224
  %v264 = vunpack.c.l.b16 %v225
  %v265 = vunpack.c.h.b16 %v225
  %v266 = vunpack.c.l.b16 %v226
  %v267 = vunpack.c.h.b16 %v226
  %v268 = vunpack.c.l.b16 %v227
  %v269 = vunpack.c.h.b16 %v227
  %v270 = vunpack.c.l.b16 %v228
  %v271 = vunpack.c.h.b16 %v228
  %v272 = vunpack.c.l.b16 %v229
  %v273 = vunpack.c.h.b16 %v229
  %v274 = vunpack.c.l.b16 %v230
  %v275 = vunpack.c.h.b16 %v230
  %v276 = vunpack.c.l.b16 %v231
  %v277 = vunpack.c.h.b16 %v231
  %v278 = vunpack.c.l.b16 %v232
  %v279 = vunpack.c.h.b16 %v232
  %v280 = vunpack.c.l.b16 %v233
  %v281 = vunpack.c.h.b16 %v233
  %v282 = vunpack.c.l.b16 %v234
  %v283 = vunpack.c.h.b16 %v234
  %v284 = vunpack.c.l.b16 %v235
  %v285 = vunpack.c.h.b16 %v235
  %v286 = vunpack.c.l.b16 %v236
  %v287 = vunpack.c.h.b16 %v236
  %v288 = vunpack.c.l.b16 %v237
  %v289 = vunpack.c.h.b16 %v237
  %v290 = vunpack.c.l.b16 %v238
  %v291 = vunpack.c.h.b16 %v238
  %v292 = vunpack.c.l.b16 %v239
  %v293 = vunpack.c.h.b16 %v239
  %v294 = vpack.c.b16 %v264, %v262
  %v295 = vpack.c.b16 %v265, %v263
  %v296 = vpack.c.b16 %v268, %v266
  %v297 = vpack.c.b16 %v269, %v267
  %v298 = vpack.c.b16 %v272, %v270
  %v299 = vpack.c.b16 %v273, %v271
  %v300 = vpack.c.b16 %v276, %v274
  %v301 = vpack.c.b16 %v277, %v275
  %v302 = vpack.c.b16 %v280, %v278
  %v303 = vpack.c.b16 %v281, %v279
  %v304 = vpack.c.b16 %v284, %v282
  %v305 = vpack.c.b16 %v285, %v283
  %v306 = vpack.c.b16 %v288, %v286
  %v307 = vpack.c.b16 %v289, %v287
  %v308 = vpack.c.b16 %v292, %v290
  %v309 = vpack.c.b16 %v293, %v291
  %326 = vmatpush.bf16.msra.mxu0 %v308
  %327 = vmatpush.bf16.msra.mxu0 %v306
  %328 = vmatpush.bf16.msra.mxu0 %v304
  %329 = vmatpush.bf16.msra.mxu0 %v302
  %330 = vmatpush.bf16.msra.mxu0 %v300
  %331 = vmatpush.bf16.msra.mxu0 %v298
  %332 = vmatpush.bf16.msra.mxu0 %v296
  %333 = vmatpush.bf16.msra.mxu0 %v294
  %334 = vmatmul.bf16.gmra.mxu0 %v222
  %v335 = vpop.f32.mrf.mxu0
  %v336 = vadd.f32 %v242, %v335
  %v337 = vpop.f32.mrf.mxu0
  %v338 = vadd.f32 %v242, %v337
  %339 = vmatmul.bf16.gmra.mxu0 %v223
  %v340 = vpop.f32.mrf.mxu0
  %v341 = vadd.f32 %v242, %v340
  %v342 = vpop.f32.mrf.mxu0
  %v343 = vadd.f32 %v242, %v342
  %344 = vdwg.mxu0
  %345 = vmatpush.bf16.msra.mxu0 %v309
  %346 = vmatpush.bf16.msra.mxu0 %v307
  %347 = vmatpush.bf16.msra.mxu0 %v305
  %348 = vmatpush.bf16.msra.mxu0 %v303
  %349 = vmatpush.bf16.msra.mxu0 %v301
  %350 = vmatpush.bf16.msra.mxu0 %v299
  %351 = vmatpush.bf16.msra.mxu0 %v297
  %352 = vmatpush.bf16.msra.mxu0 %v295
  %353 = vmatmul.bf16.gmra.mxu0 %v222
  %v354 = vpop.f32.mrf.mxu0
  %v355 = vadd.f32 %v243, %v354
  %v356 = vpop.f32.mrf.mxu0
  %v357 = vadd.f32 %v243, %v356
  %358 = vmatmul.bf16.gmra.mxu0 %v223
  %v359 = vpop.f32.mrf.mxu0
  %v360 = vadd.f32 %v243, %v359
  %v361 = vpop.f32.mrf.mxu0
  %v362 = vadd.f32 %v243, %v361
  %363 = vdwg.mxu0
  %367 = vrot.lane.b32.xlu0 %v336, 64
  %v368 = vpop.permute.xlu0 %367
  %369 = vrot.lane.b32.xlu0 %v338, 64
  %v370 = vpop.permute.xlu0 %369
  %371 = vrot.lane.b32.xlu0 0.0, 64
  %v372 = vpop.permute.xlu0 %371
  %v373 = vsel %vm91, %v336, 0
  %v375 = vsel %vm91, %v338, 0
  %v377 = vsel %vm91, %v368, 0
  %v379 = vsel %vm91, %v370, 0
  %v381 = vsel %vm91, %v372, 0
  %383 = vmatpush.xpose.msra.mxu0 %v381
  %384 = vmatpush.xpose.msra.mxu0 %v381
  %385 = vmatpush.xpose.msra.mxu0 %v381
  %386 = vmatpush.xpose.msra.mxu0 %v381
  %387 = vmatpush.xpose.msra.mxu0 %v381
  %388 = vmatpush.xpose.msra.mxu0 %v381
  %389 = vmatpush.xpose.msra.mxu0 %v381
  %390 = vmatpush.xpose.msra.mxu0 %v381
  %391 = vmatpush.xpose.msra.mxu0 %v381
  %392 = vmatpush.xpose.msra.mxu0 %v381
  %393 = vmatpush.xpose.msra.mxu0 %v381
  %394 = vmatpush.xpose.msra.mxu0 %v381
  %395 = vmatpush.xpose.msra.mxu0 %v381
  %396 = vmatpush.xpose.msra.mxu0 %v381
  %397 = vmatpush.xpose.msra.mxu0 %v379
  %398 = vmatpush.xpose.msra.mxu0 %v377
  %399 = vmatmul.f32.gmra.mxu0 %v373
  %v400 = vpop.f32.mrf.mxu0
  %v401 = vadd.f32 %v221, %v400
  %402 = vmatmul.f32.gmra.mxu0 %v375
  %v403 = vpop.f32.mrf.mxu0
  %v404 = vadd.f32 %v221, %v403
  %405 = vdwg.mxu0
  %406 = vmax.xlane.f32.xlu0 %v401
  %v407 = vpop.xlane.xlu0 %406
  %408 = vmax.xlane.f32.xlu0 %v404
  %v409 = vpop.xlane.xlu0 %408
  %v410 = vsub.f32 %v401, %v407
  %v411 = vsub.f32 %v404, %v409
  %v412 = vmul.f32 %v410, 1.442695
  %v413 = vpow.pop %v412
  %v414 = vmul.f32 %v411, 1.442695
  %v415 = vpow.pop %v414
  %416 = vadd.xlane.f32.xlu0 %v413
  %v417 = vpop.xlane.xlu0 %416
  %418 = vadd.xlane.f32.xlu0 %v415
  %v419 = vpop.xlane.xlu0 %418
  %v420 = vrcp.pop %v417
  %v421 = vmul.f32 %v417, %v420
  %v422 = vsub.f32 1.0, %v421
  %v423 = vmul.f32 %v420, %v422
  %v424 = vadd.f32 %v420, %v423
  %vm425 = vweird.f32 %v417
  %vm426 = vweird.f32 %v420
  %vm427 = vmor %vm425, %vm426
  %v428 = vsel %vm427, %v420, %v424
  %v429 = vand.u32 2147483647, %v417
  %vm430 = vcmp.eq.f32.partialorder %v429, 8.507059e+37
  %v431 = vand.u32 %v417, 2147483648
  %v432 = vor.u32 1.1754944e-38, %v431
  %v433 = vsel %vm430, %v432, %v428
  %v434 = vmul.f32 %v413, %v433
  %v435 = vrcp.pop %v419
  %v436 = vmul.f32 %v419, %v435
  %v437 = vsub.f32 1.0, %v436
  %v438 = vmul.f32 %v435, %v437
  %v439 = vadd.f32 %v435, %v438
  %vm440 = vweird.f32 %v419
  %vm441 = vweird.f32 %v435
  %vm442 = vmor %vm440, %vm441
  %v443 = vsel %vm442, %v435, %v439
  %v444 = vand.u32 2147483647, %v419
  %vm445 = vcmp.eq.f32.partialorder %v444, 8.507059e+37
  %v446 = vand.u32 %v419, 2147483648
  %v447 = vor.u32 1.1754944e-38, %v446
  %v448 = vsel %vm445, %v447, %v443
  %v449 = vmul.f32 %v415, %v448
  %450 = vst [vmem:[%s14] sm:$0xff] %v434
  %451 = vst [vmem:[%s14 + $0x8] sm:$0xff] %v449
  %452 = vmatpush.msra.mxu0 0.0
  %453 = vmatpush.msra.mxu0 0.0
  %454 = vmatpush.msra.mxu0 0.0
  %455 = vmatpush.msra.mxu0 0.0
  %456 = vmatpush.msra.mxu0 0.0
  %457 = vmatpush.msra.mxu0 0.0
  %458 = vmatpush.msra.mxu0 0.0
  %459 = vmatpush.msra.mxu0 0.0
  %460 = vmatpush.msra.mxu0 0.0
  %461 = vmatpush.msra.mxu0 0.0
  %462 = vmatpush.msra.mxu0 0.0
  %463 = vmatpush.msra.mxu0 0.0
  %464 = vmatpush.msra.mxu0 0.0
  %465 = vmatpush.msra.mxu0 0.0
  %466 = vmatpush.msra.mxu0 %v357
  %467 = vmatpush.msra.mxu0 %v355
  %468 = vmatmul.f32.gmra.mxu0 %v434
  %v469 = vpop.f32.mrf.mxu0
  %v470 = vadd.f32 0.0, %v469
  %471 = vmatmul.f32.gmra.mxu0 %v449
  %v472 = vpop.f32.mrf.mxu0
  %v473 = vadd.f32 0.0, %v472
  %474 = vdwg.mxu0
  %475 = vrot.lane.b32.xlu0 %v336, 96
  %v476 = vpop.permute.xlu0 %475
  %477 = vrot.lane.b32.xlu0 %v338, 96
  %v478 = vpop.permute.xlu0 %477
  %479 = vrot.lane.b32.xlu0 %v336, 32
  %v480 = vpop.permute.xlu0 %479
  %481 = vrot.lane.b32.xlu0 %v338, 32
  %v482 = vpop.permute.xlu0 %481
  %483 = vrot.lane.b32.xlu0 0.0, 32
  %v484 = vpop.permute.xlu0 %483
  %v485 = vsel %vm91, %v476, 0
  %v487 = vsel %vm91, %v478, 0
  %v489 = vsel %vm91, %v480, 0
  %v491 = vsel %vm91, %v482, 0
  %v493 = vsel %vm91, %v484, 0
  %495 = vmatpush.xpose.msra.mxu0 %v493
  %496 = vmatpush.xpose.msra.mxu0 %v493
  %497 = vmatpush.xpose.msra.mxu0 %v493
  %498 = vmatpush.xpose.msra.mxu0 %v493
  %499 = vmatpush.xpose.msra.mxu0 %v493
  %500 = vmatpush.xpose.msra.mxu0 %v493
  %501 = vmatpush.xpose.msra.mxu0 %v493
  %502 = vmatpush.xpose.msra.mxu0 %v493
  %503 = vmatpush.xpose.msra.mxu0 %v493
  %504 = vmatpush.xpose.msra.mxu0 %v493
  %505 = vmatpush.xpose.msra.mxu0 %v493
  %506 = vmatpush.xpose.msra.mxu0 %v493
  %507 = vmatpush.xpose.msra.mxu0 %v493
  %508 = vmatpush.xpose.msra.mxu0 %v493
  %509 = vmatpush.xpose.msra.mxu0 %v491
  %510 = vmatpush.xpose.msra.mxu0 %v489
  %511 = vmatmul.f32.gmra.mxu0 %v485
  %v512 = vpop.f32.mrf.mxu0
  %v513 = vadd.f32 %v221, %v512
  %514 = vmatmul.f32.gmra.mxu0 %v487
  %v515 = vpop.f32.mrf.mxu0
  %v516 = vadd.f32 %v221, %v515
  %517 = vdwg.mxu0
  %518 = vmax.xlane.f32.xlu0 %v513
  %v519 = vpop.xlane.xlu0 %518
  %520 = vmax.xlane.f32.xlu0 %v516
  %v521 = vpop.xlane.xlu0 %520
  %v522 = vsub.f32 %v513, %v519
  %v523 = vsub.f32 %v516, %v521
  %v524 = vmul.f32 %v522, 1.442695
  %v525 = vpow.pop %v524
  %v526 = vmul.f32 %v523, 1.442695
  %v527 = vpow.pop %v526
  %528 = vadd.xlane.f32.xlu0 %v525
  %v529 = vpop.xlane.xlu0 %528
  %530 = vadd.xlane.f32.xlu0 %v527
  %v531 = vpop.xlane.xlu0 %530
  %v532 = vrcp.pop %v529
  %v533 = vmul.f32 %v529, %v532
  %v534 = vsub.f32 1.0, %v533
  %v535 = vmul.f32 %v532, %v534
  %v536 = vadd.f32 %v532, %v535
  %vm537 = vweird.f32 %v529
  %vm538 = vweird.f32 %v532
  %vm539 = vmor %vm537, %vm538
  %v540 = vsel %vm539, %v532, %v536
  %v541 = vand.u32 2147483647, %v529
  %vm542 = vcmp.eq.f32.partialorder %v541, 8.507059e+37
  %v543 = vand.u32 %v529, 2147483648
  %v544 = vor.u32 1.1754944e-38, %v543
  %v545 = vsel %vm542, %v544, %v540
  %v546 = vmul.f32 %v525, %v545
  %v547 = vrcp.pop %v531
  %v548 = vmul.f32 %v531, %v547
  %v549 = vsub.f32 1.0, %v548
  %v550 = vmul.f32 %v547, %v549
  %v551 = vadd.f32 %v547, %v550
  %vm552 = vweird.f32 %v531
  %vm553 = vweird.f32 %v547
  %vm554 = vmor %vm552, %vm553
  %v555 = vsel %vm554, %v547, %v551
  %v556 = vand.u32 2147483647, %v531
  %vm557 = vcmp.eq.f32.partialorder %v556, 8.507059e+37
  %v558 = vand.u32 %v531, 2147483648
  %v559 = vor.u32 1.1754944e-38, %v558
  %v560 = vsel %vm557, %v559, %v555
  %v561 = vmul.f32 %v527, %v560
  %s562 = scalar_lea.vmem %s14, 16
  %563 = vst [vmem:[%s562] sm:$0xff] %v546
  %564 = vst [vmem:[%s562 + $0x8] sm:$0xff] %v561
  %567 = vrot.lane.b32.xlu0 %v355, 96
  %v568 = vpop.permute.xlu0 %567
  %569 = vrot.lane.b32.xlu0 %v357, 96
  %v570 = vpop.permute.xlu0 %569
  %571 = vrot.lane.b32.xlu0 0.0, 96
  %v572 = vpop.permute.xlu0 %571
  %576 = vmatpush.msra.mxu0 %v572
  %577 = vmatpush.msra.mxu0 %v572
  %578 = vmatpush.msra.mxu0 %v572
  %579 = vmatpush.msra.mxu0 %v572
  %580 = vmatpush.msra.mxu0 %v572
  %581 = vmatpush.msra.mxu0 %v572
  %582 = vmatpush.msra.mxu0 %v572
  %583 = vmatpush.msra.mxu0 %v572
  %584 = vmatpush.msra.mxu0 %v572
  %585 = vmatpush.msra.mxu0 %v572
  %586 = vmatpush.msra.mxu0 %v572
  %587 = vmatpush.msra.mxu0 %v572
  %588 = vmatpush.msra.mxu0 %v572
  %589 = vmatpush.msra.mxu0 %v572
  %590 = vmatpush.msra.mxu0 %v570
  %591 = vmatpush.msra.mxu0 %v568
  %592 = vmatmul.f32.gmra.mxu0 %v546
  %v593 = vpop.f32.mrf.mxu0
  %v594 = vadd.f32 0.0, %v593
  %595 = vmatmul.f32.gmra.mxu0 %v561
  %v596 = vpop.f32.mrf.mxu0
  %v597 = vadd.f32 0.0, %v596
  %598 = vdwg.mxu0
  %601 = vrot.lane.b32.xlu0 %v594, 32
  %v602 = vpop.permute.xlu0 %601
  %603 = vrot.lane.b32.xlu0 %v597, 32
  %v604 = vpop.permute.xlu0 %603
  %v607 = vsel %vm91, %v470, %v602
  %v608 = vsel %vm91, %v473, %v604
  %611 = vrot.lane.b32.xlu0 %v341, 64
  %v612 = vpop.permute.xlu0 %611
  %613 = vrot.lane.b32.xlu0 %v343, 64
  %v614 = vpop.permute.xlu0 %613
  %v615 = vsel %vm91, %v341, 0
  %v617 = vsel %vm91, %v343, 0
  %v619 = vsel %vm91, %v612, 0
  %v621 = vsel %vm91, %v614, 0
  %623 = vmatpush.xpose.msra.mxu0 %v381
  %624 = vmatpush.xpose.msra.mxu0 %v381
  %625 = vmatpush.xpose.msra.mxu0 %v381
  %626 = vmatpush.xpose.msra.mxu0 %v381
  %627 = vmatpush.xpose.msra.mxu0 %v381
  %628 = vmatpush.xpose.msra.mxu0 %v381
  %629 = vmatpush.xpose.msra.mxu0 %v381
  %630 = vmatpush.xpose.msra.mxu0 %v381
  %631 = vmatpush.xpose.msra.mxu0 %v381
  %632 = vmatpush.xpose.msra.mxu0 %v381
  %633 = vmatpush.xpose.msra.mxu0 %v381
  %634 = vmatpush.xpose.msra.mxu0 %v381
  %635 = vmatpush.xpose.msra.mxu0 %v381
  %636 = vmatpush.xpose.msra.mxu0 %v381
  %637 = vmatpush.xpose.msra.mxu0 %v621
  %638 = vmatpush.xpose.msra.mxu0 %v619
  %639 = vmatmul.f32.gmra.mxu0 %v615
  %v640 = vpop.f32.mrf.mxu0
  %v641 = vadd.f32 %v221, %v640
  %642 = vmatmul.f32.gmra.mxu0 %v617
  %v643 = vpop.f32.mrf.mxu0
  %v644 = vadd.f32 %v221, %v643
  %645 = vdwg.mxu0
  %646 = vmax.xlane.f32.xlu0 %v641
  %v647 = vpop.xlane.xlu0 %646
  %648 = vmax.xlane.f32.xlu0 %v644
  %v649 = vpop.xlane.xlu0 %648
  %v650 = vsub.f32 %v641, %v647
  %v651 = vsub.f32 %v644, %v649
  %v652 = vmul.f32 %v650, 1.442695
  %v653 = vpow.pop %v652
  %v654 = vmul.f32 %v651, 1.442695
  %v655 = vpow.pop %v654
  %656 = vadd.xlane.f32.xlu0 %v653
  %v657 = vpop.xlane.xlu0 %656
  %658 = vadd.xlane.f32.xlu0 %v655
  %v659 = vpop.xlane.xlu0 %658
  %v660 = vrcp.pop %v657
  %v661 = vmul.f32 %v657, %v660
  %v662 = vsub.f32 1.0, %v661
  %v663 = vmul.f32 %v660, %v662
  %v664 = vadd.f32 %v660, %v663
  %vm665 = vweird.f32 %v657
  %vm666 = vweird.f32 %v660
  %vm667 = vmor %vm665, %vm666
  %v668 = vsel %vm667, %v660, %v664
  %v669 = vand.u32 2147483647, %v657
  %vm670 = vcmp.eq.f32.partialorder %v669, 8.507059e+37
  %v671 = vand.u32 %v657, 2147483648
  %v672 = vor.u32 1.1754944e-38, %v671
  %v673 = vsel %vm670, %v672, %v668
  %v674 = vmul.f32 %v653, %v673
  %v675 = vrcp.pop %v659
  %v676 = vmul.f32 %v659, %v675
  %v677 = vsub.f32 1.0, %v676
  %v678 = vmul.f32 %v675, %v677
  %v679 = vadd.f32 %v675, %v678
  %vm680 = vweird.f32 %v659
  %vm681 = vweird.f32 %v675
  %vm682 = vmor %vm680, %vm681
  %v683 = vsel %vm682, %v675, %v679
  %v684 = vand.u32 2147483647, %v659
  %vm685 = vcmp.eq.f32.partialorder %v684, 8.507059e+37
  %v686 = vand.u32 %v659, 2147483648
  %v687 = vor.u32 1.1754944e-38, %v686
  %v688 = vsel %vm685, %v687, %v683
  %v689 = vmul.f32 %v655, %v688
  %s690 = scalar_lea.vmem %s14, 32
  %691 = vst [vmem:[%s690] sm:$0xff] %v674
  %692 = vst [vmem:[%s690 + $0x8] sm:$0xff] %v689
  %693 = vmatpush.msra.mxu0 0.0
  %694 = vmatpush.msra.mxu0 0.0
  %695 = vmatpush.msra.mxu0 0.0
  %696 = vmatpush.msra.mxu0 0.0
  %697 = vmatpush.msra.mxu0 0.0
  %698 = vmatpush.msra.mxu0 0.0
  %699 = vmatpush.msra.mxu0 0.0
  %700 = vmatpush.msra.mxu0 0.0
  %701 = vmatpush.msra.mxu0 0.0
  %702 = vmatpush.msra.mxu0 0.0
  %703 = vmatpush.msra.mxu0 0.0
  %704 = vmatpush.msra.mxu0 0.0
  %705 = vmatpush.msra.mxu0 0.0
  %706 = vmatpush.msra.mxu0 0.0
  %707 = vmatpush.msra.mxu0 %v362
  %708 = vmatpush.msra.mxu0 %v360
  %709 = vmatmul.f32.gmra.mxu0 %v674
  %v710 = vpop.f32.mrf.mxu0
  %v711 = vadd.f32 0.0, %v710
  %712 = vmatmul.f32.gmra.mxu0 %v689
  %v713 = vpop.f32.mrf.mxu0
  %v714 = vadd.f32 0.0, %v713
  %715 = vdwg.mxu0
  %716 = vrot.lane.b32.xlu0 %v341, 96
  %v717 = vpop.permute.xlu0 %716
  %718 = vrot.lane.b32.xlu0 %v343, 96
  %v719 = vpop.permute.xlu0 %718
  %720 = vrot.lane.b32.xlu0 %v341, 32
  %v721 = vpop.permute.xlu0 %720
  %722 = vrot.lane.b32.xlu0 %v343, 32
  %v723 = vpop.permute.xlu0 %722
  %v724 = vsel %vm91, %v717, 0
  %v726 = vsel %vm91, %v719, 0
  %v728 = vsel %vm91, %v721, 0
  %v730 = vsel %vm91, %v723, 0
  %732 = vmatpush.xpose.msra.mxu0 %v493
  %733 = vmatpush.xpose.msra.mxu0 %v493
  %734 = vmatpush.xpose.msra.mxu0 %v493
  %735 = vmatpush.xpose.msra.mxu0 %v493
  %736 = vmatpush.xpose.msra.mxu0 %v493
  %737 = vmatpush.xpose.msra.mxu0 %v493
  %738 = vmatpush.xpose.msra.mxu0 %v493
  %739 = vmatpush.xpose.msra.mxu0 %v493
  %740 = vmatpush.xpose.msra.mxu0 %v493
  %741 = vmatpush.xpose.msra.mxu0 %v493
  %742 = vmatpush.xpose.msra.mxu0 %v493
  %743 = vmatpush.xpose.msra.mxu0 %v493
  %744 = vmatpush.xpose.msra.mxu0 %v493
  %745 = vmatpush.xpose.msra.mxu0 %v493
  %746 = vmatpush.xpose.msra.mxu0 %v730
  %747 = vmatpush.xpose.msra.mxu0 %v728
  %748 = vmatmul.f32.gmra.mxu0 %v724
  %v749 = vpop.f32.mrf.mxu0
  %v750 = vadd.f32 %v221, %v749
  %751 = vmatmul.f32.gmra.mxu0 %v726
  %v752 = vpop.f32.mrf.mxu0
  %v753 = vadd.f32 %v221, %v752
  %754 = vdwg.mxu0
  %755 = vmax.xlane.f32.xlu0 %v750
  %v756 = vpop.xlane.xlu0 %755
  %757 = vmax.xlane.f32.xlu0 %v753
  %v758 = vpop.xlane.xlu0 %757
  %v759 = vsub.f32 %v750, %v756
  %v760 = vsub.f32 %v753, %v758
  %v761 = vmul.f32 %v759, 1.442695
  %v762 = vpow.pop %v761
  %v763 = vmul.f32 %v760, 1.442695
  %v764 = vpow.pop %v763
  %765 = vadd.xlane.f32.xlu0 %v762
  %v766 = vpop.xlane.xlu0 %765
  %767 = vadd.xlane.f32.xlu0 %v764
  %v768 = vpop.xlane.xlu0 %767
  %v769 = vrcp.pop %v766
  %v770 = vmul.f32 %v766, %v769
  %v771 = vsub.f32 1.0, %v770
  %v772 = vmul.f32 %v769, %v771
  %v773 = vadd.f32 %v769, %v772
  %vm774 = vweird.f32 %v766
  %vm775 = vweird.f32 %v769
  %vm776 = vmor %vm774, %vm775
  %v777 = vsel %vm776, %v769, %v773
  %v778 = vand.u32 2147483647, %v766
  %vm779 = vcmp.eq.f32.partialorder %v778, 8.507059e+37
  %v780 = vand.u32 %v766, 2147483648
  %v781 = vor.u32 1.1754944e-38, %v780
  %v782 = vsel %vm779, %v781, %v777
  %v783 = vmul.f32 %v762, %v782
  %v784 = vrcp.pop %v768
  %v785 = vmul.f32 %v768, %v784
  %v786 = vsub.f32 1.0, %v785
  %v787 = vmul.f32 %v784, %v786
  %v788 = vadd.f32 %v784, %v787
  %vm789 = vweird.f32 %v768
  %vm790 = vweird.f32 %v784
  %vm791 = vmor %vm789, %vm790
  %v792 = vsel %vm791, %v784, %v788
  %v793 = vand.u32 2147483647, %v768
  %vm794 = vcmp.eq.f32.partialorder %v793, 8.507059e+37
  %v795 = vand.u32 %v768, 2147483648
  %v796 = vor.u32 1.1754944e-38, %v795
  %v797 = vsel %vm794, %v796, %v792
  %v798 = vmul.f32 %v764, %v797
  %s799 = scalar_lea.vmem %s14, 48
  %800 = vst [vmem:[%s799] sm:$0xff] %v783
  %801 = vst [vmem:[%s799 + $0x8] sm:$0xff] %v798
  %804 = vrot.lane.b32.xlu0 %v360, 96
  %v805 = vpop.permute.xlu0 %804
  %806 = vrot.lane.b32.xlu0 %v362, 96
  %v807 = vpop.permute.xlu0 %806
  %810 = vmatpush.msra.mxu0 %v572
  %811 = vmatpush.msra.mxu0 %v572
  %812 = vmatpush.msra.mxu0 %v572
  %813 = vmatpush.msra.mxu0 %v572
  %814 = vmatpush.msra.mxu0 %v572
  %815 = vmatpush.msra.mxu0 %v572
  %816 = vmatpush.msra.mxu0 %v572
  %817 = vmatpush.msra.mxu0 %v572
  %818 = vmatpush.msra.mxu0 %v572
  %819 = vmatpush.msra.mxu0 %v572
  %820 = vmatpush.msra.mxu0 %v572
  %821 = vmatpush.msra.mxu0 %v572
  %822 = vmatpush.msra.mxu0 %v572
  %823 = vmatpush.msra.mxu0 %v572
  %824 = vmatpush.msra.mxu0 %v807
  %825 = vmatpush.msra.mxu0 %v805
  %826 = vmatmul.f32.gmra.mxu0 %v783
  %v827 = vpop.f32.mrf.mxu0
  %v828 = vadd.f32 0.0, %v827
  %829 = vmatmul.f32.gmra.mxu0 %v798
  %v830 = vpop.f32.mrf.mxu0
  %v831 = vadd.f32 0.0, %v830
  %832 = vdwg.mxu0
  %835 = vrot.lane.b32.xlu0 %v828, 32
  %v836 = vpop.permute.xlu0 %835
  %837 = vrot.lane.b32.xlu0 %v831, 32
  %v838 = vpop.permute.xlu0 %837
  %v841 = vsel %vm91, %v711, %v836
  %v842 = vsel %vm91, %v714, %v838
  %v843 = vld [vmem:[%s8] sm:$0x1]
  %v845 = vperm.slane %v843, 0
  %v847 = vadd.f32 %v207, %v845
  %v848 = vadd.f32 %v210, %v845
  %v849 = vadd.f32 %v213, %v845
  %v850 = vadd.f32 %v216, %v845
  %v851 = vpack.c.bf16 %v608, %v607
  %v852 = vpack.c.bf16 %v842, %v841
  %v853 = vld [vmem:[%s7] sm:$0xf]
  %v854 = vld [vmem:[%s7 + $0x4] sm:$0xf]
  %v855 = vld [vmem:[%s7 + $0x8] sm:$0xf]
  %v856 = vld [vmem:[%s7 + $0xc] sm:$0xf]
  %v857 = vld [vmem:[%s7 + $0x10] sm:$0xf]
  %v858 = vld [vmem:[%s7 + $0x14] sm:$0xf]
  %v859 = vld [vmem:[%s7 + $0x18] sm:$0xf]
  %v860 = vld [vmem:[%s7 + $0x1c] sm:$0xf]
  %v869 = vunpack.c.l.b16 %v853
  %v870 = vunpack.c.l.b16 %v854
  %v871 = vunpack.c.l.b16 %v855
  %v872 = vunpack.c.l.b16 %v856
  %v873 = vunpack.c.l.b16 %v857
  %v874 = vunpack.c.l.b16 %v858
  %v875 = vunpack.c.l.b16 %v859
  %v876 = vunpack.c.l.b16 %v860
  %v877 = vpack.c.b16 %v870, %v869
  %v878 = vpack.c.b16 %v872, %v871
  %v879 = vpack.c.b16 %v874, %v873
  %v880 = vpack.c.b16 %v876, %v875
  %vm885 = vcmask 523264
  %v887 = vsel %vm885, %v851, 0
  %v890 = vsel %vm885, %v852, 0
  %892 = vmatpush.bf16.msra.mxu0 0
  %893 = vmatpush.bf16.msra.mxu0 0
  %894 = vmatpush.bf16.msra.mxu0 0
  %895 = vmatpush.bf16.msra.mxu0 0
  %896 = vmatpush.bf16.msra.mxu0 %v880
  %897 = vmatpush.bf16.msra.mxu0 %v879
  %898 = vmatpush.bf16.msra.mxu0 %v878
  %899 = vmatpush.bf16.msra.mxu0 %v877
  %900 = vmatmul.bf16.gmra.mxu0 %v887
  %v901 = vpop.f32.mrf.mxu0
  %v902 = vadd.f32 0.0, %v901
  %v903 = vpop.f32.mrf.mxu0
  %v904 = vadd.f32 0.0, %v903
  %905 = vmatmul.bf16.gmra.mxu0 %v890
  %v906 = vpop.f32.mrf.mxu0
  %v907 = vadd.f32 0.0, %v906
  %v908 = vpop.f32.mrf.mxu0
  %v909 = vadd.f32 0.0, %v908
  %910 = vdwg.mxu0
  %v911 = vadd.f32 %v847, %v902
  %v912 = vadd.f32 %v848, %v904
  %v913 = vadd.f32 %v849, %v907
  %v914 = vadd.f32 %v850, %v909
  %915 = vadd.xlane.f32.xlu0 %v911
  %v916 = vpop.xlane.xlu0 %915
  %917 = vadd.xlane.f32.xlu0 %v912
  %v918 = vpop.xlane.xlu0 %917
  %919 = vadd.xlane.f32.xlu0 %v913
  %v920 = vpop.xlane.xlu0 %919
  %921 = vadd.xlane.f32.xlu0 %v914
  %v922 = vpop.xlane.xlu0 %921
  %v923 = vrcp.pop 128.0
  %v924 = vmul.f32 128.0, %v923
  %v925 = vsub.f32 1.0, %v924
  %v926 = vmul.f32 %v923, %v925
  %v927 = vadd.f32 %v923, %v926
  %vm928 = vweird.f32 %v923
  %v929 = vsel %vm928, %v923, %v927
  %v930 = vmul.f32 %v916, %v929
  %v931 = vmul.f32 %v918, %v929
  %v932 = vmul.f32 %v920, %v929
  %v933 = vmul.f32 %v922, %v929
  %v934 = vsub.f32 %v911, %v930
  %v935 = vsub.f32 %v912, %v931
  %v936 = vsub.f32 %v913, %v932
  %v937 = vsub.f32 %v914, %v933
  %v938 = vmul.f32 %v934, %v934
  %v939 = vmul.f32 %v935, %v935
  %v940 = vmul.f32 %v936, %v936
  %v941 = vmul.f32 %v937, %v937
  %942 = vadd.xlane.f32.xlu0 %v938
  %v943 = vpop.xlane.xlu0 %942
  %944 = vadd.xlane.f32.xlu0 %v939
  %v945 = vpop.xlane.xlu0 %944
  %946 = vadd.xlane.f32.xlu0 %v940
  %v947 = vpop.xlane.xlu0 %946
  %948 = vadd.xlane.f32.xlu0 %v941
  %v949 = vpop.xlane.xlu0 %948
  %v950 = vmul.f32 %v943, %v929
  %v951 = vmul.f32 %v945, %v929
  %v952 = vmul.f32 %v947, %v929
  %v953 = vmul.f32 %v949, %v929
  %v954 = vadd.f32 %v950, 1e-05
  %v955 = vadd.f32 %v951, 1e-05
  %v956 = vadd.f32 %v952, 1e-05
  %v957 = vadd.f32 %v953, 1e-05
  %v958 = vrsqrt.pop %v954
  %v959 = vmul.f32 %v958, %v954
  %v960 = vmul.f32 %v959, %v958
  %v961 = vmul.f32 0.5, %v960
  %v962 = vsub.f32 1.5, %v961
  %v963 = vmul.f32 %v958, %v962
  %vm964 = vweird.f32 %v954
  %vm965 = vweird.f32 %v958
  %vm966 = vmor %vm964, %vm965
  %v967 = vsel %vm966, %v958, %v963
  %v968 = vrsqrt.pop %v955
  %v969 = vmul.f32 %v968, %v955
  %v970 = vmul.f32 %v969, %v968
  %v971 = vmul.f32 0.5, %v970
  %v972 = vsub.f32 1.5, %v971
  %v973 = vmul.f32 %v968, %v972
  %vm974 = vweird.f32 %v955
  %vm975 = vweird.f32 %v968
  %vm976 = vmor %vm974, %vm975
  %v977 = vsel %vm976, %v968, %v973
  %v978 = vrsqrt.pop %v956
  %v979 = vmul.f32 %v978, %v956
  %v980 = vmul.f32 %v979, %v978
  %v981 = vmul.f32 0.5, %v980
  %v982 = vsub.f32 1.5, %v981
  %v983 = vmul.f32 %v978, %v982
  %vm984 = vweird.f32 %v956
  %vm985 = vweird.f32 %v978
  %vm986 = vmor %vm984, %vm985
  %v987 = vsel %vm986, %v978, %v983
  %v988 = vrsqrt.pop %v957
  %v989 = vmul.f32 %v988, %v957
  %v990 = vmul.f32 %v989, %v988
  %v991 = vmul.f32 0.5, %v990
  %v992 = vsub.f32 1.5, %v991
  %v993 = vmul.f32 %v988, %v992
  %vm994 = vweird.f32 %v957
  %vm995 = vweird.f32 %v988
  %vm996 = vmor %vm994, %vm995
  %v997 = vsel %vm996, %v988, %v993
  %v998 = vmul.f32 %v934, %v967
  %v999 = vmul.f32 %v935, %v977
  %v1000 = vmul.f32 %v936, %v987
  %v1001 = vmul.f32 %v937, %v997
  %v1002 = vpack.c.bf16 %v999, %v998
  %v1003 = vpack.c.bf16 %v1001, %v1000
  %v1004 = vld [vmem:[%s9] sm:$0xff]
  %v1005 = vld [vmem:[%s9 + $0x8] sm:$0xff]
  %v1006 = vld [vmem:[%s9 + $0x10] sm:$0xff]
  %v1007 = vld [vmem:[%s9 + $0x18] sm:$0xff]
  %v1008 = vld [vmem:[%s9 + $0x20] sm:$0xff]
  %v1009 = vld [vmem:[%s9 + $0x28] sm:$0xff]
  %v1010 = vld [vmem:[%s9 + $0x30] sm:$0xff]
  %v1011 = vld [vmem:[%s9 + $0x38] sm:$0xff]
  %v1012 = vld [vmem:[%s9 + $0x40] sm:$0xff]
  %v1013 = vld [vmem:[%s9 + $0x48] sm:$0xff]
  %v1014 = vld [vmem:[%s9 + $0x50] sm:$0xff]
  %v1015 = vld [vmem:[%s9 + $0x58] sm:$0xff]
  %v1016 = vld [vmem:[%s9 + $0x60] sm:$0xff]
  %v1017 = vld [vmem:[%s9 + $0x68] sm:$0xff]
  %v1018 = vld [vmem:[%s9 + $0x70] sm:$0xff]
  %v1019 = vld [vmem:[%s9 + $0x78] sm:$0xff]
  %v1020 = vld [vmem:[%s10] sm:$0x3]
  %v1022 = vperm.slane %v1020, 0
  %v1023 = vperm.slane %v1020, 1
  %v1042 = vunpack.c.l.b16 %v1004
  %v1043 = vunpack.c.h.b16 %v1004
  %v1044 = vunpack.c.l.b16 %v1005
  %v1045 = vunpack.c.h.b16 %v1005
  %v1046 = vunpack.c.l.b16 %v1006
  %v1047 = vunpack.c.h.b16 %v1006
  %v1048 = vunpack.c.l.b16 %v1007
  %v1049 = vunpack.c.h.b16 %v1007
  %v1050 = vunpack.c.l.b16 %v1008
  %v1051 = vunpack.c.h.b16 %v1008
  %v1052 = vunpack.c.l.b16 %v1009
  %v1053 = vunpack.c.h.b16 %v1009
  %v1054 = vunpack.c.l.b16 %v1010
  %v1055 = vunpack.c.h.b16 %v1010
  %v1056 = vunpack.c.l.b16 %v1011
  %v1057 = vunpack.c.h.b16 %v1011
  %v1058 = vunpack.c.l.b16 %v1012
  %v1059 = vunpack.c.h.b16 %v1012
  %v1060 = vunpack.c.l.b16 %v1013
  %v1061 = vunpack.c.h.b16 %v1013
  %v1062 = vunpack.c.l.b16 %v1014
  %v1063 = vunpack.c.h.b16 %v1014
  %v1064 = vunpack.c.l.b16 %v1015
  %v1065 = vunpack.c.h.b16 %v1015
  %v1066 = vunpack.c.l.b16 %v1016
  %v1067 = vunpack.c.h.b16 %v1016
  %v1068 = vunpack.c.l.b16 %v1017
  %v1069 = vunpack.c.h.b16 %v1017
  %v1070 = vunpack.c.l.b16 %v1018
  %v1071 = vunpack.c.h.b16 %v1018
  %v1072 = vunpack.c.l.b16 %v1019
  %v1073 = vunpack.c.h.b16 %v1019
  %v1074 = vpack.c.b16 %v1044, %v1042
  %v1075 = vpack.c.b16 %v1045, %v1043
  %v1076 = vpack.c.b16 %v1048, %v1046
  %v1077 = vpack.c.b16 %v1049, %v1047
  %v1078 = vpack.c.b16 %v1052, %v1050
  %v1079 = vpack.c.b16 %v1053, %v1051
  %v1080 = vpack.c.b16 %v1056, %v1054
  %v1081 = vpack.c.b16 %v1057, %v1055
  %v1082 = vpack.c.b16 %v1060, %v1058
  %v1083 = vpack.c.b16 %v1061, %v1059
  %v1084 = vpack.c.b16 %v1064, %v1062
  %v1085 = vpack.c.b16 %v1065, %v1063
  %v1086 = vpack.c.b16 %v1068, %v1066
  %v1087 = vpack.c.b16 %v1069, %v1067
  %v1088 = vpack.c.b16 %v1072, %v1070
  %v1089 = vpack.c.b16 %v1073, %v1071
  %1106 = vmatpush.bf16.msra.mxu0 %v1088
  %1107 = vmatpush.bf16.msra.mxu0 %v1086
  %1108 = vmatpush.bf16.msra.mxu0 %v1084
  %1109 = vmatpush.bf16.msra.mxu0 %v1082
  %1110 = vmatpush.bf16.msra.mxu0 %v1080
  %1111 = vmatpush.bf16.msra.mxu0 %v1078
  %1112 = vmatpush.bf16.msra.mxu0 %v1076
  %1113 = vmatpush.bf16.msra.mxu0 %v1074
  %1114 = vmatmul.bf16.gmra.mxu0 %v1002
  %v1115 = vpop.f32.mrf.mxu0
  %v1116 = vadd.f32 %v1022, %v1115
  %v1117 = vpop.f32.mrf.mxu0
  %v1118 = vadd.f32 %v1022, %v1117
  %1119 = vmatmul.bf16.gmra.mxu0 %v1003
  %v1120 = vpop.f32.mrf.mxu0
  %v1121 = vadd.f32 %v1022, %v1120
  %v1122 = vpop.f32.mrf.mxu0
  %v1123 = vadd.f32 %v1022, %v1122
  %1124 = vdwg.mxu0
  %1125 = vmatpush.bf16.msra.mxu0 %v1089
  %1126 = vmatpush.bf16.msra.mxu0 %v1087
  %1127 = vmatpush.bf16.msra.mxu0 %v1085
  %1128 = vmatpush.bf16.msra.mxu0 %v1083
  %1129 = vmatpush.bf16.msra.mxu0 %v1081
  %1130 = vmatpush.bf16.msra.mxu0 %v1079
  %1131 = vmatpush.bf16.msra.mxu0 %v1077
  %1132 = vmatpush.bf16.msra.mxu0 %v1075
  %1133 = vmatmul.bf16.gmra.mxu0 %v1002
  %v1134 = vpop.f32.mrf.mxu0
  %v1135 = vadd.f32 %v1023, %v1134
  %v1136 = vpop.f32.mrf.mxu0
  %v1137 = vadd.f32 %v1023, %v1136
  %1138 = vmatmul.bf16.gmra.mxu0 %v1003
  %v1139 = vpop.f32.mrf.mxu0
  %v1140 = vadd.f32 %v1023, %v1139
  %v1141 = vpop.f32.mrf.mxu0
  %v1142 = vadd.f32 %v1023, %v1141
  %1143 = vdwg.mxu0
  %v1144 = vmax.f32 %v1116, 0.0
  %v1145 = vmax.f32 %v1135, 0.0
  %v1146 = vmax.f32 %v1118, 0.0
  %v1147 = vmax.f32 %v1137, 0.0
  %v1148 = vmax.f32 %v1121, 0.0
  %v1149 = vmax.f32 %v1140, 0.0
  %v1150 = vmax.f32 %v1123, 0.0
  %v1151 = vmax.f32 %v1142, 0.0
  %v1152 = vpack.c.bf16 %v1146, %v1144
  %v1153 = vpack.c.bf16 %v1147, %v1145
  %v1154 = vpack.c.bf16 %v1150, %v1148
  %v1155 = vpack.c.bf16 %v1151, %v1149
  %v1156 = vld [vmem:[%s11] sm:$0xf]
  %v1157 = vld [vmem:[%s11 + $0x4] sm:$0xf]
  %v1158 = vld [vmem:[%s11 + $0x8] sm:$0xf]
  %v1159 = vld [vmem:[%s11 + $0xc] sm:$0xf]
  %v1160 = vld [vmem:[%s11 + $0x10] sm:$0xf]
  %v1161 = vld [vmem:[%s11 + $0x14] sm:$0xf]
  %v1162 = vld [vmem:[%s11 + $0x18] sm:$0xf]
  %v1163 = vld [vmem:[%s11 + $0x1c] sm:$0xf]
  %v1164 = vld [vmem:[%s11 + $0x20] sm:$0xf]
  %v1165 = vld [vmem:[%s11 + $0x24] sm:$0xf]
  %v1166 = vld [vmem:[%s11 + $0x28] sm:$0xf]
  %v1167 = vld [vmem:[%s11 + $0x2c] sm:$0xf]
  %v1168 = vld [vmem:[%s11 + $0x30] sm:$0xf]
  %v1169 = vld [vmem:[%s11 + $0x34] sm:$0xf]
  %v1170 = vld [vmem:[%s11 + $0x38] sm:$0xf]
  %v1171 = vld [vmem:[%s11 + $0x3c] sm:$0xf]
  %v1172 = vld [vmem:[%s11 + $0x40] sm:$0xf]
  %v1173 = vld [vmem:[%s11 + $0x44] sm:$0xf]
  %v1174 = vld [vmem:[%s11 + $0x48] sm:$0xf]
  %v1175 = vld [vmem:[%s11 + $0x4c] sm:$0xf]
  %v1176 = vld [vmem:[%s11 + $0x50] sm:$0xf]
  %v1177 = vld [vmem:[%s11 + $0x54] sm:$0xf]
  %v1178 = vld [vmem:[%s11 + $0x58] sm:$0xf]
  %v1179 = vld [vmem:[%s11 + $0x5c] sm:$0xf]
  %v1180 = vld [vmem:[%s11 + $0x60] sm:$0xf]
  %v1181 = vld [vmem:[%s11 + $0x64] sm:$0xf]
  %v1182 = vld [vmem:[%s11 + $0x68] sm:$0xf]
  %v1183 = vld [vmem:[%s11 + $0x6c] sm:$0xf]
  %v1184 = vld [vmem:[%s11 + $0x70] sm:$0xf]
  %v1185 = vld [vmem:[%s11 + $0x74] sm:$0xf]
  %v1186 = vld [vmem:[%s11 + $0x78] sm:$0xf]
  %v1187 = vld [vmem:[%s11 + $0x7c] sm:$0xf]
  %v1188 = vld [vmem:[%s12] sm:$0x1]
  %v1190 = vperm.slane %v1188, 0
  %v1224 = vunpack.c.l.b16 %v1156
  %v1225 = vunpack.c.l.b16 %v1157
  %v1226 = vunpack.c.l.b16 %v1158
  %v1227 = vunpack.c.l.b16 %v1159
  %v1228 = vunpack.c.l.b16 %v1160
  %v1229 = vunpack.c.l.b16 %v1161
  %v1230 = vunpack.c.l.b16 %v1162
  %v1231 = vunpack.c.l.b16 %v1163
  %v1232 = vunpack.c.l.b16 %v1164
  %v1233 = vunpack.c.l.b16 %v1165
  %v1234 = vunpack.c.l.b16 %v1166
  %v1235 = vunpack.c.l.b16 %v1167
  %v1236 = vunpack.c.l.b16 %v1168
  %v1237 = vunpack.c.l.b16 %v1169
  %v1238 = vunpack.c.l.b16 %v1170
  %v1239 = vunpack.c.l.b16 %v1171
  %v1240 = vunpack.c.l.b16 %v1172
  %v1241 = vunpack.c.l.b16 %v1173
  %v1242 = vunpack.c.l.b16 %v1174
  %v1243 = vunpack.c.l.b16 %v1175
  %v1244 = vunpack.c.l.b16 %v1176
  %v1245 = vunpack.c.l.b16 %v1177
  %v1246 = vunpack.c.l.b16 %v1178
  %v1247 = vunpack.c.l.b16 %v1179
  %v1248 = vunpack.c.l.b16 %v1180
  %v1249 = vunpack.c.l.b16 %v1181
  %v1250 = vunpack.c.l.b16 %v1182
  %v1251 = vunpack.c.l.b16 %v1183
  %v1252 = vunpack.c.l.b16 %v1184
  %v1253 = vunpack.c.l.b16 %v1185
  %v1254 = vunpack.c.l.b16 %v1186
  %v1255 = vunpack.c.l.b16 %v1187
  %v1256 = vpack.c.b16 %v1225, %v1224
  %v1257 = vpack.c.b16 %v1227, %v1226
  %v1258 = vpack.c.b16 %v1229, %v1228
  %v1259 = vpack.c.b16 %v1231, %v1230
  %v1260 = vpack.c.b16 %v1233, %v1232
  %v1261 = vpack.c.b16 %v1235, %v1234
  %v1262 = vpack.c.b16 %v1237, %v1236
  %v1263 = vpack.c.b16 %v1239, %v1238
  %v1264 = vpack.c.b16 %v1241, %v1240
  %v1265 = vpack.c.b16 %v1243, %v1242
  %v1266 = vpack.c.b16 %v1245, %v1244
  %v1267 = vpack.c.b16 %v1247, %v1246
  %v1268 = vpack.c.b16 %v1249, %v1248
  %v1269 = vpack.c.b16 %v1251, %v1250
  %v1270 = vpack.c.b16 %v1253, %v1252
  %v1271 = vpack.c.b16 %v1255, %v1254
  %1288 = vmatpush.bf16.msra.mxu0 %v1263
  %1289 = vmatpush.bf16.msra.mxu0 %v1262
  %1290 = vmatpush.bf16.msra.mxu0 %v1261
  %1291 = vmatpush.bf16.msra.mxu0 %v1260
  %1292 = vmatpush.bf16.msra.mxu0 %v1259
  %1293 = vmatpush.bf16.msra.mxu0 %v1258
  %1294 = vmatpush.bf16.msra.mxu0 %v1257
  %1295 = vmatpush.bf16.msra.mxu0 %v1256
  %1296 = vmatmul.bf16.gmra.mxu0 %v1152
  %v1297 = vpop.f32.mrf.mxu0
  %v1298 = vadd.f32 %v1190, %v1297
  %v1299 = vpop.f32.mrf.mxu0
  %v1300 = vadd.f32 %v1190, %v1299
  %1301 = vmatmul.bf16.gmra.mxu0 %v1154
  %v1302 = vpop.f32.mrf.mxu0
  %v1303 = vadd.f32 %v1190, %v1302
  %v1304 = vpop.f32.mrf.mxu0
  %v1305 = vadd.f32 %v1190, %v1304
  %1306 = vdwg.mxu0
  %1307 = vmatpush.bf16.msra.mxu0 %v1271
  %1308 = vmatpush.bf16.msra.mxu0 %v1270
  %1309 = vmatpush.bf16.msra.mxu0 %v1269
  %1310 = vmatpush.bf16.msra.mxu0 %v1268
  %1311 = vmatpush.bf16.msra.mxu0 %v1267
  %1312 = vmatpush.bf16.msra.mxu0 %v1266
  %1313 = vmatpush.bf16.msra.mxu0 %v1265
  %1314 = vmatpush.bf16.msra.mxu0 %v1264
  %1315 = vmatmul.bf16.gmra.mxu0 %v1153
  %v1316 = vpop.f32.mrf.mxu0
  %v1317 = vadd.f32 %v1298, %v1316
  %v1318 = vpop.f32.mrf.mxu0
  %v1319 = vadd.f32 %v1300, %v1318
  %1320 = vmatmul.bf16.gmra.mxu0 %v1155
  %v1321 = vpop.f32.mrf.mxu0
  %v1322 = vadd.f32 %v1303, %v1321
  %v1323 = vpop.f32.mrf.mxu0
  %v1324 = vadd.f32 %v1305, %v1323
  %1325 = vdwg.mxu0
  %v1326 = vadd.f32 %v1317, %v998
  %v1327 = vadd.f32 %v1319, %v999
  %v1328 = vadd.f32 %v1322, %v1000
  %v1329 = vadd.f32 %v1324, %v1001
  %1330 = vadd.xlane.f32.xlu0 %v1326
  %v1331 = vpop.xlane.xlu0 %1330
  %1332 = vadd.xlane.f32.xlu0 %v1327
  %v1333 = vpop.xlane.xlu0 %1332
  %1334 = vadd.xlane.f32.xlu0 %v1328
  %v1335 = vpop.xlane.xlu0 %1334
  %1336 = vadd.xlane.f32.xlu0 %v1329
  %v1337 = vpop.xlane.xlu0 %1336
  %v1338 = vmul.f32 %v1331, %v929
  %v1339 = vmul.f32 %v1333, %v929
  %v1340 = vmul.f32 %v1335, %v929
  %v1341 = vmul.f32 %v1337, %v929
  %v1342 = vsub.f32 %v1326, %v1338
  %v1343 = vsub.f32 %v1327, %v1339
  %v1344 = vsub.f32 %v1328, %v1340
  %v1345 = vsub.f32 %v1329, %v1341
  %v1346 = vmul.f32 %v1342, %v1342
  %v1347 = vmul.f32 %v1343, %v1343
  %v1348 = vmul.f32 %v1344, %v1344
  %v1349 = vmul.f32 %v1345, %v1345
  %1350 = vadd.xlane.f32.xlu0 %v1346
  %v1351 = vpop.xlane.xlu0 %1350
  %1352 = vadd.xlane.f32.xlu0 %v1347
  %v1353 = vpop.xlane.xlu0 %1352
  %1354 = vadd.xlane.f32.xlu0 %v1348
  %v1355 = vpop.xlane.xlu0 %1354
  %1356 = vadd.xlane.f32.xlu0 %v1349
  %v1357 = vpop.xlane.xlu0 %1356
  %v1358 = vmul.f32 %v1351, %v929
  %v1359 = vmul.f32 %v1353, %v929
  %v1360 = vmul.f32 %v1355, %v929
  %v1361 = vmul.f32 %v1357, %v929
  %v1362 = vadd.f32 %v1358, 1e-05
  %v1363 = vadd.f32 %v1359, 1e-05
  %v1364 = vadd.f32 %v1360, 1e-05
  %v1365 = vadd.f32 %v1361, 1e-05
  %v1366 = vrsqrt.pop %v1362
  %v1367 = vmul.f32 %v1366, %v1362
  %v1368 = vmul.f32 %v1367, %v1366
  %v1369 = vmul.f32 0.5, %v1368
  %v1370 = vsub.f32 1.5, %v1369
  %v1371 = vmul.f32 %v1366, %v1370
  %vm1372 = vweird.f32 %v1362
  %vm1373 = vweird.f32 %v1366
  %vm1374 = vmor %vm1372, %vm1373
  %v1375 = vsel %vm1374, %v1366, %v1371
  %v1376 = vrsqrt.pop %v1363
  %v1377 = vmul.f32 %v1376, %v1363
  %v1378 = vmul.f32 %v1377, %v1376
  %v1379 = vmul.f32 0.5, %v1378
  %v1380 = vsub.f32 1.5, %v1379
  %v1381 = vmul.f32 %v1376, %v1380
  %vm1382 = vweird.f32 %v1363
  %vm1383 = vweird.f32 %v1376
  %vm1384 = vmor %vm1382, %vm1383
  %v1385 = vsel %vm1384, %v1376, %v1381
  %v1386 = vrsqrt.pop %v1364
  %v1387 = vmul.f32 %v1386, %v1364
  %v1388 = vmul.f32 %v1387, %v1386
  %v1389 = vmul.f32 0.5, %v1388
  %v1390 = vsub.f32 1.5, %v1389
  %v1391 = vmul.f32 %v1386, %v1390
  %vm1392 = vweird.f32 %v1364
  %vm1393 = vweird.f32 %v1386
  %vm1394 = vmor %vm1392, %vm1393
  %v1395 = vsel %vm1394, %v1386, %v1391
  %v1396 = vrsqrt.pop %v1365
  %v1397 = vmul.f32 %v1396, %v1365
  %v1398 = vmul.f32 %v1397, %v1396
  %v1399 = vmul.f32 0.5, %v1398
  %v1400 = vsub.f32 1.5, %v1399
  %v1401 = vmul.f32 %v1396, %v1400
  %vm1402 = vweird.f32 %v1365
  %vm1403 = vweird.f32 %v1396
  %vm1404 = vmor %vm1402, %vm1403
  %v1405 = vsel %vm1404, %v1396, %v1401
  %v1406 = vmul.f32 %v1342, %v1375
  %v1407 = vmul.f32 %v1343, %v1385
  %v1408 = vmul.f32 %v1344, %v1395
  %v1409 = vmul.f32 %v1345, %v1405
  %1410 = vst [vmem:[%s13] sm:$0xff] %v1406
  %1411 = vst [vmem:[%s13 + $0x8] sm:$0xff] %v1407
  %1412 = vst [vmem:[%s13 + $0x10] sm:$0xff] %v1408
  %1413 = vst [vmem:[%s13 + $0x18] sm:$0xff] %v1409
  // Predicated region
  $region54: #{encoder_decoder_transformer.2} parent=0 // pred_check
    _
  $region55: #{encoder_decoder_transformer.2} parent=0 // pred_check_branch
    %1415 = sbr.rel (0) target = $region57
  $region56: #{encoder_decoder_transformer.2} parent=0 // pred_region
    _
  $region57: #{encoder_decoder_transformer.2} parent=0 // pred_fallthru
    _
  // Predicated region
  $region58: #{encoder_decoder_transformer.2} parent=0 // pred_check
    _
  $region59: #{encoder_decoder_transformer.2} parent=0 // pred_check_branch
    %1417 = sbr.rel (0) target = $region61
  $region60: #{encoder_decoder_transformer.2} parent=0 // pred_region
    _
  $region61: #{encoder_decoder_transformer.2} parent=0 // pred_fallthru
    _
  // Predicated region
  $region62: #{encoder_decoder_transformer.2} parent=0 // pred_check
    _
  $region63: #{encoder_decoder_transformer.2} parent=0 // pred_check_branch
    %1419 = sbr.rel (0) target = $region65
  $region64: #{encoder_decoder_transformer.2} parent=0 // pred_region
    _
  $region65: #{encoder_decoder_transformer.2} parent=0 // pred_fallthru
    _
  // Predicated region
  $region66: #{encoder_decoder_transformer.2} parent=0 // pred_check
    _
  $region67: #{encoder_decoder_transformer.2} parent=0 // pred_check_branch
    %1421 = sbr.rel (0) target = $region69
  $region68: #{encoder_decoder_transformer.2} parent=0 // pred_region
    _
  $region69: #{encoder_decoder_transformer.2} parent=0 // pred_fallthru
    _

// kernel: encoder_decoder_transformer.3
$region0: #{encoder_decoder_transformer.3}
  #allocation0 [shape = 'u32[]', space=smem, size = 0x4, offset = 0x4, fixed_abs, tag = 'smem constant byte address 0x4 - core index']
  #allocation1 [shape = 'u32[72,128]{1,0:T(1,128)}', space=vmem, size = 0x9000, scoped, tag = 'internal scratch']
  %s0 = inlined_call_operand.vmem [shape: s32[2,128], index: 0, kind: input, shape index: {}]
  %s1 = inlined_call_operand.vmem [shape: f32[2,8,64], index: 1, kind: input, shape index: {}]
  %s2 = inlined_call_operand.vmem [shape: f32[2,16,128], index: 2, kind: input, shape index: {}]
  %s3 = inlined_call_operand.vmem [shape: bf16[64,192], index: 3, kind: input, shape index: {}]
  %s4 = inlined_call_operand.vmem [shape: f32[1,192], index: 4, kind: input, shape index: {}]
  %s5 = inlined_call_operand.vmem [shape: bf16[64,64], index: 5, kind: input, shape index: {}]
  %s6 = inlined_call_operand.vmem [shape: f32[1,64], index: 6, kind: input, shape index: {}]
  %s7 = inlined_call_operand.vmem [shape: bf16[64,64], index: 7, kind: input, shape index: {}]
  %s8 = inlined_call_operand.vmem [shape: f32[1,64], index: 8, kind: input, shape index: {}]
  %s9 = inlined_call_operand.vmem [shape: bf16[128,128], index: 9, kind: input, shape index: {}]
  %s10 = inlined_call_operand.vmem [shape: f32[1,128], index: 10, kind: input, shape index: {}]
  %s11 = inlined_call_operand.vmem [shape: bf16[64,64], index: 11, kind: input, shape index: {}]
  %s12 = inlined_call_operand.vmem [shape: f32[1,64], index: 12, kind: input, shape index: {}]
  %s13 = inlined_call_operand.vmem [shape: bf16[64,128], index: 13, kind: input, shape index: {}]
  %s14 = inlined_call_operand.vmem [shape: f32[1,128], index: 14, kind: input, shape index: {}]
  %s15 = inlined_call_operand.vmem [shape: bf16[128,64], index: 15, kind: input, shape index: {}]
  %s16 = inlined_call_operand.vmem [shape: f32[1,64], index: 16, kind: input, shape index: {}]
  %s17 = inlined_call_operand.vmem [shape: bf16[64,128], index: 17, kind: input, shape index: {}]
  %s18 = inlined_call_operand.hbm [shape: f32[2,8,128], index: 18, kind: output, shape index: {0}]
  %s19 = inlined_call_operand.vmem [shape: f32[1,2,2,8,128], index: 19, kind: output, shape index: {1}]
  %s20 = inlined_call_operand.vmem [shape: f32[1,2,2,8,128], index: 20, kind: output, shape index: {2}]
  %21 = xla_tuple %s18, %s19, %s20
  %s22 = sld [smem:[#allocation0]]
  $region98: #{encoder_decoder_transformer.3} parent=0
    _
  %s24 = ssub.s32 1, %s22
  %s25 = scalar_select 0, %s24, %s22
  $region1: #{encoder_decoder_transformer.3} parent=0
    #allocation2 [shape = 'u8[8192]{0}', space=vmem, size = 0x2000, scoped, tag = 'output window, operand 0, single buffered']
    #allocation3 [shape = 's32[1]{0}', space=sflag, size = 0x4, scoped, tag = 'scoped memory for encoder_decoder_transformer.3']
    %26 = vsyncpa [#allocation3], 0
    // Predicated region
    $region2: #{encoder_decoder_transformer.3} parent=1 // pred_check
      _
    $region3: #{encoder_decoder_transformer.3} parent=1 // pred_check_branch
      %28 = sbr.rel (0) target = $region5
    $region4: #{encoder_decoder_transformer.3} parent=1 // pred_region
      _
    $region5: #{encoder_decoder_transformer.3} parent=1 // pred_fallthru
      _
    // Predicated region
    $region6: #{encoder_decoder_transformer.3} parent=1 // pred_check
      _
    $region7: #{encoder_decoder_transformer.3} parent=1 // pred_check_branch
      %30 = sbr.rel (0) target = $region9
    $region8: #{encoder_decoder_transformer.3} parent=1 // pred_region
      _
    $region9: #{encoder_decoder_transformer.3} parent=1 // pred_fallthru
      _
    // Predicated region
    $region10: #{encoder_decoder_transformer.3} parent=1 // pred_check
      _
    $region11: #{encoder_decoder_transformer.3} parent=1 // pred_check_branch
      %32 = sbr.rel (0) target = $region13
    $region12: #{encoder_decoder_transformer.3} parent=1 // pred_region
      _
    $region13: #{encoder_decoder_transformer.3} parent=1 // pred_fallthru
      _
    // Predicated region
    $region14: #{encoder_decoder_transformer.3} parent=1 // pred_check
      _
    $region15: #{encoder_decoder_transformer.3} parent=1 // pred_check_branch
      %34 = sbr.rel (0) target = $region17
    $region16: #{encoder_decoder_transformer.3} parent=1 // pred_region
      _
    $region17: #{encoder_decoder_transformer.3} parent=1 // pred_fallthru
      _
    // Predicated region
    $region18: #{encoder_decoder_transformer.3} parent=1 // pred_check
      _
    $region19: #{encoder_decoder_transformer.3} parent=1 // pred_check_branch
      %36 = sbr.rel (0) target = $region21
    $region20: #{encoder_decoder_transformer.3} parent=1 // pred_region
      _
    $region21: #{encoder_decoder_transformer.3} parent=1 // pred_fallthru
      _
    // Predicated region
    $region22: #{encoder_decoder_transformer.3} parent=1 // pred_check
      _
    $region23: #{encoder_decoder_transformer.3} parent=1 // pred_check_branch
      %38 = sbr.rel (0) target = $region25
    $region24: #{encoder_decoder_transformer.3} parent=1 // pred_region
      _
    $region25: #{encoder_decoder_transformer.3} parent=1 // pred_fallthru
      _
    // Predicated region
    $region26: #{encoder_decoder_transformer.3} parent=1 // pred_check
      _
    $region27: #{encoder_decoder_transformer.3} parent=1 // pred_check_branch
      %40 = sbr.rel (0) target = $region29
    $region28: #{encoder_decoder_transformer.3} parent=1 // pred_region
      _
    $region29: #{encoder_decoder_transformer.3} parent=1 // pred_fallthru
      _
    // Predicated region
    $region30: #{encoder_decoder_transformer.3} parent=1 // pred_check
      _
    $region31: #{encoder_decoder_transformer.3} parent=1 // pred_check_branch
      %42 = sbr.rel (0) target = $region33
    $region32: #{encoder_decoder_transformer.3} parent=1 // pred_region
      _
    $region33: #{encoder_decoder_transformer.3} parent=1 // pred_fallthru
      _
    // Predicated region
    $region34: #{encoder_decoder_transformer.3} parent=1 // pred_check
      _
    $region35: #{encoder_decoder_transformer.3} parent=1 // pred_check_branch
      %44 = sbr.rel (0) target = $region37
    $region36: #{encoder_decoder_transformer.3} parent=1 // pred_region
      _
    $region37: #{encoder_decoder_transformer.3} parent=1 // pred_fallthru
      _
    // Predicated region
    $region38: #{encoder_decoder_transformer.3} parent=1 // pred_check
      _
    $region39: #{encoder_decoder_transformer.3} parent=1 // pred_check_branch
      %46 = sbr.rel (0) target = $region41
    $region40: #{encoder_decoder_transformer.3} parent=1 // pred_region
      _
    $region41: #{encoder_decoder_transformer.3} parent=1 // pred_fallthru
      _
    // Predicated region
    $region42: #{encoder_decoder_transformer.3} parent=1 // pred_check
      _
    $region43: #{encoder_decoder_transformer.3} parent=1 // pred_check_branch
      %48 = sbr.rel (0) target = $region45
    $region44: #{encoder_decoder_transformer.3} parent=1 // pred_region
      _
    $region45: #{encoder_decoder_transformer.3} parent=1 // pred_fallthru
      _
    // Predicated region
    $region46: #{encoder_decoder_transformer.3} parent=1 // pred_check
      _
    $region47: #{encoder_decoder_transformer.3} parent=1 // pred_check_branch
      %50 = sbr.rel (0) target = $region49
    $region48: #{encoder_decoder_transformer.3} parent=1 // pred_region
      _
    $region49: #{encoder_decoder_transformer.3} parent=1 // pred_fallthru
      _
    // Predicated region
    $region50: #{encoder_decoder_transformer.3} parent=1 // pred_check
      _
    $region51: #{encoder_decoder_transformer.3} parent=1 // pred_check_branch
      %52 = sbr.rel (0) target = $region53
    $region52: #{encoder_decoder_transformer.3} parent=1 // pred_region
      _
    $region53: #{encoder_decoder_transformer.3} parent=1 // pred_fallthru
      _
    // Predicated region
    $region54: #{encoder_decoder_transformer.3} parent=1 // pred_check
      _
    $region55: #{encoder_decoder_transformer.3} parent=1 // pred_check_branch
      %54 = sbr.rel (0) target = $region57
    $region56: #{encoder_decoder_transformer.3} parent=1 // pred_region
      _
    $region57: #{encoder_decoder_transformer.3} parent=1 // pred_fallthru
      _
    // Predicated region
    $region58: #{encoder_decoder_transformer.3} parent=1 // pred_check
      _
    $region59: #{encoder_decoder_transformer.3} parent=1 // pred_check_branch
      %56 = sbr.rel (0) target = $region61
    $region60: #{encoder_decoder_transformer.3} parent=1 // pred_region
      _
    $region61: #{encoder_decoder_transformer.3} parent=1 // pred_fallthru
      _
    // Predicated region
    $region62: #{encoder_decoder_transformer.3} parent=1 // pred_check
      _
    $region63: #{encoder_decoder_transformer.3} parent=1 // pred_check_branch
      %58 = sbr.rel (0) target = $region65
    $region64: #{encoder_decoder_transformer.3} parent=1 // pred_region
      _
    $region65: #{encoder_decoder_transformer.3} parent=1 // pred_fallthru
      _
    // Predicated region
    $region66: #{encoder_decoder_transformer.3} parent=1 // pred_check
      _
    $region67: #{encoder_decoder_transformer.3} parent=1 // pred_check_branch
      %60 = sbr.rel (0) target = $region69
    $region68: #{encoder_decoder_transformer.3} parent=1 // pred_region
      _
    $region69: #{encoder_decoder_transformer.3} parent=1 // pred_fallthru
      _
    // Predicated region
    $region70: #{encoder_decoder_transformer.3} parent=1 // pred_check
      _
    $region71: #{encoder_decoder_transformer.3} parent=1 // pred_check_branch
      %62 = sbr.rel (0) target = $region73
    $region72: #{encoder_decoder_transformer.3} parent=1 // pred_region
      _
    $region73: #{encoder_decoder_transformer.3} parent=1 // pred_fallthru
      _
    %v64 = vld [vmem:[%s1] sm:$0xff]
    %v65 = vld [vmem:[%s1 + $0x8] sm:$0xff]
    %v66 = vld [vmem:[%s2] sm:$0xff]
    %v67 = vld [vmem:[%s2 + $0x8] sm:$0xff]
    %v68 = vld [vmem:[%s2 + $0x10] sm:$0xff]
    %v69 = vld [vmem:[%s2 + $0x18] sm:$0xff]
    %v70 = vpack.c.bf16 %v67, %v66
    %v71 = vpack.c.bf16 %v69, %v68
    %v72 = vlaneseq
    %v73 = vand.u32 %v72, 127
    %v74 = vlaneseq
    %v75 = vshrl.u32 %v74, 7
    %vm76 = vcmp.gt.s32.totalorder %v73, %v75
    %v77 = vld [vmem:[%s0] sm:$0x3]
    %vm78 = vcmp.eq.s32.totalorder %v77, 0
    %v79 = vsel %vm78, 1, 0
    %vm80 = vcmp.eq.s32.totalorder %v79, 1
    %v81 = vsel %vm80, 1, 0
    %v82 = vrot.slane %v81, 7
    %vm83 = vcmask 1041409
    %v84 = vsel %vm83, %v82, %v81
    %v85 = vrot.slane %v81, 6
    %vm86 = vcmask 1042434
    %v87 = vsel %vm86, %v85, %v84
    %v88 = vrot.slane %v81, 5
    %vm89 = vcmask 1043459
    %v90 = vsel %vm89, %v88, %v87
    %v91 = vrot.slane %v81, 4
    %vm92 = vcmask 1044484
    %v93 = vsel %vm92, %v91, %v90
    %v94 = vrot.slane %v81, 3
    %vm95 = vcmask 1045509
    %v96 = vsel %vm95, %v94, %v93
    %v97 = vrot.slane %v81, 2
    %vm98 = vcmask 1046534
    %v99 = vsel %vm98, %v97, %v96
    %v100 = vrot.slane %v81, 1
    %vm101 = vcmask 1047559
    %v102 = vsel %vm101, %v100, %v99
    %vm103 = vcmp.ne.s32.totalorder %v102, 0
    %vm104 = vmor %vm76, %vm103
    %v105 = vsel %vm104, -1e+09, 0.0
    %v106 = vsel %vm83, %v81, %v100
    %v107 = vsel %vm86, %v82, %v106
    %v108 = vsel %vm89, %v85, %v107
    %v109 = vsel %vm92, %v88, %v108
    %v110 = vsel %vm95, %v91, %v109
    %v111 = vsel %vm98, %v94, %v110
    %v112 = vsel %vm101, %v97, %v111
    %vm113 = vcmp.ne.s32.totalorder %v112, 0
    %vm114 = vmor %vm76, %vm113
    %v115 = vsel %vm114, -1e+09, 0.0
    %vm116 = vcmp.ge.s32.totalorder %v73, 16
    %v117 = vsel %vm116, -1e+09, 0.0
    %v118 = vpack.c.bf16 %v65, %v64
    %v119 = vld [vmem:[%s3] sm:$0xff]
    %v120 = vld [vmem:[%s3 + $0x8] sm:$0xff]
    %v121 = vld [vmem:[%s3 + $0x10] sm:$0xff]
    %v122 = vld [vmem:[%s3 + $0x18] sm:$0xff]
    %v123 = vld [vmem:[%s3 + $0x20] sm:$0xff]
    %v124 = vld [vmem:[%s3 + $0x28] sm:$0xff]
    %v125 = vld [vmem:[%s3 + $0x30] sm:$0xff]
    %v126 = vld [vmem:[%s3 + $0x38] sm:$0xff]
    %v127 = vld [vmem:[%s4] sm:$0x3]
    %v129 = vperm.slane %v127, 0
    %v130 = vperm.slane %v127, 1
    %v141 = vunpack.c.l.b16 %v119
    %v142 = vunpack.c.h.b16 %v119
    %v143 = vunpack.c.l.b16 %v120
    %v144 = vunpack.c.h.b16 %v120
    %v145 = vunpack.c.l.b16 %v121
    %v146 = vunpack.c.h.b16 %v121
    %v147 = vunpack.c.l.b16 %v122
    %v148 = vunpack.c.h.b16 %v122
    %v149 = vunpack.c.l.b16 %v123
    %v150 = vunpack.c.h.b16 %v123
    %v151 = vunpack.c.l.b16 %v124
    %v152 = vunpack.c.h.b16 %v124
    %v153 = vunpack.c.l.b16 %v125
    %v154 = vunpack.c.h.b16 %v125
    %v155 = vunpack.c.l.b16 %v126
    %v156 = vunpack.c.h.b16 %v126
    %v157 = vpack.c.b16 %v143, %v141
    %v158 = vpack.c.b16 %v144, %v142
    %v159 = vpack.c.b16 %v147, %v145
    %v160 = vpack.c.b16 %v148, %v146
    %v161 = vpack.c.b16 %v151, %v149
    %v162 = vpack.c.b16 %v152, %v150
    %v163 = vpack.c.b16 %v155, %v153
    %v164 = vpack.c.b16 %v156, %v154
    %vm173 = vcmask 523264
    %v175 = vsel %vm173, %v118, 0
    %177 = vmatpush.bf16.msra.mxu0 0
    %178 = vmatpush.bf16.msra.mxu0 0
    %179 = vmatpush.bf16.msra.mxu0 0
    %180 = vmatpush.bf16.msra.mxu0 0
    %181 = vmatpush.bf16.msra.mxu0 %v163
    %182 = vmatpush.bf16.msra.mxu0 %v161
    %183 = vmatpush.bf16.msra.mxu0 %v159
    %184 = vmatpush.bf16.msra.mxu0 %v157
    %185 = vmatmul.bf16.gmra.mxu0 %v175
    %v186 = vpop.f32.mrf.mxu0
    %v187 = vadd.f32 %v129, %v186
    %v188 = vpop.f32.mrf.mxu0
    %v189 = vadd.f32 %v129, %v188
    %190 = vdwg.mxu0
    %191 = vmatpush.bf16.msra.mxu0 0
    %192 = vmatpush.bf16.msra.mxu0 0
    %193 = vmatpush.bf16.msra.mxu0 0
    %194 = vmatpush.bf16.msra.mxu0 0
    %195 = vmatpush.bf16.msra.mxu0 %v164
    %196 = vmatpush.bf16.msra.mxu0 %v162
    %197 = vmatpush.bf16.msra.mxu0 %v160
    %198 = vmatpush.bf16.msra.mxu0 %v158
    %199 = vmatmul.bf16.gmra.mxu0 %v175
    %v200 = vpop.f32.mrf.mxu0
    %v201 = vadd.f32 %v130, %v200
    %v202 = vpop.f32.mrf.mxu0
    %v203 = vadd.f32 %v130, %v202
    %204 = vdwg.mxu0
    %207 = vrot.lane.b32.xlu0 %v187, 64
    %v208 = vpop.permute.xlu0 %207
    %209 = vrot.lane.b32.xlu0 0.0, 64
    %v210 = vpop.permute.xlu0 %209
    %vm211 = vcmask 261120
    %v212 = vsel %vm211, %v187, 0
    %v214 = vsel %vm211, %v208, 0
    %v216 = vsel %vm211, %v210, 0
    %218 = vmatpush.xpose.msra.mxu0 %v216
    %219 = vmatpush.xpose.msra.mxu0 %v216
    %220 = vmatpush.xpose.msra.mxu0 %v216
    %221 = vmatpush.xpose.msra.mxu0 %v216
    %222 = vmatpush.xpose.msra.mxu0 %v216
    %223 = vmatpush.xpose.msra.mxu0 %v216
    %224 = vmatpush.xpose.msra.mxu0 %v216
    %225 = vmatpush.xpose.msra.mxu0 %v216
    %226 = vmatpush.xpose.msra.mxu0 %v216
    %227 = vmatpush.xpose.msra.mxu0 %v216
    %228 = vmatpush.xpose.msra.mxu0 %v216
    %229 = vmatpush.xpose.msra.mxu0 %v216
    %230 = vmatpush.xpose.msra.mxu0 %v216
    %231 = vmatpush.xpose.msra.mxu0 %v216
    %232 = vmatpush.xpose.msra.mxu0 %v216
    %233 = vmatpush.xpose.msra.mxu0 %v214
    %234 = vmatmul.f32.gmra.mxu0 %v212
    %v235 = vpop.f32.mrf.mxu0
    %v236 = vadd.f32 %v105, %v235
    %237 = vdwg.mxu0
    %238 = vmax.xlane.f32.xlu0 %v236
    %v239 = vpop.xlane.xlu0 %238
    %v240 = vsub.f32 %v236, %v239
    %v241 = vmul.f32 %v240, 1.442695
    %v242 = vpow.pop %v241
    %243 = vadd.xlane.f32.xlu0 %v242
    %v244 = vpop.xlane.xlu0 %243
    %v245 = vrcp.pop %v244
    %v246 = vmul.f32 %v244, %v245
    %v247 = vsub.f32 1.0, %v246
    %v248 = vmul.f32 %v245, %v247
    %v249 = vadd.f32 %v245, %v248
    %vm250 = vweird.f32 %v244
    %vm251 = vweird.f32 %v245
    %vm252 = vmor %vm250, %vm251
    %v253 = vsel %vm252, %v245, %v249
    %v254 = vand.u32 2147483647, %v244
    %vm255 = vcmp.eq.f32.partialorder %v254, 8.507059e+37
    %v256 = vand.u32 %v244, 2147483648
    %v257 = vor.u32 1.1754944e-38, %v256
    %v258 = vsel %vm255, %v257, %v253
    %v259 = vmul.f32 %v242, %v258
    %260 = vst [vmem:[%s19] sm:$0xff] %v259
    %261 = vmatpush.msra.mxu0 0.0
    %262 = vmatpush.msra.mxu0 0.0
    %263 = vmatpush.msra.mxu0 0.0
    %264 = vmatpush.msra.mxu0 0.0
    %265 = vmatpush.msra.mxu0 0.0
    %266 = vmatpush.msra.mxu0 0.0
    %267 = vmatpush.msra.mxu0 0.0
    %268 = vmatpush.msra.mxu0 0.0
    %269 = vmatpush.msra.mxu0 0.0
    %270 = vmatpush.msra.mxu0 0.0
    %271 = vmatpush.msra.mxu0 0.0
    %272 = vmatpush.msra.mxu0 0.0
    %273 = vmatpush.msra.mxu0 0.0
    %274 = vmatpush.msra.mxu0 0.0
    %275 = vmatpush.msra.mxu0 0.0
    %276 = vmatpush.msra.mxu0 %v201
    %277 = vmatmul.f32.gmra.mxu0 %v259
    %v278 = vpop.f32.mrf.mxu0
    %v279 = vadd.f32 0.0, %v278
    %280 = vdwg.mxu0
    %281 = vrot.lane.b32.xlu0 %v187, 96
    %v282 = vpop.permute.xlu0 %281
    %283 = vrot.lane.b32.xlu0 %v187, 32
    %v284 = vpop.permute.xlu0 %283
    %285 = vrot.lane.b32.xlu0 0.0, 32
    %v286 = vpop.permute.xlu0 %285
    %v287 = vsel %vm211, %v282, 0
    %v289 = vsel %vm211, %v284, 0
    %v291 = vsel %vm211, %v286, 0
    %293 = vmatpush.xpose.msra.mxu0 %v291
    %294 = vmatpush.xpose.msra.mxu0 %v291
    %295 = vmatpush.xpose.msra.mxu0 %v291
    %296 = vmatpush.xpose.msra.mxu0 %v291
    %297 = vmatpush.xpose.msra.mxu0 %v291
    %298 = vmatpush.xpose.msra.mxu0 %v291
    %299 = vmatpush.xpose.msra.mxu0 %v291
    %300 = vmatpush.xpose.msra.mxu0 %v291
    %301 = vmatpush.xpose.msra.mxu0 %v291
    %302 = vmatpush.xpose.msra.mxu0 %v291
    %303 = vmatpush.xpose.msra.mxu0 %v291
    %304 = vmatpush.xpose.msra.mxu0 %v291
    %305 = vmatpush.xpose.msra.mxu0 %v291
    %306 = vmatpush.xpose.msra.mxu0 %v291
    %307 = vmatpush.xpose.msra.mxu0 %v291
    %308 = vmatpush.xpose.msra.mxu0 %v289
    %309 = vmatmul.f32.gmra.mxu0 %v287
    %v310 = vpop.f32.mrf.mxu0
    %v311 = vadd.f32 %v105, %v310
    %312 = vdwg.mxu0
    %313 = vmax.xlane.f32.xlu0 %v311
    %v314 = vpop.xlane.xlu0 %313
    %v315 = vsub.f32 %v311, %v314
    %v316 = vmul.f32 %v315, 1.442695
    %v317 = vpow.pop %v316
    %318 = vadd.xlane.f32.xlu0 %v317
    %v319 = vpop.xlane.xlu0 %318
    %v320 = vrcp.pop %v319
    %v321 = vmul.f32 %v319, %v320
    %v322 = vsub.f32 1.0, %v321
    %v323 = vmul.f32 %v320, %v322
    %v324 = vadd.f32 %v320, %v323
    %vm325 = vweird.f32 %v319
    %vm326 = vweird.f32 %v320
    %vm327 = vmor %vm325, %vm326
    %v328 = vsel %vm327, %v320, %v324
    %v329 = vand.u32 2147483647, %v319
    %vm330 = vcmp.eq.f32.partialorder %v329, 8.507059e+37
    %v331 = vand.u32 %v319, 2147483648
    %v332 = vor.u32 1.1754944e-38, %v331
    %v333 = vsel %vm330, %v332, %v328
    %v334 = vmul.f32 %v317, %v333
    %s335 = scalar_lea.vmem %s19, 8
    %336 = vst [vmem:[%s335] sm:$0xff] %v334
    %338 = vrot.lane.b32.xlu0 %v201, 96
    %v339 = vpop.permute.xlu0 %338
    %340 = vrot.lane.b32.xlu0 0.0, 96
    %v341 = vpop.permute.xlu0 %340
    %344 = vmatpush.msra.mxu0 %v341
    %345 = vmatpush.msra.mxu0 %v341
    %346 = vmatpush.msra.mxu0 %v341
    %347 = vmatpush.msra.mxu0 %v341
    %348 = vmatpush.msra.mxu0 %v341
    %349 = vmatpush.msra.mxu0 %v341
    %350 = vmatpush.msra.mxu0 %v341
    %351 = vmatpush.msra.mxu0 %v341
    %352 = vmatpush.msra.mxu0 %v341
    %353 = vmatpush.msra.mxu0 %v341
    %354 = vmatpush.msra.mxu0 %v341
    %355 = vmatpush.msra.mxu0 %v341
    %356 = vmatpush.msra.mxu0 %v341
    %357 = vmatpush.msra.mxu0 %v341
    %358 = vmatpush.msra.mxu0 %v341
    %359 = vmatpush.msra.mxu0 %v339
    %360 = vmatmul.f32.gmra.mxu0 %v334
    %v361 = vpop.f32.mrf.mxu0
    %v362 = vadd.f32 0.0, %v361
    %363 = vdwg.mxu0
    %365 = vrot.lane.b32.xlu0 %v362, 32
    %v366 = vpop.permute.xlu0 %365
    %v368 = vsel %vm211, %v279, %v366
    %370 = vrot.lane.b32.xlu0 %v189, 64
    %v371 = vpop.permute.xlu0 %370
    %v372 = vsel %vm211, %v189, 0
    %v374 = vsel %vm211, %v371, 0
    %376 = vmatpush.xpose.msra.mxu0 %v216
    %377 = vmatpush.xpose.msra.mxu0 %v216
    %378 = vmatpush.xpose.msra.mxu0 %v216
    %379 = vmatpush.xpose.msra.mxu0 %v216
    %380 = vmatpush.xpose.msra.mxu0 %v216
    %381 = vmatpush.xpose.msra.mxu0 %v216
    %382 = vmatpush.xpose.msra.mxu0 %v216
    %383 = vmatpush.xpose.msra.mxu0 %v216
    %384 = vmatpush.xpose.msra.mxu0 %v216
    %385 = vmatpush.xpose.msra.mxu0 %v216
    %386 = vmatpush.xpose.msra.mxu0 %v216
    %387 = vmatpush.xpose.msra.mxu0 %v216
    %388 = vmatpush.xpose.msra.mxu0 %v216
    %389 = vmatpush.xpose.msra.mxu0 %v216
    %390 = vmatpush.xpose.msra.mxu0 %v216
    %391 = vmatpush.xpose.msra.mxu0 %v374
    %392 = vmatmul.f32.gmra.mxu0 %v372
    %v393 = vpop.f32.mrf.mxu0
    %v394 = vadd.f32 %v115, %v393
    %395 = vdwg.mxu0
    %396 = vmax.xlane.f32.xlu0 %v394
    %v397 = vpop.xlane.xlu0 %396
    %v398 = vsub.f32 %v394, %v397
    %v399 = vmul.f32 %v398, 1.442695
    %v400 = vpow.pop %v399
    %401 = vadd.xlane.f32.xlu0 %v400
    %v402 = vpop.xlane.xlu0 %401
    %v403 = vrcp.pop %v402
    %v404 = vmul.f32 %v402, %v403
    %v405 = vsub.f32 1.0, %v404
    %v406 = vmul.f32 %v403, %v405
    %v407 = vadd.f32 %v403, %v406
    %vm408 = vweird.f32 %v402
    %vm409 = vweird.f32 %v403
    %vm410 = vmor %vm408, %vm409
    %v411 = vsel %vm410, %v403, %v407
    %v412 = vand.u32 2147483647, %v402
    %vm413 = vcmp.eq.f32.partialorder %v412, 8.507059e+37
    %v414 = vand.u32 %v402, 2147483648
    %v415 = vor.u32 1.1754944e-38, %v414
    %v416 = vsel %vm413, %v415, %v411
    %v417 = vmul.f32 %v400, %v416
    %s418 = scalar_lea.vmem %s19, 16
    %419 = vst [vmem:[%s418] sm:$0xff] %v417
    %420 = vmatpush.msra.mxu0 0.0
    %421 = vmatpush.msra.mxu0 0.0
    %422 = vmatpush.msra.mxu0 0.0
    %423 = vmatpush.msra.mxu0 0.0
    %424 = vmatpush.msra.mxu0 0.0
    %425 = vmatpush.msra.mxu0 0.0
    %426 = vmatpush.msra.mxu0 0.0
    %427 = vmatpush.msra.mxu0 0.0
    %428 = vmatpush.msra.mxu0 0.0
    %429 = vmatpush.msra.mxu0 0.0
    %430 = vmatpush.msra.mxu0 0.0
    %431 = vmatpush.msra.mxu0 0.0
    %432 = vmatpush.msra.mxu0 0.0
    %433 = vmatpush.msra.mxu0 0.0
    %434 = vmatpush.msra.mxu0 0.0
    %435 = vmatpush.msra.mxu0 %v203
    %436 = vmatmul.f32.gmra.mxu0 %v417
    %v437 = vpop.f32.mrf.mxu0
    %v438 = vadd.f32 0.0, %v437
    %439 = vdwg.mxu0
    %440 = vrot.lane.b32.xlu0 %v189, 96
    %v441 = vpop.permute.xlu0 %440
    %442 = vrot.lane.b32.xlu0 %v189, 32
    %v443 = vpop.permute.xlu0 %442
    %v444 = vsel %vm211, %v441, 0
    %v446 = vsel %vm211, %v443, 0
    %448 = vmatpush.xpose.msra.mxu0 %v291
    %449 = vmatpush.xpose.msra.mxu0 %v291
    %450 = vmatpush.xpose.msra.mxu0 %v291
    %451 = vmatpush.xpose.msra.mxu0 %v291
    %452 = vmatpush.xpose.msra.mxu0 %v291
    %453 = vmatpush.xpose.msra.mxu0 %v291
    %454 = vmatpush.xpose.msra.mxu0 %v291
    %455 = vmatpush.xpose.msra.mxu0 %v291
    %456 = vmatpush.xpose.msra.mxu0 %v291
    %457 = vmatpush.xpose.msra.mxu0 %v291
    %458 = vmatpush.xpose.msra.mxu0 %v291
    %459 = vmatpush.xpose.msra.mxu0 %v291
    %460 = vmatpush.xpose.msra.mxu0 %v291
    %461 = vmatpush.xpose.msra.mxu0 %v291
    %462 = vmatpush.xpose.msra.mxu0 %v291
    %463 = vmatpush.xpose.msra.mxu0 %v446
    %464 = vmatmul.f32.gmra.mxu0 %v444
    %v465 = vpop.f32.mrf.mxu0
    %v466 = vadd.f32 %v115, %v465
    %467 = vdwg.mxu0
    %468 = vmax.xlane.f32.xlu0 %v466
    %v469 = vpop.xlane.xlu0 %468
    %v470 = vsub.f32 %v466, %v469
    %v471 = vmul.f32 %v470, 1.442695
    %v472 = vpow.pop %v471
    %473 = vadd.xlane.f32.xlu0 %v472
    %v474 = vpop.xlane.xlu0 %473
    %v475 = vrcp.pop %v474
    %v476 = vmul.f32 %v474, %v475
    %v477 = vsub.f32 1.0, %v476
    %v478 = vmul.f32 %v475, %v477
    %v479 = vadd.f32 %v475, %v478
    %vm480 = vweird.f32 %v474
    %vm481 = vweird.f32 %v475
    %vm482 = vmor %vm480, %vm481
    %v483 = vsel %vm482, %v475, %v479
    %v484 = vand.u32 2147483647, %v474
    %vm485 = vcmp.eq.f32.partialorder %v484, 8.507059e+37
    %v486 = vand.u32 %v474, 2147483648
    %v487 = vor.u32 1.1754944e-38, %v486
    %v488 = vsel %vm485, %v487, %v483
    %v489 = vmul.f32 %v472, %v488
    %s490 = scalar_lea.vmem %s19, 24
    %491 = vst [vmem:[%s490] sm:$0xff] %v489
    %493 = vrot.lane.b32.xlu0 %v203, 96
    %v494 = vpop.permute.xlu0 %493
    %496 = vmatpush.msra.mxu0 %v341
    %497 = vmatpush.msra.mxu0 %v341
    %498 = vmatpush.msra.mxu0 %v341
    %499 = vmatpush.msra.mxu0 %v341
    %500 = vmatpush.msra.mxu0 %v341
    %501 = vmatpush.msra.mxu0 %v341
    %502 = vmatpush.msra.mxu0 %v341
    %503 = vmatpush.msra.mxu0 %v341
    %504 = vmatpush.msra.mxu0 %v341
    %505 = vmatpush.msra.mxu0 %v341
    %506 = vmatpush.msra.mxu0 %v341
    %507 = vmatpush.msra.mxu0 %v341
    %508 = vmatpush.msra.mxu0 %v341
    %509 = vmatpush.msra.mxu0 %v341
    %510 = vmatpush.msra.mxu0 %v341
    %511 = vmatpush.msra.mxu0 %v494
    %512 = vmatmul.f32.gmra.mxu0 %v489
    %v513 = vpop.f32.mrf.mxu0
    %v514 = vadd.f32 0.0, %v513
    %515 = vdwg.mxu0
    %517 = vrot.lane.b32.xlu0 %v514, 32
    %v518 = vpop.permute.xlu0 %517
    %v520 = vsel %vm211, %v438, %v518
    %v521 = vld [vmem:[%s6] sm:$0x1]
    %v523 = vperm.slane %v521, 0
    %v525 = vadd.f32 %v64, %v523
    %v526 = vadd.f32 %v65, %v523
    %v527 = vpack.c.bf16 %v520, %v368
    %v528 = vld [vmem:[%s5] sm:$0xf]
    %v529 = vld [vmem:[%s5 + $0x4] sm:$0xf]
    %v530 = vld [vmem:[%s5 + $0x8] sm:$0xf]
    %v531 = vld [vmem:[%s5 + $0xc] sm:$0xf]
    %v532 = vld [vmem:[%s5 + $0x10] sm:$0xf]
    %v533 = vld [vmem:[%s5 + $0x14] sm:$0xf]
    %v534 = vld [vmem:[%s5 + $0x18] sm:$0xf]
    %v535 = vld [vmem:[%s5 + $0x1c] sm:$0xf]
    %v544 = vunpack.c.l.b16 %v528
    %v545 = vunpack.c.l.b16 %v529
    %v546 = vunpack.c.l.b16 %v530
    %v547 = vunpack.c.l.b16 %v531
    %v548 = vunpack.c.l.b16 %v532
    %v549 = vunpack.c.l.b16 %v533
    %v550 = vunpack.c.l.b16 %v534
    %v551 = vunpack.c.l.b16 %v535
    %v552 = vpack.c.b16 %v545, %v544
    %v553 = vpack.c.b16 %v547, %v546
    %v554 = vpack.c.b16 %v549, %v548
    %v555 = vpack.c.b16 %v551, %v550
    %v561 = vsel %vm173, %v527, 0
    %563 = vmatpush.bf16.msra.mxu0 0
    %564 = vmatpush.bf16.msra.mxu0 0
    %565 = vmatpush.bf16.msra.mxu0 0
    %566 = vmatpush.bf16.msra.mxu0 0
    %567 = vmatpush.bf16.msra.mxu0 %v555
    %568 = vmatpush.bf16.msra.mxu0 %v554
    %569 = vmatpush.bf16.msra.mxu0 %v553
    %570 = vmatpush.bf16.msra.mxu0 %v552
    %571 = vmatmul.bf16.gmra.mxu0 %v561
    %v572 = vpop.f32.mrf.mxu0
    %v573 = vadd.f32 0.0, %v572
    %v574 = vpop.f32.mrf.mxu0
    %v575 = vadd.f32 0.0, %v574
    %576 = vdwg.mxu0
    %v577 = vadd.f32 %v525, %v573
    %v578 = vadd.f32 %v526, %v575
    %v579 = vsel %vm173, %v577, 0.0
    %580 = vadd.xlane.f32.xlu0 %v579
    %v581 = vpop.xlane.xlu0 %580
    %v582 = vsel %vm173, %v578, 0.0
    %583 = vadd.xlane.f32.xlu0 %v582
    %v584 = vpop.xlane.xlu0 %583
    %v585 = vrcp.pop 64.0
    %v586 = vmul.f32 64.0, %v585
    %v587 = vsub.f32 1.0, %v586
    %v588 = vmul.f32 %v585, %v587
    %v589 = vadd.f32 %v585, %v588
    %vm590 = vweird.f32 %v585
    %v591 = vsel %vm590, %v585, %v589
    %v592 = vmul.f32 %v581, %v591
    %v593 = vmul.f32 %v584, %v591
    %v594 = vsub.f32 %v577, %v592
    %v595 = vsub.f32 %v578, %v593
    %v596 = vmul.f32 %v594, %v594
    %v597 = vmul.f32 %v595, %v595
    %v598 = vsel %vm173, %v596, 0.0
    %599 = vadd.xlane.f32.xlu0 %v598
    %v600 = vpop.xlane.xlu0 %599
    %v601 = vsel %vm173, %v597, 0.0
    %602 = vadd.xlane.f32.xlu0 %v601
    %v603 = vpop.xlane.xlu0 %602
    %v604 = vmul.f32 %v600, %v591
    %v605 = vmul.f32 %v603, %v591
    %v606 = vadd.f32 %v604, 1e-05
    %v607 = vadd.f32 %v605, 1e-05
    %v608 = vrsqrt.pop %v606
    %v609 = vmul.f32 %v608, %v606
    %v610 = vmul.f32 %v609, %v608
    %v611 = vmul.f32 0.5, %v610
    %v612 = vsub.f32 1.5, %v611
    %v613 = vmul.f32 %v608, %v612
    %vm614 = vweird.f32 %v606
    %vm615 = vweird.f32 %v608
    %vm616 = vmor %vm614, %vm615
    %v617 = vsel %vm616, %v608, %v613
    %v618 = vrsqrt.pop %v607
    %v619 = vmul.f32 %v618, %v607
    %v620 = vmul.f32 %v619, %v618
    %v621 = vmul.f32 0.5, %v620
    %v622 = vsub.f32 1.5, %v621
    %v623 = vmul.f32 %v618, %v622
    %vm624 = vweird.f32 %v607
    %vm625 = vweird.f32 %v618
    %vm626 = vmor %vm624, %vm625
    %v627 = vsel %vm626, %v618, %v623
    %v628 = vmul.f32 %v594, %v617
    %v629 = vmul.f32 %v595, %v627
    %v630 = vpack.c.bf16 %v629, %v628
    %v631 = vld [vmem:[%s7] sm:$0xf]
    %v632 = vld [vmem:[%s7 + $0x4] sm:$0xf]
    %v633 = vld [vmem:[%s7 + $0x8] sm:$0xf]
    %v634 = vld [vmem:[%s7 + $0xc] sm:$0xf]
    %v635 = vld [vmem:[%s7 + $0x10] sm:$0xf]
    %v636 = vld [vmem:[%s7 + $0x14] sm:$0xf]
    %v637 = vld [vmem:[%s7 + $0x18] sm:$0xf]
    %v638 = vld [vmem:[%s7 + $0x1c] sm:$0xf]
    %v639 = vld [vmem:[%s8] sm:$0x1]
    %v641 = vperm.slane %v639, 0
    %v651 = vunpack.c.l.b16 %v631
    %v652 = vunpack.c.l.b16 %v632
    %v653 = vunpack.c.l.b16 %v633
    %v654 = vunpack.c.l.b16 %v634
    %v655 = vunpack.c.l.b16 %v635
    %v656 = vunpack.c.l.b16 %v636
    %v657 = vunpack.c.l.b16 %v637
    %v658 = vunpack.c.l.b16 %v638
    %v659 = vpack.c.b16 %v652, %v651
    %v660 = vpack.c.b16 %v654, %v653
    %v661 = vpack.c.b16 %v656, %v655
    %v662 = vpack.c.b16 %v658, %v657
    %v668 = vsel %vm173, %v630, 0
    %670 = vmatpush.bf16.msra.mxu0 0
    %671 = vmatpush.bf16.msra.mxu0 0
    %672 = vmatpush.bf16.msra.mxu0 0
    %673 = vmatpush.bf16.msra.mxu0 0
    %674 = vmatpush.bf16.msra.mxu0 %v662
    %675 = vmatpush.bf16.msra.mxu0 %v661
    %676 = vmatpush.bf16.msra.mxu0 %v660
    %677 = vmatpush.bf16.msra.mxu0 %v659
    %678 = vmatmul.bf16.gmra.mxu0 %v668
    %v679 = vpop.f32.mrf.mxu0
    %v680 = vadd.f32 %v641, %v679
    %v681 = vpop.f32.mrf.mxu0
    %v682 = vadd.f32 %v641, %v681
    %683 = vdwg.mxu0
    %v684 = vld [vmem:[%s9] sm:$0xf]
    %v685 = vld [vmem:[%s9 + $0x4] sm:$0xf]
    %v686 = vld [vmem:[%s9 + $0x8] sm:$0xf]
    %v687 = vld [vmem:[%s9 + $0xc] sm:$0xf]
    %v688 = vld [vmem:[%s9 + $0x10] sm:$0xf]
    %v689 = vld [vmem:[%s9 + $0x14] sm:$0xf]
    %v690 = vld [vmem:[%s9 + $0x18] sm:$0xf]
    %v691 = vld [vmem:[%s9 + $0x1c] sm:$0xf]
    %v692 = vld [vmem:[%s9 + $0x20] sm:$0xf]
    %v693 = vld [vmem:[%s9 + $0x24] sm:$0xf]
    %v694 = vld [vmem:[%s9 + $0x28] sm:$0xf]
    %v695 = vld [vmem:[%s9 + $0x2c] sm:$0xf]
    %v696 = vld [vmem:[%s9 + $0x30] sm:$0xf]
    %v697 = vld [vmem:[%s9 + $0x34] sm:$0xf]
    %v698 = vld [vmem:[%s9 + $0x38] sm:$0xf]
    %v699 = vld [vmem:[%s9 + $0x3c] sm:$0xf]
    %v700 = vld [vmem:[%s10] sm:$0x1]
    %v702 = vperm.slane %v700, 0
    %v720 = vunpack.c.l.b16 %v684
    %v721 = vunpack.c.l.b16 %v685
    %v722 = vunpack.c.l.b16 %v686
    %v723 = vunpack.c.l.b16 %v687
    %v724 = vunpack.c.l.b16 %v688
    %v725 = vunpack.c.l.b16 %v689
    %v726 = vunpack.c.l.b16 %v690
    %v727 = vunpack.c.l.b16 %v691
    %v728 = vunpack.c.l.b16 %v692
    %v729 = vunpack.c.l.b16 %v693
    %v730 = vunpack.c.l.b16 %v694
    %v731 = vunpack.c.l.b16 %v695
    %v732 = vunpack.c.l.b16 %v696
    %v733 = vunpack.c.l.b16 %v697
    %v734 = vunpack.c.l.b16 %v698
    %v735 = vunpack.c.l.b16 %v699
    %v736 = vpack.c.b16 %v721, %v720
    %v737 = vpack.c.b16 %v723, %v722
    %v738 = vpack.c.b16 %v725, %v724
    %v739 = vpack.c.b16 %v727, %v726
    %v740 = vpack.c.b16 %v729, %v728
    %v741 = vpack.c.b16 %v731, %v730
    %v742 = vpack.c.b16 %v733, %v732
    %v743 = vpack.c.b16 %v735, %v734
    %752 = vmatpush.bf16.msra.mxu0 %v743
    %753 = vmatpush.bf16.msra.mxu0 %v742
    %754 = vmatpush.bf16.msra.mxu0 %v741
    %755 = vmatpush.bf16.msra.mxu0 %v740
    %756 = vmatpush.bf16.msra.mxu0 %v739
    %757 = vmatpush.bf16.msra.mxu0 %v738
    %758 = vmatpush.bf16.msra.mxu0 %v737
    %759 = vmatpush.bf16.msra.mxu0 %v736
    %760 = vmatmul.bf16.gmra.mxu0 %v70
    %v761 = vpop.f32.mrf.mxu0
    %v762 = vadd.f32 %v702, %v761
    %v763 = vpop.f32.mrf.mxu0
    %v764 = vadd.f32 %v702, %v763
    %765 = vmatmul.bf16.gmra.mxu0 %v71
    %v766 = vpop.f32.mrf.mxu0
    %v767 = vadd.f32 %v702, %v766
    %v768 = vpop.f32.mrf.mxu0
    %v769 = vadd.f32 %v702, %v768
    %770 = vdwg.mxu0
    %v772 = vsel %vm211, %v680, 0
    %v775 = vsel %vm211, %v762, 0
    %v778 = vsel %vm211, %v764, 0
    %v780 = vsel %vm211, 0.0, 0
    %782 = vmatpush.xpose.msra.mxu0 %v780
    %783 = vmatpush.xpose.msra.mxu0 %v780
    %784 = vmatpush.xpose.msra.mxu0 %v780
    %785 = vmatpush.xpose.msra.mxu0 %v780
    %786 = vmatpush.xpose.msra.mxu0 %v780
    %787 = vmatpush.xpose.msra.mxu0 %v780
    %788 = vmatpush.xpose.msra.mxu0 %v780
    %789 = vmatpush.xpose.msra.mxu0 %v780
    %790 = vmatpush.xpose.msra.mxu0 %v780
    %791 = vmatpush.xpose.msra.mxu0 %v780
    %792 = vmatpush.xpose.msra.mxu0 %v780
    %793 = vmatpush.xpose.msra.mxu0 %v780
    %794 = vmatpush.xpose.msra.mxu0 %v780
    %795 = vmatpush.xpose.msra.mxu0 %v780
    %796 = vmatpush.xpose.msra.mxu0 %v778
    %797 = vmatpush.xpose.msra.mxu0 %v775
    %798 = vmatmul.f32.gmra.mxu0 %v772
    %v799 = vpop.f32.mrf.mxu0
    %v800 = vadd.f32 %v117, %v799
    %801 = vdwg.mxu0
    %802 = vmax.xlane.f32.xlu0 %v800
    %v803 = vpop.xlane.xlu0 %802
    %v804 = vsub.f32 %v800, %v803
    %v805 = vmul.f32 %v804, 1.442695
    %v806 = vpow.pop %v805
    %807 = vadd.xlane.f32.xlu0 %v806
    %v808 = vpop.xlane.xlu0 %807
    %v809 = vrcp.pop %v808
    %v810 = vmul.f32 %v808, %v809
    %v811 = vsub.f32 1.0, %v810
    %v812 = vmul.f32 %v809, %v811
    %v813 = vadd.f32 %v809, %v812
    %vm814 = vweird.f32 %v808
    %vm815 = vweird.f32 %v809
    %vm816 = vmor %vm814, %vm815
    %v817 = vsel %vm816, %v809, %v813
    %v818 = vand.u32 2147483647, %v808
    %vm819 = vcmp.eq.f32.partialorder %v818, 8.507059e+37
    %v820 = vand.u32 %v808, 2147483648
    %v821 = vor.u32 1.1754944e-38, %v820
    %v822 = vsel %vm819, %v821, %v817
    %v823 = vmul.f32 %v806, %v822
    %824 = vst [vmem:[%s20] sm:$0xff] %v823
    %825 = vrot.lane.b32.xlu0 %v762, 64
    %v826 = vpop.permute.xlu0 %825
    %827 = vrot.lane.b32.xlu0 %v764, 64
    %v828 = vpop.permute.xlu0 %827
    %832 = vmatpush.msra.mxu0 %v210
    %833 = vmatpush.msra.mxu0 %v210
    %834 = vmatpush.msra.mxu0 %v210
    %835 = vmatpush.msra.mxu0 %v210
    %836 = vmatpush.msra.mxu0 %v210
    %837 = vmatpush.msra.mxu0 %v210
    %838 = vmatpush.msra.mxu0 %v210
    %839 = vmatpush.msra.mxu0 %v210
    %840 = vmatpush.msra.mxu0 %v210
    %841 = vmatpush.msra.mxu0 %v210
    %842 = vmatpush.msra.mxu0 %v210
    %843 = vmatpush.msra.mxu0 %v210
    %844 = vmatpush.msra.mxu0 %v210
    %845 = vmatpush.msra.mxu0 %v210
    %846 = vmatpush.msra.mxu0 %v828
    %847 = vmatpush.msra.mxu0 %v826
    %848 = vmatmul.f32.gmra.mxu0 %v823
    %v849 = vpop.f32.mrf.mxu0
    %v850 = vadd.f32 0.0, %v849
    %851 = vdwg.mxu0
    %852 = vrot.lane.b32.xlu0 %v680, 96
    %v853 = vpop.permute.xlu0 %852
    %854 = vrot.lane.b32.xlu0 %v762, 96
    %v855 = vpop.permute.xlu0 %854
    %856 = vrot.lane.b32.xlu0 %v764, 96
    %v857 = vpop.permute.xlu0 %856
    %v858 = vsel %vm211, %v853, 0
    %v860 = vsel %vm211, %v855, 0
    %v862 = vsel %vm211, %v857, 0
    %v864 = vsel %vm211, %v341, 0
    %866 = vmatpush.xpose.msra.mxu0 %v864
    %867 = vmatpush.xpose.msra.mxu0 %v864
    %868 = vmatpush.xpose.msra.mxu0 %v864
    %869 = vmatpush.xpose.msra.mxu0 %v864
    %870 = vmatpush.xpose.msra.mxu0 %v864
    %871 = vmatpush.xpose.msra.mxu0 %v864
    %872 = vmatpush.xpose.msra.mxu0 %v864
    %873 = vmatpush.xpose.msra.mxu0 %v864
    %874 = vmatpush.xpose.msra.mxu0 %v864
    %875 = vmatpush.xpose.msra.mxu0 %v864
    %876 = vmatpush.xpose.msra.mxu0 %v864
    %877 = vmatpush.xpose.msra.mxu0 %v864
    %878 = vmatpush.xpose.msra.mxu0 %v864
    %879 = vmatpush.xpose.msra.mxu0 %v864
    %880 = vmatpush.xpose.msra.mxu0 %v862
    %881 = vmatpush.xpose.msra.mxu0 %v860
    %882 = vmatmul.f32.gmra.mxu0 %v858
    %v883 = vpop.f32.mrf.mxu0
    %v884 = vadd.f32 %v117, %v883
    %885 = vdwg.mxu0
    %886 = vmax.xlane.f32.xlu0 %v884
    %v887 = vpop.xlane.xlu0 %886
    %v888 = vsub.f32 %v884, %v887
    %v889 = vmul.f32 %v888, 1.442695
    %v890 = vpow.pop %v889
    %891 = vadd.xlane.f32.xlu0 %v890
    %v892 = vpop.xlane.xlu0 %891
    %v893 = vrcp.pop %v892
    %v894 = vmul.f32 %v892, %v893
    %v895 = vsub.f32 1.0, %v894
    %v896 = vmul.f32 %v893, %v895
    %v897 = vadd.f32 %v893, %v896
    %vm898 = vweird.f32 %v892
    %vm899 = vweird.f32 %v893
    %vm900 = vmor %vm898, %vm899
    %v901 = vsel %vm900, %v893, %v897
    %v902 = vand.u32 2147483647, %v892
    %vm903 = vcmp.eq.f32.partialorder %v902, 8.507059e+37
    %v904 = vand.u32 %v892, 2147483648
    %v905 = vor.u32 1.1754944e-38, %v904
    %v906 = vsel %vm903, %v905, %v901
    %v907 = vmul.f32 %v890, %v906
    %s908 = scalar_lea.vmem %s20, 8
    %909 = vst [vmem:[%s908] sm:$0xff] %v907
    %910 = vrot.lane.b32.xlu0 %v762, 32
    %v911 = vpop.permute.xlu0 %910
    %912 = vrot.lane.b32.xlu0 %v764, 32
    %v913 = vpop.permute.xlu0 %912
    %917 = vmatpush.msra.mxu0 %v286
    %918 = vmatpush.msra.mxu0 %v286
    %919 = vmatpush.msra.mxu0 %v286
    %920 = vmatpush.msra.mxu0 %v286
    %921 = vmatpush.msra.mxu0 %v286
    %922 = vmatpush.msra.mxu0 %v286
    %923 = vmatpush.msra.mxu0 %v286
    %924 = vmatpush.msra.mxu0 %v286
    %925 = vmatpush.msra.mxu0 %v286
    %926 = vmatpush.msra.mxu0 %v286
    %927 = vmatpush.msra.mxu0 %v286
    %928 = vmatpush.msra.mxu0 %v286
    %929 = vmatpush.msra.mxu0 %v286
    %930 = vmatpush.msra.mxu0 %v286
    %931 = vmatpush.msra.mxu0 %v913
    %932 = vmatpush.msra.mxu0 %v911
    %933 = vmatmul.f32.gmra.mxu0 %v907
    %v934 = vpop.f32.mrf.mxu0
    %v935 = vadd.f32 0.0, %v934
    %936 = vdwg.mxu0
    %938 = vrot.lane.b32.xlu0 %v935, 32
    %v939 = vpop.permute.xlu0 %938
    %v941 = vsel %vm211, %v850, %v939
    %v943 = vsel %vm211, %v682, 0
    %v946 = vsel %vm211, %v767, 0
    %v949 = vsel %vm211, %v769, 0
    %951 = vmatpush.xpose.msra.mxu0 %v780
    %952 = vmatpush.xpose.msra.mxu0 %v780
    %953 = vmatpush.xpose.msra.mxu0 %v780
    %954 = vmatpush.xpose.msra.mxu0 %v780
    %955 = vmatpush.xpose.msra.mxu0 %v780
    %956 = vmatpush.xpose.msra.mxu0 %v780
    %957 = vmatpush.xpose.msra.mxu0 %v780
    %958 = vmatpush.xpose.msra.mxu0 %v780
    %959 = vmatpush.xpose.msra.mxu0 %v780
    %960 = vmatpush.xpose.msra.mxu0 %v780
    %961 = vmatpush.xpose.msra.mxu0 %v780
    %962 = vmatpush.xpose.msra.mxu0 %v780
    %963 = vmatpush.xpose.msra.mxu0 %v780
    %964 = vmatpush.xpose.msra.mxu0 %v780
    %965 = vmatpush.xpose.msra.mxu0 %v949
    %966 = vmatpush.xpose.msra.mxu0 %v946
    %967 = vmatmul.f32.gmra.mxu0 %v943
    %v968 = vpop.f32.mrf.mxu0
    %v969 = vadd.f32 %v117, %v968
    %970 = vdwg.mxu0
    %971 = vmax.xlane.f32.xlu0 %v969
    %v972 = vpop.xlane.xlu0 %971
    %v973 = vsub.f32 %v969, %v972
    %v974 = vmul.f32 %v973, 1.442695
    %v975 = vpow.pop %v974
    %976 = vadd.xlane.f32.xlu0 %v975
    %v977 = vpop.xlane.xlu0 %976
    %v978 = vrcp.pop %v977
    %v979 = vmul.f32 %v977, %v978
    %v980 = vsub.f32 1.0, %v979
    %v981 = vmul.f32 %v978, %v980
    %v982 = vadd.f32 %v978, %v981
    %vm983 = vweird.f32 %v977
    %vm984 = vweird.f32 %v978
    %vm985 = vmor %vm983, %vm984
    %v986 = vsel %vm985, %v978, %v982
    %v987 = vand.u32 2147483647, %v977
    %vm988 = vcmp.eq.f32.partialorder %v987, 8.507059e+37
    %v989 = vand.u32 %v977, 2147483648
    %v990 = vor.u32 1.1754944e-38, %v989
    %v991 = vsel %vm988, %v990, %v986
    %v992 = vmul.f32 %v975, %v991
    %s993 = scalar_lea.vmem %s20, 16
    %994 = vst [vmem:[%s993] sm:$0xff] %v992
    %995 = vrot.lane.b32.xlu0 %v767, 64
    %v996 = vpop.permute.xlu0 %995
    %997 = vrot.lane.b32.xlu0 %v769, 64
    %v998 = vpop.permute.xlu0 %997
    %1001 = vmatpush.msra.mxu0 %v210
    %1002 = vmatpush.msra.mxu0 %v210
    %1003 = vmatpush.msra.mxu0 %v210
    %1004 = vmatpush.msra.mxu0 %v210
    %1005 = vmatpush.msra.mxu0 %v210
    %1006 = vmatpush.msra.mxu0 %v210
    %1007 = vmatpush.msra.mxu0 %v210
    %1008 = vmatpush.msra.mxu0 %v210
    %1009 = vmatpush.msra.mxu0 %v210
    %1010 = vmatpush.msra.mxu0 %v210
    %1011 = vmatpush.msra.mxu0 %v210
    %1012 = vmatpush.msra.mxu0 %v210
    %1013 = vmatpush.msra.mxu0 %v210
    %1014 = vmatpush.msra.mxu0 %v210
    %1015 = vmatpush.msra.mxu0 %v998
    %1016 = vmatpush.msra.mxu0 %v996
    %1017 = vmatmul.f32.gmra.mxu0 %v992
    %v1018 = vpop.f32.mrf.mxu0
    %v1019 = vadd.f32 0.0, %v1018
    %1020 = vdwg.mxu0
    %1021 = vrot.lane.b32.xlu0 %v682, 96
    %v1022 = vpop.permute.xlu0 %1021
    %1023 = vrot.lane.b32.xlu0 %v767, 96
    %v1024 = vpop.permute.xlu0 %1023
    %1025 = vrot.lane.b32.xlu0 %v769, 96
    %v1026 = vpop.permute.xlu0 %1025
    %v1027 = vsel %vm211, %v1022, 0
    %v1029 = vsel %vm211, %v1024, 0
    %v1031 = vsel %vm211, %v1026, 0
    %1033 = vmatpush.xpose.msra.mxu0 %v864
    %1034 = vmatpush.xpose.msra.mxu0 %v864
    %1035 = vmatpush.xpose.msra.mxu0 %v864
    %1036 = vmatpush.xpose.msra.mxu0 %v864
    %1037 = vmatpush.xpose.msra.mxu0 %v864
    %1038 = vmatpush.xpose.msra.mxu0 %v864
    %1039 = vmatpush.xpose.msra.mxu0 %v864
    %1040 = vmatpush.xpose.msra.mxu0 %v864
    %1041 = vmatpush.xpose.msra.mxu0 %v864
    %1042 = vmatpush.xpose.msra.mxu0 %v864
    %1043 = vmatpush.xpose.msra.mxu0 %v864
    %1044 = vmatpush.xpose.msra.mxu0 %v864
    %1045 = vmatpush.xpose.msra.mxu0 %v864
    %1046 = vmatpush.xpose.msra.mxu0 %v864
    %1047 = vmatpush.xpose.msra.mxu0 %v1031
    %1048 = vmatpush.xpose.msra.mxu0 %v1029
    %1049 = vmatmul.f32.gmra.mxu0 %v1027
    %v1050 = vpop.f32.mrf.mxu0
    %v1051 = vadd.f32 %v117, %v1050
    %1052 = vdwg.mxu0
    %1053 = vmax.xlane.f32.xlu0 %v1051
    %v1054 = vpop.xlane.xlu0 %1053
    %v1055 = vsub.f32 %v1051, %v1054
    %v1056 = vmul.f32 %v1055, 1.442695
    %v1057 = vpow.pop %v1056
    %1058 = vadd.xlane.f32.xlu0 %v1057
    %v1059 = vpop.xlane.xlu0 %1058
    %v1060 = vrcp.pop %v1059
    %v1061 = vmul.f32 %v1059, %v1060
    %v1062 = vsub.f32 1.0, %v1061
    %v1063 = vmul.f32 %v1060, %v1062
    %v1064 = vadd.f32 %v1060, %v1063
    %vm1065 = vweird.f32 %v1059
    %vm1066 = vweird.f32 %v1060
    %vm1067 = vmor %vm1065, %vm1066
    %v1068 = vsel %vm1067, %v1060, %v1064
    %v1069 = vand.u32 2147483647, %v1059
    %vm1070 = vcmp.eq.f32.partialorder %v1069, 8.507059e+37
    %v1071 = vand.u32 %v1059, 2147483648
    %v1072 = vor.u32 1.1754944e-38, %v1071
    %v1073 = vsel %vm1070, %v1072, %v1068
    %v1074 = vmul.f32 %v1057, %v1073
    %s1075 = scalar_lea.vmem %s20, 24
    %1076 = vst [vmem:[%s1075] sm:$0xff] %v1074
    %1077 = vrot.lane.b32.xlu0 %v767, 32
    %v1078 = vpop.permute.xlu0 %1077
    %1079 = vrot.lane.b32.xlu0 %v769, 32
    %v1080 = vpop.permute.xlu0 %1079
    %1083 = vmatpush.msra.mxu0 %v286
    %1084 = vmatpush.msra.mxu0 %v286
    %1085 = vmatpush.msra.mxu0 %v286
    %1086 = vmatpush.msra.mxu0 %v286
    %1087 = vmatpush.msra.mxu0 %v286
    %1088 = vmatpush.msra.mxu0 %v286
    %1089 = vmatpush.msra.mxu0 %v286
    %1090 = vmatpush.msra.mxu0 %v286
    %1091 = vmatpush.msra.mxu0 %v286
    %1092 = vmatpush.msra.mxu0 %v286
    %1093 = vmatpush.msra.mxu0 %v286
    %1094 = vmatpush.msra.mxu0 %v286
    %1095 = vmatpush.msra.mxu0 %v286
    %1096 = vmatpush.msra.mxu0 %v286
    %1097 = vmatpush.msra.mxu0 %v1080
    %1098 = vmatpush.msra.mxu0 %v1078
    %1099 = vmatmul.f32.gmra.mxu0 %v1074
    %v1100 = vpop.f32.mrf.mxu0
    %v1101 = vadd.f32 0.0, %v1100
    %1102 = vdwg.mxu0
    %1104 = vrot.lane.b32.xlu0 %v1101, 32
    %v1105 = vpop.permute.xlu0 %1104
    %v1107 = vsel %vm211, %v1019, %v1105
    %v1108 = vld [vmem:[%s12] sm:$0x1]
    %v1110 = vperm.slane %v1108, 0
    %v1112 = vadd.f32 %v628, %v1110
    %v1113 = vadd.f32 %v629, %v1110
    %v1114 = vpack.c.bf16 %v1107, %v941
    %v1115 = vld [vmem:[%s11] sm:$0xf]
    %v1116 = vld [vmem:[%s11 + $0x4] sm:$0xf]
    %v1117 = vld [vmem:[%s11 + $0x8] sm:$0xf]
    %v1118 = vld [vmem:[%s11 + $0xc] sm:$0xf]
    %v1119 = vld [vmem:[%s11 + $0x10] sm:$0xf]
    %v1120 = vld [vmem:[%s11 + $0x14] sm:$0xf]
    %v1121 = vld [vmem:[%s11 + $0x18] sm:$0xf]
    %v1122 = vld [vmem:[%s11 + $0x1c] sm:$0xf]
    %v1131 = vunpack.c.l.b16 %v1115
    %v1132 = vunpack.c.l.b16 %v1116
    %v1133 = vunpack.c.l.b16 %v1117
    %v1134 = vunpack.c.l.b16 %v1118
    %v1135 = vunpack.c.l.b16 %v1119
    %v1136 = vunpack.c.l.b16 %v1120
    %v1137 = vunpack.c.l.b16 %v1121
    %v1138 = vunpack.c.l.b16 %v1122
    %v1139 = vpack.c.b16 %v1132, %v1131
    %v1140 = vpack.c.b16 %v1134, %v1133
    %v1141 = vpack.c.b16 %v1136, %v1135
    %v1142 = vpack.c.b16 %v1138, %v1137
    %v1148 = vsel %vm173, %v1114, 0
    %1150 = vmatpush.bf16.msra.mxu0 0
    %1151 = vmatpush.bf16.msra.mxu0 0
    %1152 = vmatpush.bf16.msra.mxu0 0
    %1153 = vmatpush.bf16.msra.mxu0 0
    %1154 = vmatpush.bf16.msra.mxu0 %v1142
    %1155 = vmatpush.bf16.msra.mxu0 %v1141
    %1156 = vmatpush.bf16.msra.mxu0 %v1140
    %1157 = vmatpush.bf16.msra.mxu0 %v1139
    %1158 = vmatmul.bf16.gmra.mxu0 %v1148
    %v1159 = vpop.f32.mrf.mxu0
    %v1160 = vadd.f32 0.0, %v1159
    %v1161 = vpop.f32.mrf.mxu0
    %v1162 = vadd.f32 0.0, %v1161
    %1163 = vdwg.mxu0
    %v1164 = vadd.f32 %v1112, %v1160
    %v1165 = vadd.f32 %v1113, %v1162
    %v1166 = vsel %vm173, %v1164, 0.0
    %1167 = vadd.xlane.f32.xlu0 %v1166
    %v1168 = vpop.xlane.xlu0 %1167
    %v1169 = vsel %vm173, %v1165, 0.0
    %1170 = vadd.xlane.f32.xlu0 %v1169
    %v1171 = vpop.xlane.xlu0 %1170
    %v1172 = vmul.f32 %v1168, %v591
    %v1173 = vmul.f32 %v1171, %v591
    %v1174 = vsub.f32 %v1164, %v1172
    %v1175 = vsub.f32 %v1165, %v1173
    %v1176 = vmul.f32 %v1174, %v1174
    %v1177 = vmul.f32 %v1175, %v1175
    %v1178 = vsel %vm173, %v1176, 0.0
    %1179 = vadd.xlane.f32.xlu0 %v1178
    %v1180 = vpop.xlane.xlu0 %1179
    %v1181 = vsel %vm173, %v1177, 0.0
    %1182 = vadd.xlane.f32.xlu0 %v1181
    %v1183 = vpop.xlane.xlu0 %1182
    %v1184 = vmul.f32 %v1180, %v591
    %v1185 = vmul.f32 %v1183, %v591
    %v1186 = vadd.f32 %v1184, 1e-05
    %v1187 = vadd.f32 %v1185, 1e-05
    %v1188 = vrsqrt.pop %v1186
    %v1189 = vmul.f32 %v1188, %v1186
    %v1190 = vmul.f32 %v1189, %v1188
    %v1191 = vmul.f32 0.5, %v1190
    %v1192 = vsub.f32 1.5, %v1191
    %v1193 = vmul.f32 %v1188, %v1192
    %vm1194 = vweird.f32 %v1186
    %vm1195 = vweird.f32 %v1188
    %vm1196 = vmor %vm1194, %vm1195
    %v1197 = vsel %vm1196, %v1188, %v1193
    %v1198 = vrsqrt.pop %v1187
    %v1199 = vmul.f32 %v1198, %v1187
    %v1200 = vmul.f32 %v1199, %v1198
    %v1201 = vmul.f32 0.5, %v1200
    %v1202 = vsub.f32 1.5, %v1201
    %v1203 = vmul.f32 %v1198, %v1202
    %vm1204 = vweird.f32 %v1187
    %vm1205 = vweird.f32 %v1198
    %vm1206 = vmor %vm1204, %vm1205
    %v1207 = vsel %vm1206, %v1198, %v1203
    %v1208 = vmul.f32 %v1174, %v1197
    %v1209 = vmul.f32 %v1175, %v1207
    %v1210 = vpack.c.bf16 %v1209, %v1208
    %v1211 = vld [vmem:[%s13] sm:$0xf]
    %v1212 = vld [vmem:[%s13 + $0x4] sm:$0xf]
    %v1213 = vld [vmem:[%s13 + $0x8] sm:$0xf]
    %v1214 = vld [vmem:[%s13 + $0xc] sm:$0xf]
    %v1215 = vld [vmem:[%s13 + $0x10] sm:$0xf]
    %v1216 = vld [vmem:[%s13 + $0x14] sm:$0xf]
    %v1217 = vld [vmem:[%s13 + $0x18] sm:$0xf]
    %v1218 = vld [vmem:[%s13 + $0x1c] sm:$0xf]
    %v1219 = vld [vmem:[%s14] sm:$0x1]
    %v1221 = vperm.slane %v1219, 0
    %v1231 = vunpack.c.l.b16 %v1211
    %v1232 = vunpack.c.l.b16 %v1212
    %v1233 = vunpack.c.l.b16 %v1213
    %v1234 = vunpack.c.l.b16 %v1214
    %v1235 = vunpack.c.l.b16 %v1215
    %v1236 = vunpack.c.l.b16 %v1216
    %v1237 = vunpack.c.l.b16 %v1217
    %v1238 = vunpack.c.l.b16 %v1218
    %v1239 = vpack.c.b16 %v1232, %v1231
    %v1240 = vpack.c.b16 %v1234, %v1233
    %v1241 = vpack.c.b16 %v1236, %v1235
    %v1242 = vpack.c.b16 %v1238, %v1237
    %v1248 = vsel %vm173, %v1210, 0
    %1250 = vmatpush.bf16.msra.mxu0 0
    %1251 = vmatpush.bf16.msra.mxu0 0
    %1252 = vmatpush.bf16.msra.mxu0 0
    %1253 = vmatpush.bf16.msra.mxu0 0
    %1254 = vmatpush.bf16.msra.mxu0 %v1242
    %1255 = vmatpush.bf16.msra.mxu0 %v1241
    %1256 = vmatpush.bf16.msra.mxu0 %v1240
    %1257 = vmatpush.bf16.msra.mxu0 %v1239
    %1258 = vmatmul.bf16.gmra.mxu0 %v1248
    %v1259 = vpop.f32.mrf.mxu0
    %v1260 = vadd.f32 %v1221, %v1259
    %v1261 = vpop.f32.mrf.mxu0
    %v1262 = vadd.f32 %v1221, %v1261
    %1263 = vdwg.mxu0
    %v1264 = vmax.f32 %v1260, 0.0
    %v1265 = vmax.f32 %v1262, 0.0
    %v1266 = vpack.c.bf16 %v1265, %v1264
    %v1267 = vld [vmem:[%s15] sm:$0xf]
    %v1268 = vld [vmem:[%s15 + $0x4] sm:$0xf]
    %v1269 = vld [vmem:[%s15 + $0x8] sm:$0xf]
    %v1270 = vld [vmem:[%s15 + $0xc] sm:$0xf]
    %v1271 = vld [vmem:[%s15 + $0x10] sm:$0xf]
    %v1272 = vld [vmem:[%s15 + $0x14] sm:$0xf]
    %v1273 = vld [vmem:[%s15 + $0x18] sm:$0xf]
    %v1274 = vld [vmem:[%s15 + $0x1c] sm:$0xf]
    %v1275 = vld [vmem:[%s15 + $0x20] sm:$0xf]
    %v1276 = vld [vmem:[%s15 + $0x24] sm:$0xf]
    %v1277 = vld [vmem:[%s15 + $0x28] sm:$0xf]
    %v1278 = vld [vmem:[%s15 + $0x2c] sm:$0xf]
    %v1279 = vld [vmem:[%s15 + $0x30] sm:$0xf]
    %v1280 = vld [vmem:[%s15 + $0x34] sm:$0xf]
    %v1281 = vld [vmem:[%s15 + $0x38] sm:$0xf]
    %v1282 = vld [vmem:[%s15 + $0x3c] sm:$0xf]
    %v1283 = vld [vmem:[%s16] sm:$0x1]
    %v1285 = vperm.slane %v1283, 0
    %v1303 = vunpack.c.l.b16 %v1267
    %v1304 = vunpack.c.l.b16 %v1268
    %v1305 = vunpack.c.l.b16 %v1269
    %v1306 = vunpack.c.l.b16 %v1270
    %v1307 = vunpack.c.l.b16 %v1271
    %v1308 = vunpack.c.l.b16 %v1272
    %v1309 = vunpack.c.l.b16 %v1273
    %v1310 = vunpack.c.l.b16 %v1274
    %v1311 = vunpack.c.l.b16 %v1275
    %v1312 = vunpack.c.l.b16 %v1276
    %v1313 = vunpack.c.l.b16 %v1277
    %v1314 = vunpack.c.l.b16 %v1278
    %v1315 = vunpack.c.l.b16 %v1279
    %v1316 = vunpack.c.l.b16 %v1280
    %v1317 = vunpack.c.l.b16 %v1281
    %v1318 = vunpack.c.l.b16 %v1282
    %v1319 = vpack.c.b16 %v1304, %v1303
    %v1320 = vpack.c.b16 %v1306, %v1305
    %v1321 = vpack.c.b16 %v1308, %v1307
    %v1322 = vpack.c.b16 %v1310, %v1309
    %v1323 = vpack.c.b16 %v1312, %v1311
    %v1324 = vpack.c.b16 %v1314, %v1313
    %v1325 = vpack.c.b16 %v1316, %v1315
    %v1326 = vpack.c.b16 %v1318, %v1317
    %1335 = vmatpush.bf16.msra.mxu0 %v1326
    %1336 = vmatpush.bf16.msra.mxu0 %v1325
    %1337 = vmatpush.bf16.msra.mxu0 %v1324
    %1338 = vmatpush.bf16.msra.mxu0 %v1323
    %1339 = vmatpush.bf16.msra.mxu0 %v1322
    %1340 = vmatpush.bf16.msra.mxu0 %v1321
    %1341 = vmatpush.bf16.msra.mxu0 %v1320
    %1342 = vmatpush.bf16.msra.mxu0 %v1319
    %1343 = vmatmul.bf16.gmra.mxu0 %v1266
    %v1344 = vpop.f32.mrf.mxu0
    %v1345 = vadd.f32 %v1285, %v1344
    %v1346 = vpop.f32.mrf.mxu0
    %v1347 = vadd.f32 %v1285, %v1346
    %1348 = vdwg.mxu0
    %v1349 = vadd.f32 %v1345, %v1208
    %v1350 = vadd.f32 %v1347, %v1209
    %v1351 = vsel %vm173, %v1349, 0.0
    %1352 = vadd.xlane.f32.xlu0 %v1351
    %v1353 = vpop.xlane.xlu0 %1352
    %v1354 = vsel %vm173, %v1350, 0.0
    %1355 = vadd.xlane.f32.xlu0 %v1354
    %v1356 = vpop.xlane.xlu0 %1355
    %v1357 = vmul.f32 %v1353, %v591
    %v1358 = vmul.f32 %v1356, %v591
    %v1359 = vsub.f32 %v1349, %v1357
    %v1360 = vsub.f32 %v1350, %v1358
    %v1361 = vmul.f32 %v1359, %v1359
    %v1362 = vmul.f32 %v1360, %v1360
    %v1363 = vsel %vm173, %v1361, 0.0
    %1364 = vadd.xlane.f32.xlu0 %v1363
    %v1365 = vpop.xlane.xlu0 %1364
    %v1366 = vsel %vm173, %v1362, 0.0
    %1367 = vadd.xlane.f32.xlu0 %v1366
    %v1368 = vpop.xlane.xlu0 %1367
    %v1369 = vmul.f32 %v1365, %v591
    %v1370 = vmul.f32 %v1368, %v591
    %v1371 = vadd.f32 %v1369, 1e-05
    %v1372 = vadd.f32 %v1370, 1e-05
    %v1373 = vrsqrt.pop %v1371
    %v1374 = vmul.f32 %v1373, %v1371
    %v1375 = vmul.f32 %v1374, %v1373
    %v1376 = vmul.f32 0.5, %v1375
    %v1377 = vsub.f32 1.5, %v1376
    %v1378 = vmul.f32 %v1373, %v1377
    %vm1379 = vweird.f32 %v1371
    %vm1380 = vweird.f32 %v1373
    %vm1381 = vmor %vm1379, %vm1380
    %v1382 = vsel %vm1381, %v1373, %v1378
    %v1383 = vrsqrt.pop %v1372
    %v1384 = vmul.f32 %v1383, %v1372
    %v1385 = vmul.f32 %v1384, %v1383
    %v1386 = vmul.f32 0.5, %v1385
    %v1387 = vsub.f32 1.5, %v1386
    %v1388 = vmul.f32 %v1383, %v1387
    %vm1389 = vweird.f32 %v1372
    %vm1390 = vweird.f32 %v1383
    %vm1391 = vmor %vm1389, %vm1390
    %v1392 = vsel %vm1391, %v1383, %v1388
    %v1393 = vmul.f32 %v1359, %v1382
    %v1394 = vmul.f32 %v1360, %v1392
    %v1395 = vpack.c.bf16 %v1394, %v1393
    %v1396 = vld [vmem:[%s17] sm:$0xf]
    %v1397 = vld [vmem:[%s17 + $0x4] sm:$0xf]
    %v1398 = vld [vmem:[%s17 + $0x8] sm:$0xf]
    %v1399 = vld [vmem:[%s17 + $0xc] sm:$0xf]
    %v1400 = vld [vmem:[%s17 + $0x10] sm:$0xf]
    %v1401 = vld [vmem:[%s17 + $0x14] sm:$0xf]
    %v1402 = vld [vmem:[%s17 + $0x18] sm:$0xf]
    %v1403 = vld [vmem:[%s17 + $0x1c] sm:$0xf]
    %v1412 = vunpack.c.l.b16 %v1396
    %v1413 = vunpack.c.l.b16 %v1397
    %v1414 = vunpack.c.l.b16 %v1398
    %v1415 = vunpack.c.l.b16 %v1399
    %v1416 = vunpack.c.l.b16 %v1400
    %v1417 = vunpack.c.l.b16 %v1401
    %v1418 = vunpack.c.l.b16 %v1402
    %v1419 = vunpack.c.l.b16 %v1403
    %v1420 = vpack.c.b16 %v1413, %v1412
    %v1421 = vpack.c.b16 %v1415, %v1414
    %v1422 = vpack.c.b16 %v1417, %v1416
    %v1423 = vpack.c.b16 %v1419, %v1418
    %v1429 = vsel %vm173, %v1395, 0
    %1431 = vmatpush.bf16.msra.mxu0 0
    %1432 = vmatpush.bf16.msra.mxu0 0
    %1433 = vmatpush.bf16.msra.mxu0 0
    %1434 = vmatpush.bf16.msra.mxu0 0
    %1435 = vmatpush.bf16.msra.mxu0 %v1423
    %1436 = vmatpush.bf16.msra.mxu0 %v1422
    %1437 = vmatpush.bf16.msra.mxu0 %v1421
    %1438 = vmatpush.bf16.msra.mxu0 %v1420
    %1439 = vmatmul.bf16.gmra.mxu0 %v1429
    %v1440 = vpop.f32.mrf.mxu0
    %v1441 = vadd.f32 0.0, %v1440
    %v1442 = vpop.f32.mrf.mxu0
    %v1443 = vadd.f32 0.0, %v1442
    %1444 = vdwg.mxu0
    %1445 = vst [vmem:[#allocation2] sm:$0xff] %v1441
    %1446 = vst [vmem:[#allocation2 + $0x8] sm:$0xff] %v1443
    // Predicated region
    $region74: #{encoder_decoder_transformer.3} parent=1 // pred_check
      _
    $region75: #{encoder_decoder_transformer.3} parent=1 // pred_check_branch
      %1448 = sbr.rel (0) target = $region77
    $region76: #{encoder_decoder_transformer.3} parent=1 // pred_region
      %1450 = vsyncadd [#allocation3], 0
      %s1451 = sshll.u32 [#allocation2], 4
      %s1452 = int_to_ptr.vmem [resolvable:$true] %s1451
      %s1453 = sshll.u32 %s18, 4
      %s1454 = int_to_ptr.hbm [resolvable:$true] %s1453
      %1459 = dma.vmem_to_hbm [thread:$0]  %s1452, 256, %s1454, [#allocation3], 128, 128, 8
    $region77: #{encoder_decoder_transformer.3} parent=1 // pred_fallthru
      _
    // Predicated region
    $region78: #{encoder_decoder_transformer.3} parent=1 // pred_check
      _
    $region79: #{encoder_decoder_transformer.3} parent=1 // pred_check_branch
      %1461 = sbr.rel (0) target = $region81
    $region80: #{encoder_decoder_transformer.3} parent=1 // pred_region
      _
    $region81: #{encoder_decoder_transformer.3} parent=1 // pred_fallthru
      _
    // Predicated region
    $region82: #{encoder_decoder_transformer.3} parent=1 // pred_check
      _
    $region83: #{encoder_decoder_transformer.3} parent=1 // pred_check_branch
      %1463 = sbr.rel (0) target = $region85
    $region84: #{encoder_decoder_transformer.3} parent=1 // pred_region
      _
    $region85: #{encoder_decoder_transformer.3} parent=1 // pred_fallthru
      _
    // Predicated region
    $region86: #{encoder_decoder_transformer.3} parent=1 // pred_check
      _
    $region87: #{encoder_decoder_transformer.3} parent=1 // pred_check_branch
      %1465 = sbr.rel (0) target = $region89
    $region88: #{encoder_decoder_transformer.3} parent=1 // pred_region
      %1467 = dma.done [#allocation3], 256
    $region89: #{encoder_decoder_transformer.3} parent=1 // pred_fallthru
      _
    // Predicated region
    $region90: #{encoder_decoder_transformer.3} parent=1 // pred_check
      _
    $region91: #{encoder_decoder_transformer.3} parent=1 // pred_check_branch
      %1469 = sbr.rel (0) target = $region93
    $region92: #{encoder_decoder_transformer.3} parent=1 // pred_region
      _
    $region93: #{encoder_decoder_transformer.3} parent=1 // pred_fallthru
      _
    // Predicated region
    $region94: #{encoder_decoder_transformer.3} parent=1 // pred_check
      _
    $region95: #{encoder_decoder_transformer.3} parent=1 // pred_check_branch
      %1471 = sbr.rel (0) target = $region97
    $region96: #{encoder_decoder_transformer.3} parent=1 // pred_region
      _
    $region97: #{encoder_decoder_transformer.3} parent=1 // pred_fallthru
      _
    %1472 = vsyncpa [#allocation3], 1

</llo_original>
